<compile_context>
chip_gen: v7x
topology: tpu7x:2x2x1
jax: 0.10.0
libtpu: 0.0.40
codegen_flags: <defaults>
</compile_context>

<pallas_src>
from functools import partial

import jax
import jax.numpy as jnp
from jax.experimental import pallas as pl
from jax.experimental.pallas import tpu as pltpu

LANE = 128  # TPU lane width; all feature dims are zero-padded to this.


# ----------------------------- small helpers ---------------------------------

def _round_up(v, m):
    return (v + m - 1) // m * m


def _pad_lane(a, target=LANE):
    pad = target - a.shape[-1]
    if pad <= 0:
        return a
    return jnp.pad(a, [(0, 0)] * (a.ndim - 1) + [(0, pad)])


def _pad_2d(w, rows=LANE, cols=LANE):
    return jnp.pad(w, ((0, max(0, rows - w.shape[0])),
                       (0, max(0, cols - w.shape[1]))))


def _segment_ranks(seg_ids, counts):
    """Rank of each element within its segment (robust to input ordering)."""
    n = seg_ids.shape[0]
    off = jnp.cumsum(counts) - counts
    order = jnp.argsort(seg_ids)
    ranks_sorted = jnp.arange(n, dtype=jnp.int32) - off[seg_ids[order]]
    return jnp.zeros((n,), jnp.int32).at[order].set(ranks_sorted)


# ----------------------------- Pallas kernel ---------------------------------

def _encoder_graph_kernel(n_layers, hidden_dim,
                          cnt_ref,                       # scalar prefetch (SMEM)
                          x_ref, ea_ref, src_ref, dst_ref,
                          emb_w_ref, emb_b_ref, nn_w_ref, nn_b_ref,
                          root_ref, bias_ref, bn_scale_ref, bn_shift_ref,
                          lin_w_ref, lin_b_ref, expand_ref, reduce_ref,
                          out_ref):
    """Full NNConvEncoder forward for ONE graph block (one grid step)."""
    f32 = jnp.float32
    bf16 = jnp.bfloat16
    h = hidden_dim
    hh = h * h
    g = pl.program_id(0)
    n_b = x_ref.shape[1]          # nodes per graph block (padded)
    e_b = ea_ref.shape[1]         # edges per graph block (padded)

    # ---- structural 0/1 matrices for this graph block (exact in bf16) -------
    # Gather one-hot [E,N]; padded edges carry src = -1 so their row is zero.
    src_oh = (jax.lax.broadcasted_iota(jnp.int32, (e_b, n_b), 1)
              == src_ref[0]).astype(bf16)
    # Scatter one-hot built ALREADY TRANSPOSED [N,E] => MXU-native contraction.
    dst_oh = (jax.lax.broadcasted_iota(jnp.int32, (n_b, e_b), 0)
              == dst_ref[0]).astype(bf16)

    expand = expand_ref[...]       # bf16 [128, H*H]   channel replicate
    reduce_m = reduce_ref[...]     # bf16 [H*H, 128]   channel reduce

    # ---- node embedding (node-scaled, kept in f32) ---------------------------
    x = jnp.dot(x_ref[0], emb_w_ref[...], preferred_element_type=f32) + emb_b_ref[...]

    # ---- edge network for ALL layers in one MXU call (edge_attr is layer-
    #      invariant): [E,128]_bf16 @ [128, L*H*H]_bf16 -> f32 ----------------
    theta_all = (jnp.dot(ea_ref[0].astype(bf16), nn_w_ref[...],
                         preferred_element_type=f32) + nn_b_ref[...])

    inv_sqrt2 = jnp.float32(0.7071067811865476)
    for l in range(n_layers):
        theta = theta_all[:, l * hh:(l + 1) * hh]                       # [E, H*H] f32

        # Gather 128-wide node features to edges first (cheap), expand after.
        x_src = jnp.dot(src_oh, x.astype(bf16),
                        preferred_element_type=f32)                     # [E, 128]
        x_exp = jnp.dot(x_src.astype(bf16), expand,
                        preferred_element_type=f32)                     # [E, H*H]

        # Product in f32 (v5e has no bf16 VALU), single cast before the reduce.
        prod = (x_exp * theta).astype(bf16)
        msg = jnp.dot(prod, reduce_m, preferred_element_type=f32)       # [E, 128]

        # Scatter-add to destination nodes (aggr='add'), MXU-native layout.
        agg = jnp.dot(dst_oh, msg.astype(bf16),
                      preferred_element_type=f32)                       # [N, 128]

        # Root transform + bias, folded BatchNorm (eval), exact GELU, residual.
        out = agg + jnp.dot(x, root_ref[l], preferred_element_type=f32) + bias_ref[l]
        out = out * bn_scale_ref[l] + bn_shift_ref[l]
        out = 0.5 * out * (1.0 + jax.lax.erf(out * inv_sqrt2))
        x = x + out

    # ---- final projection + global_add_pool over the valid nodes ------------
    y = jnp.dot(x, lin_w_ref[...], preferred_element_type=f32) + lin_b_ref[...]
    n_valid = cnt_ref[g]
    mask = (jax.lax.broadcasted_iota(jnp.int32, (8, n_b), 1) < n_valid).astype(f32)
    # [8,N]@[N,128] MXU reduction; all 8 rows identical => full-sublane,
    # lane-dense store (no masked vst).
    out_ref[0] = jnp.dot(mask, y, preferred_element_type=f32)


# ----------------------------- parameter init --------------------------------

def init_params(key, input_dim, hidden_dim, output_dim, n_conv_layers,
                num_edge_features):
    eps = 1e-5
    keys = jax.random.split(key, 4 + 4 * n_conv_layers)
    k = iter(keys)

    def dense(kk, fan_in, fan_out):
        return jax.random.normal(kk, (fan_in, fan_out), jnp.float32) * (1.0 / jnp.sqrt(fan_in))

    params = {
        "node_emb_w": dense(next(k), input_dim, hidden_dim),
        "node_emb_b": jax.random.normal(next(k), (hidden_dim,), jnp.float32) * 0.01,
        "layers": [],
    }
    for _ in range(n_conv_layers):
        nn_w = dense(next(k), num_edge_features, hidden_dim * hidden_dim) * 0.1
        nn_b = jax.random.normal(next(k), (hidden_dim * hidden_dim,), jnp.float32) * 0.01
        root = dense(next(k), hidden_dim, hidden_dim)
        bias = jax.random.normal(next(k), (hidden_dim,), jnp.float32) * 0.01
        # BatchNorm (eval mode): gamma=1, beta=0, running_mean=0, running_var=1.
        gamma = jnp.ones((hidden_dim,), jnp.float32)
        beta = jnp.zeros((hidden_dim,), jnp.float32)
        r_mean = jnp.zeros((hidden_dim,), jnp.float32)
        r_var = jnp.ones((hidden_dim,), jnp.float32)
        scale = gamma / jnp.sqrt(r_var + eps)
        shift = beta - r_mean * scale
        params["layers"].append({
            "nn_w": nn_w, "nn_b": nn_b, "root": root, "bias": bias,
            "bn_scale": scale, "bn_shift": shift,
        })
    params["lin_w"] = dense(next(k), hidden_dim, output_dim)
    params["lin_b"] = jax.random.normal(next(k), (output_dim,), jnp.float32) * 0.01
    return params


# ----------------------------- model wrapper ---------------------------------

def nnconv_encoder_forward(params, x, edge_index, edge_attr, batch, *,
                           num_graphs, nodes_per_graph, edges_per_graph):
    """Forward pass.  nodes_per_graph / edges_per_graph are static upper bounds."""
    f32, i32 = jnp.float32, jnp.int32
    g_cnt = num_graphs
    h = params["node_emb_w"].shape[1]
    out_dim = params["lin_w"].shape[1]
    n_layers = len(params["layers"])
    hh = h * h
    assert h <= LANE and out_dim <= LANE

    n_b = _round_up(max(nodes_per_graph, 8), 8)
    e_b = _round_up(max(edges_per_graph, 8), 8)

    n_tot = x.shape[0]
    e_tot = edge_attr.shape[0]
    src = edge_index[0].astype(i32)
    dst = edge_index[1].astype(i32)
    batch = batch.astype(i32)

    # ---- group nodes / edges into fixed-size per-graph blocks ---------------
    node_counts = jnp.zeros((g_cnt,), i32).at[batch].add(1)
    node_slot = _segment_ranks(batch, node_counts)                # rank within graph
    e_graph = batch[src]
    edge_counts = jnp.zeros((g_cnt,), i32).at[e_graph].add(1)
    edge_slot = _segment_ranks(e_graph, edge_counts)

    x_pad = _pad_lane(x.astype(f32))
    ea_pad = _pad_lane(edge_attr.astype(f32))
    xb = jnp.zeros((g_cnt, n_b, LANE), f32).at[batch, node_slot].set(x_pad)
    eab = jnp.zeros((g_cnt, e_b, LANE), f32).at[e_graph, edge_slot].set(ea_pad)
    # Padded edges carry src/dst = -1 so the in-kernel one-hot compare drops them.
    srcb = jnp.full((g_cnt, e_b, 1), -1, i32).at[e_graph, edge_slot, 0].set(node_slot[src])
    dstb = jnp.full((g_cnt, 1, e_b), -1, i32).at[e_graph, 0, edge_slot].set(node_slot[dst])

    # ---- parameters: pad to lane width, stack conv layers --------------------
    emb_w = _pad_2d(params["node_emb_w"])                                  # [128,128]
    emb_b = _pad_lane(params["node_emb_b"].reshape(1, -1))                 # [1,128]
    nn_w_all = jnp.concatenate(
        [jnp.pad(lp["nn_w"], ((0, LANE - lp["nn_w"].shape[0]), (0, 0)))
         for lp in params["layers"]], axis=1).astype(jnp.bfloat16)         # [128, L*H*H]
    nn_b_all = jnp.concatenate(
        [lp["nn_b"].reshape(1, -1) for lp in params["layers"]], axis=1)    # [1, L*H*H]
    root_all = jnp.stack([_pad_2d(lp["root"]) for lp in params["layers"]])             # [L,128,128]
    bias_all = jnp.stack([_pad_lane(lp["bias"].reshape(1, -1)) for lp in params["layers"]])
    bn_scale_all = jnp.stack([_pad_lane(lp["bn_scale"].reshape(1, -1)) for lp in params["layers"]])
    bn_shift_all = jnp.stack([_pad_lane(lp["bn_shift"].reshape(1, -1)) for lp in params["layers"]])
    lin_w = _pad_2d(params["lin_w"])                                       # [128,128]
    lin_b = _pad_lane(params["lin_b"].reshape(1, -1))                      # [1,128]

    # Channel expand / reduce masks for the NNConv message (PyG in-channel-major
    # theta flatten), exact 0/1 in bf16, passed once as resident constants.
    cols = jnp.arange(hh, dtype=i32)
    rows128 = jnp.arange(LANE, dtype=i32)
    expand = (cols[None, :] // h == rows128[:, None]).astype(jnp.bfloat16)     # [128, H*H]
    reduce_m = (cols[:, None] % h == rows128[None, :]).astype(jnp.bfloat16)    # [H*H, 128]

    param_arrays = [emb_w, emb_b, nn_w_all, nn_b_all, root_all, bias_all,
                    bn_scale_all, bn_shift_all, lin_w, lin_b, expand, reduce_m]

    # ---- BlockSpecs -----------------------------------------------------------
    graph_specs = [
        pl.BlockSpec((1, n_b, LANE), lambda g, cnt: (g, 0, 0)),     # x block
        pl.BlockSpec((1, e_b, LANE), lambda g, cnt: (g, 0, 0)),     # edge_attr block
        pl.BlockSpec((1, e_b, 1),    lambda g, cnt: (g, 0, 0)),     # src block
        pl.BlockSpec((1, 1, e_b),    lambda g, cnt: (g, 0, 0)),     # dst block
    ]

    def _resident_spec(arr):
        zeros = (0,) * arr.ndim
        return pl.BlockSpec(tuple(arr.shape), lambda g, cnt, _z=zeros: _z)

    param_specs = [_resident_spec(a) for a in param_arrays]

    grid_spec = pltpu.PrefetchScalarGridSpec(
        num_scalar_prefetch=1,
        grid=(g_cnt,),
        in_specs=graph_specs + param_specs,
        out_specs=pl.BlockSpec((1, 8, LANE), lambda g, cnt: (g, 0, 0)),
    )

    # ---- VMEM budget (sized from the actual buffers, capped for v7x) ---------
    bpf, bpb = 4, 2
    graph_block_bytes = (n_b * LANE + e_b * LANE + 2 * e_b) * bpf
    out_block_bytes = 8 * LANE * bpf
    param_bytes = sum(int(a.size) * a.dtype.itemsize for a in param_arrays)
    interm_bytes = (e_b * n_layers * hh * bpf          # theta_all (f32)
                    + e_b * hh * (bpf + bpb)           # x_exp (f32) + product (bf16)
                    + 2 * e_b * n_b * bpb              # one-hots (bf16)
                    + 8 * n_b * LANE * bpf)            # node-feature temporaries
    total = 2 * (graph_block_bytes + out_block_bytes) + 2 * param_bytes + interm_bytes
    vmem_limit = int(min(64 * 2 ** 20, max(32 * 2 ** 20, 2 * total)))

    kernel = partial(_encoder_graph_kernel, n_layers, h)
    rep = pl.pallas_call(
        kernel,
        out_shape=jax.ShapeDtypeStruct((g_cnt, 8, LANE), f32),
        grid_spec=grid_spec,
        compiler_params=pltpu.CompilerParams(
            dimension_semantics=("parallel",),
            vmem_limit_bytes=vmem_limit),
    )(node_counts, xb, eab, srcb, dstb, *param_arrays)

    return rep[:, 0, :out_dim]


# ----------------------------- pure-JAX reference ------------------------------

def reference_forward(params, x, edge_index, edge_attr, batch, num_graphs):
    f32 = jnp.float32
    h = params["node_emb_w"].shape[1]
    src, dst = edge_index[0], edge_index[1]
    x = x.astype(f32) @ params["node_emb_w"] + params["node_emb_b"]
    inv_sqrt2 = jnp.float32(0.7071067811865476)
    for lp in params["layers"]:
        theta = (edge_attr.astype(f32) @ lp["nn_w"] + lp["nn_b"]).reshape(-1, h, h)
        msg = jnp.einsum("ei,eik->ek", x[src], theta)
        agg = jnp.zeros_like(x).at[dst].add(msg)
        out = agg + x @ lp["root"] + lp["bias"]
        out = out * lp["bn_scale"] + lp["bn_shift"]
        out = 0.5 * out * (1.0 + jax.lax.erf(out * inv_sqrt2))
        x = x + out
    x = x @ params["lin_w"] + params["lin_b"]
    return jnp.zeros((num_graphs, x.shape[1]), f32).at[batch].add(x)


# --------------------------------- main ----------------------------------------

if __name__ == "__main__":
    INPUT_DIM = 8          # pharmacophore feature types (OHE)
    HIDDEN_DIM = 32
    OUTPUT_DIM = 16
    N_CONV_LAYERS = 2
    NUM_EDGE_FEATURES = 8  # distance-encoding bins
    N_GRAPHS = 2
    NODES_PER_GRAPH = 8
    EDGES_PER_GRAPH = 16

    key = jax.random.PRNGKey(0)
    k_param, k_x, k_s0, k_d0, k_s1, k_d1, k_ea = jax.random.split(key, 7)

    params = init_params(k_param, INPUT_DIM, HIDDEN_DIM, OUTPUT_DIM,
                         N_CONV_LAYERS, NUM_EDGE_FEATURES)

    n_nodes = N_GRAPHS * NODES_PER_GRAPH
    n_edges = N_GRAPHS * EDGES_PER_GRAPH

    # data.x: one-hot pharmacophore feature types.
    feat_types = jax.random.randint(k_x, (n_nodes,), 0, INPUT_DIM)
    x = jax.nn.one_hot(feat_types, INPUT_DIM, dtype=jnp.float32)

    # data.edge_index (both endpoints of an edge lie in the same graph).
    src = jnp.concatenate([
        jax.random.randint(k_s0, (EDGES_PER_GRAPH,), 0, NODES_PER_GRAPH),
        jax.random.randint(k_s1, (EDGES_PER_GRAPH,), NODES_PER_GRAPH, 2 * NODES_PER_GRAPH),
    ])
    dst = jnp.concatenate([
        jax.random.randint(k_d0, (EDGES_PER_GRAPH,), 0, NODES_PER_GRAPH),
        jax.random.randint(k_d1, (EDGES_PER_GRAPH,), NODES_PER_GRAPH, 2 * NODES_PER_GRAPH),
    ])
    edge_index = jnp.stack([src, dst], axis=0)

    # data.edge_attr: one-hot distance bins.
    edge_bins = jax.random.randint(k_ea, (n_edges,), 0, NUM_EDGE_FEATURES)
    edge_attr = jax.nn.one_hot(edge_bins, NUM_EDGE_FEATURES, dtype=jnp.float32)

    # data.batch
    batch = jnp.concatenate([
        jnp.zeros((NODES_PER_GRAPH,), jnp.int32),
        jnp.ones((NODES_PER_GRAPH,), jnp.int32),
    ])

    fwd = jax.jit(partial(nnconv_encoder_forward,
                          num_graphs=N_GRAPHS,
                          nodes_per_graph=NODES_PER_GRAPH,
                          edges_per_graph=EDGES_PER_GRAPH))
    representation = fwd(params, x, edge_index, edge_attr, batch)
    representation = jax.block_until_ready(representation)

    assert representation.shape == (N_GRAPHS, OUTPUT_DIM)
    assert bool(jnp.all(jnp.isfinite(representation)))

    # Correctness check against a pure-JAX f32 reference (bf16 MXU operands =>
    # loose-but-safe tolerance).
    ref = reference_forward(params, x, edge_index, edge_attr, batch, N_GRAPHS)
    assert jnp.allclose(representation, ref[:, :OUTPUT_DIM], atol=5e-2, rtol=5e-2), (
        representation, ref[:, :OUTPUT_DIM])

    print("KERNEL_OK")
</pallas_src>

<mosaic_0001>
module attributes {stable_mosaic.version = 11 : i64} {
  func.func private @main(%arg0: i32) attributes {dimension_semantics = [#tpu.dimension_semantics<core_parallel>], iteration_bounds = array<i64: 2>, tpu.core_type = #tpu.core_type<sc_scalar_subcore>, window_params = []} {
    return
  }
}

module attributes {stable_mosaic.version = 11 : i64} {
  func.func private @main(%arg0: i32) attributes {dimension_semantics = [#tpu.dimension_semantics<core_parallel>], iteration_bounds = array<i64: 2>, tpu.core_type = #tpu.core_type<sc_scalar_subcore>, window_params = []} {
    return
  }
}

module attributes {stable_mosaic.version = 11 : i64} {
  func.func @_encoder_graph_kernel(%arg0: i32, %arg1: memref<2xi32, #tpu.memory_space<smem>>, %arg2: memref<1x8x128xf32, #tpu.memory_space<vmem>>, %arg3: memref<1x16x128xf32, #tpu.memory_space<vmem>>, %arg4: memref<1x16x1xi32, #tpu.memory_space<vmem>>, %arg5: memref<1x1x16xi32, #tpu.memory_space<vmem>>, %arg6: memref<128x128xf32, #tpu.memory_space<vmem>>, %arg7: memref<1x128xf32, #tpu.memory_space<vmem>>, %arg8: memref<128x2048xbf16, #tpu.memory_space<vmem>>, %arg9: memref<1x2048xf32, #tpu.memory_space<vmem>>, %arg10: memref<2x128x128xf32, #tpu.memory_space<vmem>>, %arg11: memref<2x1x128xf32, #tpu.memory_space<vmem>>, %arg12: memref<2x1x128xf32, #tpu.memory_space<vmem>>, %arg13: memref<2x1x128xf32, #tpu.memory_space<vmem>>, %arg14: memref<128x128xf32, #tpu.memory_space<vmem>>, %arg15: memref<1x128xf32, #tpu.memory_space<vmem>>, %arg16: memref<128x1024xbf16, #tpu.memory_space<vmem>>, %arg17: memref<1024x128xbf16, #tpu.memory_space<vmem>>, %arg18: memref<1x8x128xf32, #tpu.memory_space<vmem>>) attributes {dimension_semantics = [#tpu.dimension_semantics<parallel>], iteration_bounds = array<i64: 2>, scalar_prefetch = 1 : i64, scratch_operands = 0 : i64, tpu.core_type = #tpu.core_type<tc>, window_params = [{transform_indices = @transform_0, window_bounds = array<i64: 1, 8, 128>}, {transform_indices = @transform_1, window_bounds = array<i64: 1, 16, 128>}, {transform_indices = @transform_2, window_bounds = array<i64: 1, 16, 1>}, {transform_indices = @transform_3, window_bounds = array<i64: 1, 1, 16>}, {pipeline_mode = #tpu.pipeline_mode<synchronous>, transform_indices = @transform_4, window_bounds = array<i64: 128, 128>}, {pipeline_mode = #tpu.pipeline_mode<synchronous>, transform_indices = @transform_5, window_bounds = array<i64: 1, 128>}, {pipeline_mode = #tpu.pipeline_mode<synchronous>, transform_indices = @transform_6, window_bounds = array<i64: 128, 2048>}, {pipeline_mode = #tpu.pipeline_mode<synchronous>, transform_indices = @transform_7, window_bounds = array<i64: 1, 2048>}, {pipeline_mode = #tpu.pipeline_mode<synchronous>, transform_indices = @transform_8, window_bounds = array<i64: 2, 128, 128>}, {pipeline_mode = #tpu.pipeline_mode<synchronous>, transform_indices = @transform_9, window_bounds = array<i64: 2, 1, 128>}, {pipeline_mode = #tpu.pipeline_mode<synchronous>, transform_indices = @transform_10, window_bounds = array<i64: 2, 1, 128>}, {pipeline_mode = #tpu.pipeline_mode<synchronous>, transform_indices = @transform_11, window_bounds = array<i64: 2, 1, 128>}, {pipeline_mode = #tpu.pipeline_mode<synchronous>, transform_indices = @transform_12, window_bounds = array<i64: 128, 128>}, {pipeline_mode = #tpu.pipeline_mode<synchronous>, transform_indices = @transform_13, window_bounds = array<i64: 1, 128>}, {pipeline_mode = #tpu.pipeline_mode<synchronous>, transform_indices = @transform_14, window_bounds = array<i64: 128, 1024>}, {pipeline_mode = #tpu.pipeline_mode<synchronous>, transform_indices = @transform_15, window_bounds = array<i64: 1024, 128>}, {transform_indices = @transform_16, window_bounds = array<i64: 1, 8, 128>}]} {
    %0 = tpu.iota {dimensions = array<i32: 1>} : vector<16x8xi32>
    %c0 = arith.constant 0 : index
    %c0_0 = arith.constant 0 : index
    %c0_1 = arith.constant 0 : index
    %1 = vector.load %arg4[%c0, %c0_0, %c0_1] : memref<1x16x1xi32, #tpu.memory_space<vmem>>, vector<1x16x1xi32>
    %2 = vector.shape_cast %1 : vector<1x16x1xi32> to vector<16x1xi32>
    %3 = vector.broadcast %2 : vector<16x1xi32> to vector<16x8xi32>
    %4 = arith.cmpi eq, %0, %3 : vector<16x8xi32>
    %5 = arith.extui %4 : vector<16x8xi1> to vector<16x8xi32>
    %6 = arith.sitofp %5 : vector<16x8xi32> to vector<16x8xf32>
    %7 = arith.truncf %6 : vector<16x8xf32> to vector<16x8xbf16>
    %8 = tpu.iota {dimensions = array<i32: 0>} : vector<8x16xi32>
    %c0_2 = arith.constant 0 : index
    %c0_3 = arith.constant 0 : index
    %c0_4 = arith.constant 0 : index
    %9 = vector.load %arg5[%c0_2, %c0_3, %c0_4] : memref<1x1x16xi32, #tpu.memory_space<vmem>>, vector<1x1x16xi32>
    %10 = vector.shape_cast %9 : vector<1x1x16xi32> to vector<1x16xi32>
    %11 = vector.broadcast %10 : vector<1x16xi32> to vector<8x16xi32>
    %12 = arith.cmpi eq, %8, %11 : vector<8x16xi32>
    %13 = arith.extui %12 : vector<8x16xi1> to vector<8x16xi32>
    %14 = arith.sitofp %13 : vector<8x16xi32> to vector<8x16xf32>
    %15 = arith.truncf %14 : vector<8x16xf32> to vector<8x16xbf16>
    %c0_5 = arith.constant 0 : index
    %c0_6 = arith.constant 0 : index
    %16 = vector.load %arg16[%c0_5, %c0_6] : memref<128x1024xbf16, #tpu.memory_space<vmem>>, vector<128x1024xbf16>
    %c0_7 = arith.constant 0 : index
    %c0_8 = arith.constant 0 : index
    %17 = vector.load %arg17[%c0_7, %c0_8] : memref<1024x128xbf16, #tpu.memory_space<vmem>>, vector<1024x128xbf16>
    %c0_9 = arith.constant 0 : index
    %c0_10 = arith.constant 0 : index
    %c0_11 = arith.constant 0 : index
    %18 = vector.load %arg2[%c0_9, %c0_10, %c0_11] : memref<1x8x128xf32, #tpu.memory_space<vmem>>, vector<1x8x128xf32>
    %19 = vector.shape_cast %18 : vector<1x8x128xf32> to vector<8x128xf32>
    %c0_12 = arith.constant 0 : index
    %c0_13 = arith.constant 0 : index
    %20 = vector.load %arg6[%c0_12, %c0_13] : memref<128x128xf32, #tpu.memory_space<vmem>>, vector<128x128xf32>
    %cst = arith.constant dense<0.000000e+00> : vector<8x128xf32>
    %21 = tpu.matmul %19, %20, %cst {dimension_numbers = #tpu.dot_dimension_numbers<[1], [0], [0], [1], [0, 0, 1, 1], [], []>} : vector<8x128xf32>, vector<128x128xf32>, vector<8x128xf32> -> vector<8x128xf32>
    %c0_14 = arith.constant 0 : index
    %c0_15 = arith.constant 0 : index
    %22 = vector.load %arg7[%c0_14, %c0_15] : memref<1x128xf32, #tpu.memory_space<vmem>>, vector<1x128xf32>
    %23 = vector.broadcast %22 : vector<1x128xf32> to vector<8x128xf32>
    %24 = arith.addf %21, %23 : vector<8x128xf32>
    %c0_16 = arith.constant 0 : index
    %c0_17 = arith.constant 0 : index
    %c0_18 = arith.constant 0 : index
    %25 = vector.load %arg3[%c0_16, %c0_17, %c0_18] : memref<1x16x128xf32, #tpu.memory_space<vmem>>, vector<1x16x128xf32>
    %26 = vector.shape_cast %25 : vector<1x16x128xf32> to vector<16x128xf32>
    %27 = arith.truncf %26 : vector<16x128xf32> to vector<16x128xbf16>
    %c0_19 = arith.constant 0 : index
    %c0_20 = arith.constant 0 : index
    %28 = vector.load %arg8[%c0_19, %c0_20] : memref<128x2048xbf16, #tpu.memory_space<vmem>>, vector<128x2048xbf16>
    %cst_21 = arith.constant dense<0.000000e+00> : vector<16x2048xf32>
    %29 = tpu.matmul %27, %28, %cst_21 {dimension_numbers = #tpu.dot_dimension_numbers<[1], [0], [0], [1], [0, 0, 1, 1], [], []>} : vector<16x128xbf16>, vector<128x2048xbf16>, vector<16x2048xf32> -> vector<16x2048xf32>
    %c0_22 = arith.constant 0 : index
    %c0_23 = arith.constant 0 : index
    %30 = vector.load %arg9[%c0_22, %c0_23] : memref<1x2048xf32, #tpu.memory_space<vmem>>, vector<1x2048xf32>
    %31 = vector.broadcast %30 : vector<1x2048xf32> to vector<16x2048xf32>
    %32 = arith.addf %29, %31 : vector<16x2048xf32>
    %33 = vector.extract_strided_slice %32 {offsets = [0, 0], sizes = [16, 1024], strides = [1, 1]} : vector<16x2048xf32> to vector<16x1024xf32>
    %34 = arith.truncf %24 : vector<8x128xf32> to vector<8x128xbf16>
    %cst_24 = arith.constant dense<0.000000e+00> : vector<16x128xf32>
    %35 = tpu.matmul %7, %34, %cst_24 {dimension_numbers = #tpu.dot_dimension_numbers<[1], [0], [0], [1], [0, 0, 1, 1], [], []>} : vector<16x8xbf16>, vector<8x128xbf16>, vector<16x128xf32> -> vector<16x128xf32>
    %36 = arith.truncf %35 : vector<16x128xf32> to vector<16x128xbf16>
    %cst_25 = arith.constant dense<0.000000e+00> : vector<16x1024xf32>
    %37 = tpu.matmul %36, %16, %cst_25 {dimension_numbers = #tpu.dot_dimension_numbers<[1], [0], [0], [1], [0, 0, 1, 1], [], []>} : vector<16x128xbf16>, vector<128x1024xbf16>, vector<16x1024xf32> -> vector<16x1024xf32>
    %38 = arith.mulf %37, %33 : vector<16x1024xf32>
    %39 = arith.truncf %38 : vector<16x1024xf32> to vector<16x1024xbf16>
    %cst_26 = arith.constant dense<0.000000e+00> : vector<16x128xf32>
    %40 = tpu.matmul %39, %17, %cst_26 {dimension_numbers = #tpu.dot_dimension_numbers<[1], [0], [0], [1], [0, 0, 1, 1], [], []>} : vector<16x1024xbf16>, vector<1024x128xbf16>, vector<16x128xf32> -> vector<16x128xf32>
    %41 = arith.truncf %40 : vector<16x128xf32> to vector<16x128xbf16>
    %cst_27 = arith.constant dense<0.000000e+00> : vector<8x128xf32>
    %42 = tpu.matmul %15, %41, %cst_27 {dimension_numbers = #tpu.dot_dimension_numbers<[1], [0], [0], [1], [0, 0, 1, 1], [], []>} : vector<8x16xbf16>, vector<16x128xbf16>, vector<8x128xf32> -> vector<8x128xf32>
    %c0_28 = arith.constant 0 : index
    %c0_29 = arith.constant 0 : index
    %c0_30 = arith.constant 0 : index
    %43 = vector.load %arg10[%c0_28, %c0_29, %c0_30] : memref<2x128x128xf32, #tpu.memory_space<vmem>>, vector<1x128x128xf32>
    %44 = vector.shape_cast %43 : vector<1x128x128xf32> to vector<128x128xf32>
    %cst_31 = arith.constant dense<0.000000e+00> : vector<8x128xf32>
    %45 = tpu.matmul %24, %44, %cst_31 {dimension_numbers = #tpu.dot_dimension_numbers<[1], [0], [0], [1], [0, 0, 1, 1], [], []>} : vector<8x128xf32>, vector<128x128xf32>, vector<8x128xf32> -> vector<8x128xf32>
    %46 = arith.addf %42, %45 : vector<8x128xf32>
    %c0_32 = arith.constant 0 : index
    %c0_33 = arith.constant 0 : index
    %c0_34 = arith.constant 0 : index
    %47 = vector.load %arg11[%c0_32, %c0_33, %c0_34] : memref<2x1x128xf32, #tpu.memory_space<vmem>>, vector<1x1x128xf32>
    %48 = vector.shape_cast %47 : vector<1x1x128xf32> to vector<1x128xf32>
    %49 = vector.broadcast %48 : vector<1x128xf32> to vector<8x128xf32>
    %50 = arith.addf %46, %49 : vector<8x128xf32>
    %c0_35 = arith.constant 0 : index
    %c0_36 = arith.constant 0 : index
    %c0_37 = arith.constant 0 : index
    %51 = vector.load %arg12[%c0_35, %c0_36, %c0_37] : memref<2x1x128xf32, #tpu.memory_space<vmem>>, vector<1x1x128xf32>
    %52 = vector.shape_cast %51 : vector<1x1x128xf32> to vector<1x128xf32>
    %53 = vector.broadcast %52 : vector<1x128xf32> to vector<8x128xf32>
    %54 = arith.mulf %50, %53 : vector<8x128xf32>
    %c0_38 = arith.constant 0 : index
    %c0_39 = arith.constant 0 : index
    %c0_40 = arith.constant 0 : index
    %55 = vector.load %arg13[%c0_38, %c0_39, %c0_40] : memref<2x1x128xf32, #tpu.memory_space<vmem>>, vector<1x1x128xf32>
    %56 = vector.shape_cast %55 : vector<1x1x128xf32> to vector<1x128xf32>
    %57 = vector.broadcast %56 : vector<1x128xf32> to vector<8x128xf32>
    %58 = arith.addf %54, %57 : vector<8x128xf32>
    %cst_41 = arith.constant 5.000000e-01 : f32
    %59 = vector.broadcast %cst_41 : f32 to vector<8x128xf32>
    %60 = arith.mulf %59, %58 : vector<8x128xf32>
    %cst_42 = arith.constant 0.707106769 : f32
    %61 = vector.broadcast %cst_42 : f32 to vector<8x128xf32>
    %62 = arith.mulf %58, %61 : vector<8x128xf32>
    %63 = math.erf %62 : vector<8x128xf32>
    %cst_43 = arith.constant 1.000000e+00 : f32
    %64 = vector.broadcast %cst_43 : f32 to vector<8x128xf32>
    %65 = arith.addf %64, %63 : vector<8x128xf32>
    %66 = arith.mulf %60, %65 : vector<8x128xf32>
    %67 = arith.addf %24, %66 : vector<8x128xf32>
    %68 = vector.extract_strided_slice %32 {offsets = [0, 1024], sizes = [16, 1024], strides = [1, 1]} : vector<16x2048xf32> to vector<16x1024xf32>
    %69 = arith.truncf %67 : vector<8x128xf32> to vector<8x128xbf16>
    %cst_44 = arith.constant dense<0.000000e+00> : vector<16x128xf32>
    %70 = tpu.matmul %7, %69, %cst_44 {dimension_numbers = #tpu.dot_dimension_numbers<[1], [0], [0], [1], [0, 0, 1, 1], [], []>} : vector<16x8xbf16>, vector<8x128xbf16>, vector<16x128xf32> -> vector<16x128xf32>
    %71 = arith.truncf %70 : vector<16x128xf32> to vector<16x128xbf16>
    %cst_45 = arith.constant dense<0.000000e+00> : vector<16x1024xf32>
    %72 = tpu.matmul %71, %16, %cst_45 {dimension_numbers = #tpu.dot_dimension_numbers<[1], [0], [0], [1], [0, 0, 1, 1], [], []>} : vector<16x128xbf16>, vector<128x1024xbf16>, vector<16x1024xf32> -> vector<16x1024xf32>
    %73 = arith.mulf %72, %68 : vector<16x1024xf32>
    %74 = arith.truncf %73 : vector<16x1024xf32> to vector<16x1024xbf16>
    %cst_46 = arith.constant dense<0.000000e+00> : vector<16x128xf32>
    %75 = tpu.matmul %74, %17, %cst_46 {dimension_numbers = #tpu.dot_dimension_numbers<[1], [0], [0], [1], [0, 0, 1, 1], [], []>} : vector<16x1024xbf16>, vector<1024x128xbf16>, vector<16x128xf32> -> vector<16x128xf32>
    %76 = arith.truncf %75 : vector<16x128xf32> to vector<16x128xbf16>
    %cst_47 = arith.constant dense<0.000000e+00> : vector<8x128xf32>
    %77 = tpu.matmul %15, %76, %cst_47 {dimension_numbers = #tpu.dot_dimension_numbers<[1], [0], [0], [1], [0, 0, 1, 1], [], []>} : vector<8x16xbf16>, vector<16x128xbf16>, vector<8x128xf32> -> vector<8x128xf32>
    %c1 = arith.constant 1 : index
    %c0_48 = arith.constant 0 : index
    %c0_49 = arith.constant 0 : index
    %78 = vector.load %arg10[%c1, %c0_48, %c0_49] : memref<2x128x128xf32, #tpu.memory_space<vmem>>, vector<1x128x128xf32>
    %79 = vector.shape_cast %78 : vector<1x128x128xf32> to vector<128x128xf32>
    %cst_50 = arith.constant dense<0.000000e+00> : vector<8x128xf32>
    %80 = tpu.matmul %67, %79, %cst_50 {dimension_numbers = #tpu.dot_dimension_numbers<[1], [0], [0], [1], [0, 0, 1, 1], [], []>} : vector<8x128xf32>, vector<128x128xf32>, vector<8x128xf32> -> vector<8x128xf32>
    %81 = arith.addf %77, %80 : vector<8x128xf32>
    %c1_51 = arith.constant 1 : index
    %c0_52 = arith.constant 0 : index
    %c0_53 = arith.constant 0 : index
    %82 = vector.load %arg11[%c1_51, %c0_52, %c0_53] : memref<2x1x128xf32, #tpu.memory_space<vmem>>, vector<1x1x128xf32>
    %83 = vector.shape_cast %82 : vector<1x1x128xf32> to vector<1x128xf32>
    %84 = vector.broadcast %83 : vector<1x128xf32> to vector<8x128xf32>
    %85 = arith.addf %81, %84 : vector<8x128xf32>
    %c1_54 = arith.constant 1 : index
    %c0_55 = arith.constant 0 : index
    %c0_56 = arith.constant 0 : index
    %86 = vector.load %arg12[%c1_54, %c0_55, %c0_56] : memref<2x1x128xf32, #tpu.memory_space<vmem>>, vector<1x1x128xf32>
    %87 = vector.shape_cast %86 : vector<1x1x128xf32> to vector<1x128xf32>
    %88 = vector.broadcast %87 : vector<1x128xf32> to vector<8x128xf32>
    %89 = arith.mulf %85, %88 : vector<8x128xf32>
    %c1_57 = arith.constant 1 : index
    %c0_58 = arith.constant 0 : index
    %c0_59 = arith.constant 0 : index
    %90 = vector.load %arg13[%c1_57, %c0_58, %c0_59] : memref<2x1x128xf32, #tpu.memory_space<vmem>>, vector<1x1x128xf32>
    %91 = vector.shape_cast %90 : vector<1x1x128xf32> to vector<1x128xf32>
    %92 = vector.broadcast %91 : vector<1x128xf32> to vector<8x128xf32>
    %93 = arith.addf %89, %92 : vector<8x128xf32>
    %cst_60 = arith.constant 5.000000e-01 : f32
    %94 = vector.broadcast %cst_60 : f32 to vector<8x128xf32>
    %95 = arith.mulf %94, %93 : vector<8x128xf32>
    %cst_61 = arith.constant 0.707106769 : f32
    %96 = vector.broadcast %cst_61 : f32 to vector<8x128xf32>
    %97 = arith.mulf %93, %96 : vector<8x128xf32>
    %98 = math.erf %97 : vector<8x128xf32>
    %cst_62 = arith.constant 1.000000e+00 : f32
    %99 = vector.broadcast %cst_62 : f32 to vector<8x128xf32>
    %100 = arith.addf %99, %98 : vector<8x128xf32>
    %101 = arith.mulf %95, %100 : vector<8x128xf32>
    %102 = arith.addf %67, %101 : vector<8x128xf32>
    %c0_63 = arith.constant 0 : index
    %c0_64 = arith.constant 0 : index
    %103 = vector.load %arg14[%c0_63, %c0_64] : memref<128x128xf32, #tpu.memory_space<vmem>>, vector<128x128xf32>
    %cst_65 = arith.constant dense<0.000000e+00> : vector<8x128xf32>
    %104 = tpu.matmul %102, %103, %cst_65 {dimension_numbers = #tpu.dot_dimension_numbers<[1], [0], [0], [1], [0, 0, 1, 1], [], []>} : vector<8x128xf32>, vector<128x128xf32>, vector<8x128xf32> -> vector<8x128xf32>
    %c0_66 = arith.constant 0 : index
    %c0_67 = arith.constant 0 : index
    %105 = vector.load %arg15[%c0_66, %c0_67] : memref<1x128xf32, #tpu.memory_space<vmem>>, vector<1x128xf32>
    %106 = vector.broadcast %105 : vector<1x128xf32> to vector<8x128xf32>
    %107 = arith.addf %104, %106 : vector<8x128xf32>
    %108 = arith.index_cast %arg0 : i32 to index
    %109 = memref.load %arg1[%108] : memref<2xi32, #tpu.memory_space<smem>>
    %110 = tpu.iota {dimensions = array<i32: 1>} : vector<8x8xi32>
    %111 = vector.broadcast %109 : i32 to vector<8x8xi32>
    %112 = arith.cmpi slt, %110, %111 : vector<8x8xi32>
    %113 = arith.extui %112 : vector<8x8xi1> to vector<8x8xi32>
    %114 = arith.sitofp %113 : vector<8x8xi32> to vector<8x8xf32>
    %cst_68 = arith.constant dense<0.000000e+00> : vector<8x128xf32>
    %115 = tpu.matmul %114, %107, %cst_68 {dimension_numbers = #tpu.dot_dimension_numbers<[1], [0], [0], [1], [0, 0, 1, 1], [], []>} : vector<8x8xf32>, vector<8x128xf32>, vector<8x128xf32> -> vector<8x128xf32>
    %c0_69 = arith.constant 0 : index
    %c0_70 = arith.constant 0 : index
    %c0_71 = arith.constant 0 : index
    %116 = vector.load %arg18[%c0_69, %c0_70, %c0_71] : memref<1x8x128xf32, #tpu.memory_space<vmem>>, vector<1x8x128xf32>
    %117 = vector.shape_cast %116 : vector<1x8x128xf32> to vector<8x128xf32>
    %118 = vector.shape_cast %115 : vector<8x128xf32> to vector<1x8x128xf32>
    tpu.vector_store %arg18[%c0_69, %c0_70, %c0_71], %118 {strides = array<i32>} : memref<1x8x128xf32, #tpu.memory_space<vmem>>, vector<1x8x128xf32>,
    return
  }
  func.func @transform_0(%arg0: i32, %arg1: memref<2xi32, #tpu.memory_space<smem>>) -> (i32, i32, i32) {
    %c0_i32 = arith.constant 0 : i32
    %c0_i32_0 = arith.constant 0 : i32
    %c0_i32_1 = arith.constant 0 : i32
    return %arg0, %c0_i32, %c0_i32_0 : i32, i32, i32
  }
  func.func @transform_1(%arg0: i32, %arg1: memref<2xi32, #tpu.memory_space<smem>>) -> (i32, i32, i32) {
    %c0_i32 = arith.constant 0 : i32
    %c0_i32_0 = arith.constant 0 : i32
    %c0_i32_1 = arith.constant 0 : i32
    return %arg0, %c0_i32, %c0_i32_0 : i32, i32, i32
  }
  func.func @transform_2(%arg0: i32, %arg1: memref<2xi32, #tpu.memory_space<smem>>) -> (i32, i32, i32) {
    %c0_i32 = arith.constant 0 : i32
    %c0_i32_0 = arith.constant 0 : i32
    %c0_i32_1 = arith.constant 0 : i32
    return %arg0, %c0_i32, %c0_i32_0 : i32, i32, i32
  }
  func.func @transform_3(%arg0: i32, %arg1: memref<2xi32, #tpu.memory_space<smem>>) -> (i32, i32, i32) {
    %c0_i32 = arith.constant 0 : i32
    %c0_i32_0 = arith.constant 0 : i32
    %c0_i32_1 = arith.constant 0 : i32
    return %arg0, %c0_i32, %c0_i32_0 : i32, i32, i32
  }
  func.func @transform_4(%arg0: i32, %arg1: memref<2xi32, #tpu.memory_space<smem>>) -> (i32, i32) {
    %c0_i32 = arith.constant 0 : i32
    %c0_i32_0 = arith.constant 0 : i32
    %c0_i32_1 = arith.constant 0 : i32
    return %c0_i32, %c0_i32_0 : i32, i32
  }
  func.func @transform_5(%arg0: i32, %arg1: memref<2xi32, #tpu.memory_space<smem>>) -> (i32, i32) {
    %c0_i32 = arith.constant 0 : i32
    %c0_i32_0 = arith.constant 0 : i32
    %c0_i32_1 = arith.constant 0 : i32
    return %c0_i32, %c0_i32_0 : i32, i32
  }
  func.func @transform_6(%arg0: i32, %arg1: memref<2xi32, #tpu.memory_space<smem>>) -> (i32, i32) {
    %c0_i32 = arith.constant 0 : i32
    %c0_i32_0 = arith.constant 0 : i32
    %c0_i32_1 = arith.constant 0 : i32
    return %c0_i32, %c0_i32_0 : i32, i32
  }
  func.func @transform_7(%arg0: i32, %arg1: memref<2xi32, #tpu.memory_space<smem>>) -> (i32, i32) {
    %c0_i32 = arith.constant 0 : i32
    %c0_i32_0 = arith.constant 0 : i32
    %c0_i32_1 = arith.constant 0 : i32
    return %c0_i32, %c0_i32_0 : i32, i32
  }
  func.func @transform_8(%arg0: i32, %arg1: memref<2xi32, #tpu.memory_space<smem>>) -> (i32, i32, i32) {
    %c0_i32 = arith.constant 0 : i32
    %c0_i32_0 = arith.constant 0 : i32
    %c0_i32_1 = arith.constant 0 : i32
    %c0_i32_2 = arith.constant 0 : i32
    return %c0_i32, %c0_i32_0, %c0_i32_1 : i32, i32, i32
  }
  func.func @transform_9(%arg0: i32, %arg1: memref<2xi32, #tpu.memory_space<smem>>) -> (i32, i32, i32) {
    %c0_i32 = arith.constant 0 : i32
    %c0_i32_0 = arith.constant 0 : i32
    %c0_i32_1 = arith.constant 0 : i32
    %c0_i32_2 = arith.constant 0 : i32
    return %c0_i32, %c0_i32_0, %c0_i32_1 : i32, i32, i32
  }
  func.func @transform_10(%arg0: i32, %arg1: memref<2xi32, #tpu.memory_space<smem>>) -> (i32, i32, i32) {
    %c0_i32 = arith.constant 0 : i32
    %c0_i32_0 = arith.constant 0 : i32
    %c0_i32_1 = arith.constant 0 : i32
    %c0_i32_2 = arith.constant 0 : i32
    return %c0_i32, %c0_i32_0, %c0_i32_1 : i32, i32, i32
  }
  func.func @transform_11(%arg0: i32, %arg1: memref<2xi32, #tpu.memory_space<smem>>) -> (i32, i32, i32) {
    %c0_i32 = arith.constant 0 : i32
    %c0_i32_0 = arith.constant 0 : i32
    %c0_i32_1 = arith.constant 0 : i32
    %c0_i32_2 = arith.constant 0 : i32
    return %c0_i32, %c0_i32_0, %c0_i32_1 : i32, i32, i32
  }
  func.func @transform_12(%arg0: i32, %arg1: memref<2xi32, #tpu.memory_space<smem>>) -> (i32, i32) {
    %c0_i32 = arith.constant 0 : i32
    %c0_i32_0 = arith.constant 0 : i32
    %c0_i32_1 = arith.constant 0 : i32
    return %c0_i32, %c0_i32_0 : i32, i32
  }
  func.func @transform_13(%arg0: i32, %arg1: memref<2xi32, #tpu.memory_space<smem>>) -> (i32, i32) {
    %c0_i32 = arith.constant 0 : i32
    %c0_i32_0 = arith.constant 0 : i32
    %c0_i32_1 = arith.constant 0 : i32
    return %c0_i32, %c0_i32_0 : i32, i32
  }
  func.func @transform_14(%arg0: i32, %arg1: memref<2xi32, #tpu.memory_space<smem>>) -> (i32, i32) {
    %c0_i32 = arith.constant 0 : i32
    %c0_i32_0 = arith.constant 0 : i32
    %c0_i32_1 = arith.constant 0 : i32
    return %c0_i32, %c0_i32_0 : i32, i32
  }
  func.func @transform_15(%arg0: i32, %arg1: memref<2xi32, #tpu.memory_space<smem>>) -> (i32, i32) {
    %c0_i32 = arith.constant 0 : i32
    %c0_i32_0 = arith.constant 0 : i32
    %c0_i32_1 = arith.constant 0 : i32
    return %c0_i32, %c0_i32_0 : i32, i32
  }
  func.func @transform_16(%arg0: i32, %arg1: memref<2xi32, #tpu.memory_space<smem>>) -> (i32, i32, i32) {
    %c0_i32 = arith.constant 0 : i32
    %c0_i32_0 = arith.constant 0 : i32
    %c0_i32_1 = arith.constant 0 : i32
    return %arg0, %c0_i32, %c0_i32_0 : i32, i32, i32
  }
}

</mosaic_0001>

<llo_original>
// kernel: nnconv_encoder_forward.1
$region0: #{nnconv_encoder_forward.1}
  #allocation0 [shape = 'u32[]', space=smem, size = 0x4, offset = 0x4, fixed_abs, tag = 'smem constant byte address 0x4 - core index']
  #allocation1 [shape = 'u32[144,128]{1,0:T(1,128)}', space=vmem, size = 0x12000, scoped, tag = 'internal scratch']
  #allocation2 [shape = 's32[1]{0}', space=sflag, size = 0x4, scoped, tag = 'scoped memory for nnconv_encoder_forward.1']
  #allocation3 [shape = 'u8[512]{0}', space=smem, size = 0x200, scoped, tag = 'prefetched SMEM operand 0']
  %s0 = inlined_call_operand.vmem [shape: s32[2], index: 0, kind: input, shape index: {}]
  %s1 = inlined_call_operand.vmem [shape: f32[2,8,128], index: 1, kind: input, shape index: {}]
  %s2 = inlined_call_operand.vmem [shape: f32[2,16,128], index: 2, kind: input, shape index: {}]
  %s3 = inlined_call_operand.vmem [shape: s32[2,16,1], index: 3, kind: input, shape index: {}]
  %s4 = inlined_call_operand.vmem [shape: s32[2,1,16], index: 4, kind: input, shape index: {}]
  %s5 = inlined_call_operand.vmem [shape: f32[128,128], index: 5, kind: input, shape index: {}]
  %s6 = inlined_call_operand.vmem [shape: f32[1,128], index: 6, kind: input, shape index: {}]
  %s7 = inlined_call_operand.vmem [shape: bf16[128,2048], index: 7, kind: input, shape index: {}]
  %s8 = inlined_call_operand.vmem [shape: f32[1,2048], index: 8, kind: input, shape index: {}]
  %s9 = inlined_call_operand.vmem [shape: f32[2,128,128], index: 9, kind: input, shape index: {}]
  %s10 = inlined_call_operand.vmem [shape: f32[2,1,128], index: 10, kind: input, shape index: {}]
  %s11 = inlined_call_operand.vmem [shape: f32[2,1,128], index: 11, kind: input, shape index: {}]
  %s12 = inlined_call_operand.vmem [shape: f32[2,1,128], index: 12, kind: input, shape index: {}]
  %s13 = inlined_call_operand.vmem [shape: f32[128,128], index: 13, kind: input, shape index: {}]
  %s14 = inlined_call_operand.vmem [shape: f32[1,128], index: 14, kind: input, shape index: {}]
  %s15 = inlined_call_operand.vmem [shape: bf16[128,1024], index: 15, kind: input, shape index: {}]
  %s16 = inlined_call_operand.vmem [shape: bf16[1024,128], index: 16, kind: input, shape index: {}]
  %s17 = inlined_call_operand.vmem [shape: f32[2,8,128], index: 17, kind: output, shape index: {}]
  %s18 = sld [smem:[#allocation0]]
  $region97: #{nnconv_encoder_forward.1} parent=0
    _
  %s20 = ssub.s32 1, %s18
  %s21 = scalar_select 0, %s20, %s18
  %s22 = sshll.u32 %s0, 4
  %s23 = int_to_ptr.vmem [resolvable:$true] %s22
  %25 = dma.vmem_to_smem %s23, 16, [#allocation3], [#allocation2]
  %26 = dma.done [#allocation2], 16
  %27 = sfence
  loop: start=0, step=1, limit=4
  $region2: #{nnconv_encoder_forward.1} parent=0 // loop_pre_header
    _
  $region3: #{nnconv_encoder_forward.1} parent=0 // loop_header
    %s29 = sphi 0, %s33
    %p30 = scmp.ge.s32.totalorder %s29, 4
    %s39 = sphi 0, %s41
    %s42 = sphi 0, %s39
    %s43 = sphi 0, %s42
    %s59 = sphi 0, %s43
    %s65 = sphi 0, %s67
    %s68 = sphi 0, %s65
    %s69 = sphi 0, %s68
    %s85 = sphi 0, %s69
    %s91 = sphi 0, %s93
    %s94 = sphi 0, %s91
    %s95 = sphi 0, %s94
    %s111 = sphi 0, %s95
    %s117 = sphi 0, %s119
    %s120 = sphi 0, %s117
    %s121 = sphi 0, %s120
    %s137 = sphi 0, %s121
    %s141 = sphi 0, %s141
    %s143 = sphi 0, %s141
    %s144 = sphi 0, %s143
    %s158 = sphi 0, %s144
    %s162 = sphi 0, %s162
    %s164 = sphi 0, %s162
    %s165 = sphi 0, %s164
    %s179 = sphi 0, %s165
    %s183 = sphi 0, %s183
    %s185 = sphi 0, %s183
    %s186 = sphi 0, %s185
    %s200 = sphi 0, %s186
    %s204 = sphi 0, %s204
    %s206 = sphi 0, %s204
    %s207 = sphi 0, %s206
    %s221 = sphi 0, %s207
    %s225 = sphi 0, %s225
    %s227 = sphi 0, %s225
    %s228 = sphi 0, %s227
    %s242 = sphi 0, %s228
    %s246 = sphi 0, %s246
    %s248 = sphi 0, %s246
    %s249 = sphi 0, %s248
    %s263 = sphi 0, %s249
    %s267 = sphi 0, %s267
    %s269 = sphi 0, %s267
    %s270 = sphi 0, %s269
    %s284 = sphi 0, %s270
    %s288 = sphi 0, %s288
    %s290 = sphi 0, %s288
    %s291 = sphi 0, %s290
    %s305 = sphi 0, %s291
    %s309 = sphi 0, %s309
    %s311 = sphi 0, %s309
    %s312 = sphi 0, %s311
    %s326 = sphi 0, %s312
    %s330 = sphi 0, %s330
    %s332 = sphi 0, %s330
    %s333 = sphi 0, %s332
    %s347 = sphi 0, %s333
    %s351 = sphi 0, %s351
    %s353 = sphi 0, %s351
    %s354 = sphi 0, %s353
    %s368 = sphi 0, %s354
    %s372 = sphi 0, %s372
    %s374 = sphi 0, %s372
    %s375 = sphi 0, %s374
    %s389 = sphi 0, %s375
    %s395 = sphi 0, %s397
    %s398 = sphi 0, %s395
    %s399 = sphi 0, %s398
    %s415 = sphi 0, %s399
  $region4: #{nnconv_encoder_forward.1} parent=0 // loop_header_branch
    %32 = sbr.rel (%p30) target = $region8
  $region5: #{nnconv_encoder_forward.1} parent=0 // loop_body
    %s34 = ssub.s32 %s29, 1
    %s35 = ssub.s32 %s29, 2
    %s36 = sadd.s32 %s29, 1
    %s37 = ssub.s32 %s29, %s36
    %p38 = scmp.eq.s32.totalorder %s37, 0
    %s40 = sadd.s32 %s39, 1
    %s41 = scalar_select %p38, %s39, %s40
    %p44 = pneg %p38
    %p45 = scmp.eq.s32.totalorder %s29, 1
    %p46 = por %p44, %p45
    %p47 = scmp.ne.s32.totalorder %s39, %s42
    %p48 = scmp.eq.s32.totalorder %s29, 0
    %p49 = por %p47, %p48
    %p50 = scmp.ne.s32.totalorder %s39, %s42
    %p51 = scmp.eq.s32.totalorder %s34, 1
    %p52 = por %p50, %p51
    %p53 = scmp.ne.s32.totalorder %s42, %s43
    %p54 = scmp.eq.s32.totalorder %s34, 0
    %p55 = por %p53, %p54
    %p56 = scmp.ne.s32.totalorder %s42, %s43
    %p57 = scmp.eq.s32.totalorder %s35, 1
    %p58 = por %p56, %p57
    %p60 = scmp.ne.s32.totalorder %s43, %s59
    %p61 = scmp.eq.s32.totalorder %s35, 0
    %p62 = por %p60, %p61
    %s63 = ssub.s32 %s29, %s36
    %p64 = scmp.eq.s32.totalorder %s63, 0
    %s66 = sadd.s32 %s65, 1
    %s67 = scalar_select %p64, %s65, %s66
    %p70 = pneg %p64
    %p71 = scmp.eq.s32.totalorder %s29, 1
    %p72 = por %p70, %p71
    %p73 = scmp.ne.s32.totalorder %s65, %s68
    %p74 = scmp.eq.s32.totalorder %s29, 0
    %p75 = por %p73, %p74
    %p76 = scmp.ne.s32.totalorder %s65, %s68
    %p77 = scmp.eq.s32.totalorder %s34, 1
    %p78 = por %p76, %p77
    %p79 = scmp.ne.s32.totalorder %s68, %s69
    %p80 = scmp.eq.s32.totalorder %s34, 0
    %p81 = por %p79, %p80
    %p82 = scmp.ne.s32.totalorder %s68, %s69
    %p83 = scmp.eq.s32.totalorder %s35, 1
    %p84 = por %p82, %p83
    %p86 = scmp.ne.s32.totalorder %s69, %s85
    %p87 = scmp.eq.s32.totalorder %s35, 0
    %p88 = por %p86, %p87
    %s89 = ssub.s32 %s29, %s36
    %p90 = scmp.eq.s32.totalorder %s89, 0
    %s92 = sadd.s32 %s91, 1
    %s93 = scalar_select %p90, %s91, %s92
    %p96 = pneg %p90
    %p97 = scmp.eq.s32.totalorder %s29, 1
    %p98 = por %p96, %p97
    %p99 = scmp.ne.s32.totalorder %s91, %s94
    %p100 = scmp.eq.s32.totalorder %s29, 0
    %p101 = por %p99, %p100
    %p102 = scmp.ne.s32.totalorder %s91, %s94
    %p103 = scmp.eq.s32.totalorder %s34, 1
    %p104 = por %p102, %p103
    %p105 = scmp.ne.s32.totalorder %s94, %s95
    %p106 = scmp.eq.s32.totalorder %s34, 0
    %p107 = por %p105, %p106
    %p108 = scmp.ne.s32.totalorder %s94, %s95
    %p109 = scmp.eq.s32.totalorder %s35, 1
    %p110 = por %p108, %p109
    %p112 = scmp.ne.s32.totalorder %s95, %s111
    %p113 = scmp.eq.s32.totalorder %s35, 0
    %p114 = por %p112, %p113
    %s115 = ssub.s32 %s29, %s36
    %p116 = scmp.eq.s32.totalorder %s115, 0
    %s118 = sadd.s32 %s117, 1
    %s119 = scalar_select %p116, %s117, %s118
    %p122 = pneg %p116
    %p123 = scmp.eq.s32.totalorder %s29, 1
    %p124 = por %p122, %p123
    %p125 = scmp.ne.s32.totalorder %s117, %s120
    %p126 = scmp.eq.s32.totalorder %s29, 0
    %p127 = por %p125, %p126
    %p128 = scmp.ne.s32.totalorder %s117, %s120
    %p129 = scmp.eq.s32.totalorder %s34, 1
    %p130 = por %p128, %p129
    %p131 = scmp.ne.s32.totalorder %s120, %s121
    %p132 = scmp.eq.s32.totalorder %s34, 0
    %p133 = por %p131, %p132
    %p134 = scmp.ne.s32.totalorder %s120, %s121
    %p135 = scmp.eq.s32.totalorder %s35, 1
    %p136 = por %p134, %p135
    %p138 = scmp.ne.s32.totalorder %s121, %s137
    %p139 = scmp.eq.s32.totalorder %s35, 0
    %p140 = por %p138, %p139
    %s142 = sadd.s32 %s141, 1
    %p145 = scmp.eq.s32.totalorder %s29, 1
    %p146 = scmp.ne.s32.totalorder %s141, %s143
    %p147 = scmp.eq.s32.totalorder %s29, 0
    %p148 = por %p146, %p147
    %p149 = scmp.ne.s32.totalorder %s141, %s143
    %p150 = scmp.eq.s32.totalorder %s34, 1
    %p151 = por %p149, %p150
    %p152 = scmp.ne.s32.totalorder %s143, %s144
    %p153 = scmp.eq.s32.totalorder %s34, 0
    %p154 = por %p152, %p153
    %p155 = scmp.ne.s32.totalorder %s143, %s144
    %p156 = scmp.eq.s32.totalorder %s35, 1
    %p157 = por %p155, %p156
    %p159 = scmp.ne.s32.totalorder %s144, %s158
    %p160 = scmp.eq.s32.totalorder %s35, 0
    %p161 = por %p159, %p160
    %s163 = sadd.s32 %s162, 1
    %p166 = scmp.eq.s32.totalorder %s29, 1
    %p167 = scmp.ne.s32.totalorder %s162, %s164
    %p168 = scmp.eq.s32.totalorder %s29, 0
    %p169 = por %p167, %p168
    %p170 = scmp.ne.s32.totalorder %s162, %s164
    %p171 = scmp.eq.s32.totalorder %s34, 1
    %p172 = por %p170, %p171
    %p173 = scmp.ne.s32.totalorder %s164, %s165
    %p174 = scmp.eq.s32.totalorder %s34, 0
    %p175 = por %p173, %p174
    %p176 = scmp.ne.s32.totalorder %s164, %s165
    %p177 = scmp.eq.s32.totalorder %s35, 1
    %p178 = por %p176, %p177
    %p180 = scmp.ne.s32.totalorder %s165, %s179
    %p181 = scmp.eq.s32.totalorder %s35, 0
    %p182 = por %p180, %p181
    %s184 = sadd.s32 %s183, 1
    %p187 = scmp.eq.s32.totalorder %s29, 1
    %p188 = scmp.ne.s32.totalorder %s183, %s185
    %p189 = scmp.eq.s32.totalorder %s29, 0
    %p190 = por %p188, %p189
    %p191 = scmp.ne.s32.totalorder %s183, %s185
    %p192 = scmp.eq.s32.totalorder %s34, 1
    %p193 = por %p191, %p192
    %p194 = scmp.ne.s32.totalorder %s185, %s186
    %p195 = scmp.eq.s32.totalorder %s34, 0
    %p196 = por %p194, %p195
    %p197 = scmp.ne.s32.totalorder %s185, %s186
    %p198 = scmp.eq.s32.totalorder %s35, 1
    %p199 = por %p197, %p198
    %p201 = scmp.ne.s32.totalorder %s186, %s200
    %p202 = scmp.eq.s32.totalorder %s35, 0
    %p203 = por %p201, %p202
    %s205 = sadd.s32 %s204, 1
    %p208 = scmp.eq.s32.totalorder %s29, 1
    %p209 = scmp.ne.s32.totalorder %s204, %s206
    %p210 = scmp.eq.s32.totalorder %s29, 0
    %p211 = por %p209, %p210
    %p212 = scmp.ne.s32.totalorder %s204, %s206
    %p213 = scmp.eq.s32.totalorder %s34, 1
    %p214 = por %p212, %p213
    %p215 = scmp.ne.s32.totalorder %s206, %s207
    %p216 = scmp.eq.s32.totalorder %s34, 0
    %p217 = por %p215, %p216
    %p218 = scmp.ne.s32.totalorder %s206, %s207
    %p219 = scmp.eq.s32.totalorder %s35, 1
    %p220 = por %p218, %p219
    %p222 = scmp.ne.s32.totalorder %s207, %s221
    %p223 = scmp.eq.s32.totalorder %s35, 0
    %p224 = por %p222, %p223
    %s226 = sadd.s32 %s225, 1
    %p229 = scmp.eq.s32.totalorder %s29, 1
    %p230 = scmp.ne.s32.totalorder %s225, %s227
    %p231 = scmp.eq.s32.totalorder %s29, 0
    %p232 = por %p230, %p231
    %p233 = scmp.ne.s32.totalorder %s225, %s227
    %p234 = scmp.eq.s32.totalorder %s34, 1
    %p235 = por %p233, %p234
    %p236 = scmp.ne.s32.totalorder %s227, %s228
    %p237 = scmp.eq.s32.totalorder %s34, 0
    %p238 = por %p236, %p237
    %p239 = scmp.ne.s32.totalorder %s227, %s228
    %p240 = scmp.eq.s32.totalorder %s35, 1
    %p241 = por %p239, %p240
    %p243 = scmp.ne.s32.totalorder %s228, %s242
    %p244 = scmp.eq.s32.totalorder %s35, 0
    %p245 = por %p243, %p244
    %s247 = sadd.s32 %s246, 1
    %p250 = scmp.eq.s32.totalorder %s29, 1
    %p251 = scmp.ne.s32.totalorder %s246, %s248
    %p252 = scmp.eq.s32.totalorder %s29, 0
    %p253 = por %p251, %p252
    %p254 = scmp.ne.s32.totalorder %s246, %s248
    %p255 = scmp.eq.s32.totalorder %s34, 1
    %p256 = por %p254, %p255
    %p257 = scmp.ne.s32.totalorder %s248, %s249
    %p258 = scmp.eq.s32.totalorder %s34, 0
    %p259 = por %p257, %p258
    %p260 = scmp.ne.s32.totalorder %s248, %s249
    %p261 = scmp.eq.s32.totalorder %s35, 1
    %p262 = por %p260, %p261
    %p264 = scmp.ne.s32.totalorder %s249, %s263
    %p265 = scmp.eq.s32.totalorder %s35, 0
    %p266 = por %p264, %p265
    %s268 = sadd.s32 %s267, 1
    %p271 = scmp.eq.s32.totalorder %s29, 1
    %p272 = scmp.ne.s32.totalorder %s267, %s269
    %p273 = scmp.eq.s32.totalorder %s29, 0
    %p274 = por %p272, %p273
    %p275 = scmp.ne.s32.totalorder %s267, %s269
    %p276 = scmp.eq.s32.totalorder %s34, 1
    %p277 = por %p275, %p276
    %p278 = scmp.ne.s32.totalorder %s269, %s270
    %p279 = scmp.eq.s32.totalorder %s34, 0
    %p280 = por %p278, %p279
    %p281 = scmp.ne.s32.totalorder %s269, %s270
    %p282 = scmp.eq.s32.totalorder %s35, 1
    %p283 = por %p281, %p282
    %p285 = scmp.ne.s32.totalorder %s270, %s284
    %p286 = scmp.eq.s32.totalorder %s35, 0
    %p287 = por %p285, %p286
    %s289 = sadd.s32 %s288, 1
    %p292 = scmp.eq.s32.totalorder %s29, 1
    %p293 = scmp.ne.s32.totalorder %s288, %s290
    %p294 = scmp.eq.s32.totalorder %s29, 0
    %p295 = por %p293, %p294
    %p296 = scmp.ne.s32.totalorder %s288, %s290
    %p297 = scmp.eq.s32.totalorder %s34, 1
    %p298 = por %p296, %p297
    %p299 = scmp.ne.s32.totalorder %s290, %s291
    %p300 = scmp.eq.s32.totalorder %s34, 0
    %p301 = por %p299, %p300
    %p302 = scmp.ne.s32.totalorder %s290, %s291
    %p303 = scmp.eq.s32.totalorder %s35, 1
    %p304 = por %p302, %p303
    %p306 = scmp.ne.s32.totalorder %s291, %s305
    %p307 = scmp.eq.s32.totalorder %s35, 0
    %p308 = por %p306, %p307
    %s310 = sadd.s32 %s309, 1
    %p313 = scmp.eq.s32.totalorder %s29, 1
    %p314 = scmp.ne.s32.totalorder %s309, %s311
    %p315 = scmp.eq.s32.totalorder %s29, 0
    %p316 = por %p314, %p315
    %p317 = scmp.ne.s32.totalorder %s309, %s311
    %p318 = scmp.eq.s32.totalorder %s34, 1
    %p319 = por %p317, %p318
    %p320 = scmp.ne.s32.totalorder %s311, %s312
    %p321 = scmp.eq.s32.totalorder %s34, 0
    %p322 = por %p320, %p321
    %p323 = scmp.ne.s32.totalorder %s311, %s312
    %p324 = scmp.eq.s32.totalorder %s35, 1
    %p325 = por %p323, %p324
    %p327 = scmp.ne.s32.totalorder %s312, %s326
    %p328 = scmp.eq.s32.totalorder %s35, 0
    %p329 = por %p327, %p328
    %s331 = sadd.s32 %s330, 1
    %p334 = scmp.eq.s32.totalorder %s29, 1
    %p335 = scmp.ne.s32.totalorder %s330, %s332
    %p336 = scmp.eq.s32.totalorder %s29, 0
    %p337 = por %p335, %p336
    %p338 = scmp.ne.s32.totalorder %s330, %s332
    %p339 = scmp.eq.s32.totalorder %s34, 1
    %p340 = por %p338, %p339
    %p341 = scmp.ne.s32.totalorder %s332, %s333
    %p342 = scmp.eq.s32.totalorder %s34, 0
    %p343 = por %p341, %p342
    %p344 = scmp.ne.s32.totalorder %s332, %s333
    %p345 = scmp.eq.s32.totalorder %s35, 1
    %p346 = por %p344, %p345
    %p348 = scmp.ne.s32.totalorder %s333, %s347
    %p349 = scmp.eq.s32.totalorder %s35, 0
    %p350 = por %p348, %p349
    %s352 = sadd.s32 %s351, 1
    %p355 = scmp.eq.s32.totalorder %s29, 1
    %p356 = scmp.ne.s32.totalorder %s351, %s353
    %p357 = scmp.eq.s32.totalorder %s29, 0
    %p358 = por %p356, %p357
    %p359 = scmp.ne.s32.totalorder %s351, %s353
    %p360 = scmp.eq.s32.totalorder %s34, 1
    %p361 = por %p359, %p360
    %p362 = scmp.ne.s32.totalorder %s353, %s354
    %p363 = scmp.eq.s32.totalorder %s34, 0
    %p364 = por %p362, %p363
    %p365 = scmp.ne.s32.totalorder %s353, %s354
    %p366 = scmp.eq.s32.totalorder %s35, 1
    %p367 = por %p365, %p366
    %p369 = scmp.ne.s32.totalorder %s354, %s368
    %p370 = scmp.eq.s32.totalorder %s35, 0
    %p371 = por %p369, %p370
    %s373 = sadd.s32 %s372, 1
    %p376 = scmp.eq.s32.totalorder %s29, 1
    %p377 = scmp.ne.s32.totalorder %s372, %s374
    %p378 = scmp.eq.s32.totalorder %s29, 0
    %p379 = por %p377, %p378
    %p380 = scmp.ne.s32.totalorder %s372, %s374
    %p381 = scmp.eq.s32.totalorder %s34, 1
    %p382 = por %p380, %p381
    %p383 = scmp.ne.s32.totalorder %s374, %s375
    %p384 = scmp.eq.s32.totalorder %s34, 0
    %p385 = por %p383, %p384
    %p386 = scmp.ne.s32.totalorder %s374, %s375
    %p387 = scmp.eq.s32.totalorder %s35, 1
    %p388 = por %p386, %p387
    %p390 = scmp.ne.s32.totalorder %s375, %s389
    %p391 = scmp.eq.s32.totalorder %s35, 0
    %p392 = por %p390, %p391
    %s393 = ssub.s32 %s29, %s36
    %p394 = scmp.eq.s32.totalorder %s393, 0
    %s396 = sadd.s32 %s395, 1
    %s397 = scalar_select %p394, %s395, %s396
    %p400 = pneg %p394
    %p401 = scmp.eq.s32.totalorder %s29, 1
    %p402 = por %p400, %p401
    %p403 = scmp.ne.s32.totalorder %s395, %s398
    %p404 = scmp.eq.s32.totalorder %s29, 0
    %p405 = por %p403, %p404
    %p406 = scmp.ne.s32.totalorder %s395, %s398
    %p407 = scmp.eq.s32.totalorder %s34, 1
    %p408 = por %p406, %p407
    %p409 = scmp.ne.s32.totalorder %s398, %s399
    %p410 = scmp.eq.s32.totalorder %s34, 0
    %p411 = por %p409, %p410
    %p412 = scmp.ne.s32.totalorder %s398, %s399
    %p413 = scmp.eq.s32.totalorder %s35, 1
    %p414 = por %p412, %p413
    %p416 = scmp.ne.s32.totalorder %s399, %s415
    %p417 = scmp.eq.s32.totalorder %s35, 0
    %p418 = por %p416, %p417
    %p419 = scmp.le.s32.totalorder 1, %s29
    %p420 = scmp.lt.s32.totalorder %s29, 3
    %p421 = pnand %p419, %p420
    %p422 = pneg %p421
    // Predicated region
    $region9: #{nnconv_encoder_forward.1} parent=5 // pred_check
      _
    $region10: #{nnconv_encoder_forward.1} parent=5 // pred_check_branch
      %424 = sbr.rel (%p421) target = $region12
    $region11: #{nnconv_encoder_forward.1} parent=5 // pred_region
      %s425 = ssub.s32 %s29, 1
      // Predicated region
      $region13: #{nnconv_encoder_forward.1} parent=11 // pred_check
        %p426 = pneg %p154
      $region14: #{nnconv_encoder_forward.1} parent=11 // pred_check_branch
        %428 = sbr.rel (%p426) target = $region16
      $region15: #{nnconv_encoder_forward.1} parent=11 // pred_region
        _
      $region16: #{nnconv_encoder_forward.1} parent=11 // pred_fallthru
        _
      // Predicated region
      $region17: #{nnconv_encoder_forward.1} parent=11 // pred_check
        %p429 = pneg %p175
      $region18: #{nnconv_encoder_forward.1} parent=11 // pred_check_branch
        %431 = sbr.rel (%p429) target = $region20
      $region19: #{nnconv_encoder_forward.1} parent=11 // pred_region
        _
      $region20: #{nnconv_encoder_forward.1} parent=11 // pred_fallthru
        _
      // Predicated region
      $region21: #{nnconv_encoder_forward.1} parent=11 // pred_check
        %p432 = pneg %p196
      $region22: #{nnconv_encoder_forward.1} parent=11 // pred_check_branch
        %434 = sbr.rel (%p432) target = $region24
      $region23: #{nnconv_encoder_forward.1} parent=11 // pred_region
        _
      $region24: #{nnconv_encoder_forward.1} parent=11 // pred_fallthru
        _
      // Predicated region
      $region25: #{nnconv_encoder_forward.1} parent=11 // pred_check
        %p435 = pneg %p217
      $region26: #{nnconv_encoder_forward.1} parent=11 // pred_check_branch
        %437 = sbr.rel (%p435) target = $region28
      $region27: #{nnconv_encoder_forward.1} parent=11 // pred_region
        _
      $region28: #{nnconv_encoder_forward.1} parent=11 // pred_fallthru
        _
      // Predicated region
      $region29: #{nnconv_encoder_forward.1} parent=11 // pred_check
        %p438 = pneg %p238
      $region30: #{nnconv_encoder_forward.1} parent=11 // pred_check_branch
        %440 = sbr.rel (%p438) target = $region32
      $region31: #{nnconv_encoder_forward.1} parent=11 // pred_region
        _
      $region32: #{nnconv_encoder_forward.1} parent=11 // pred_fallthru
        _
      // Predicated region
      $region33: #{nnconv_encoder_forward.1} parent=11 // pred_check
        %p441 = pneg %p259
      $region34: #{nnconv_encoder_forward.1} parent=11 // pred_check_branch
        %443 = sbr.rel (%p441) target = $region36
      $region35: #{nnconv_encoder_forward.1} parent=11 // pred_region
        _
      $region36: #{nnconv_encoder_forward.1} parent=11 // pred_fallthru
        _
      // Predicated region
      $region37: #{nnconv_encoder_forward.1} parent=11 // pred_check
        %p444 = pneg %p280
      $region38: #{nnconv_encoder_forward.1} parent=11 // pred_check_branch
        %446 = sbr.rel (%p444) target = $region40
      $region39: #{nnconv_encoder_forward.1} parent=11 // pred_region
        _
      $region40: #{nnconv_encoder_forward.1} parent=11 // pred_fallthru
        _
      // Predicated region
      $region41: #{nnconv_encoder_forward.1} parent=11 // pred_check
        %p447 = pneg %p301
      $region42: #{nnconv_encoder_forward.1} parent=11 // pred_check_branch
        %449 = sbr.rel (%p447) target = $region44
      $region43: #{nnconv_encoder_forward.1} parent=11 // pred_region
        _
      $region44: #{nnconv_encoder_forward.1} parent=11 // pred_fallthru
        _
      // Predicated region
      $region45: #{nnconv_encoder_forward.1} parent=11 // pred_check
        %p450 = pneg %p322
      $region46: #{nnconv_encoder_forward.1} parent=11 // pred_check_branch
        %452 = sbr.rel (%p450) target = $region48
      $region47: #{nnconv_encoder_forward.1} parent=11 // pred_region
        _
      $region48: #{nnconv_encoder_forward.1} parent=11 // pred_fallthru
        _
      // Predicated region
      $region49: #{nnconv_encoder_forward.1} parent=11 // pred_check
        %p453 = pneg %p343
      $region50: #{nnconv_encoder_forward.1} parent=11 // pred_check_branch
        %455 = sbr.rel (%p453) target = $region52
      $region51: #{nnconv_encoder_forward.1} parent=11 // pred_region
        _
      $region52: #{nnconv_encoder_forward.1} parent=11 // pred_fallthru
        _
      // Predicated region
      $region53: #{nnconv_encoder_forward.1} parent=11 // pred_check
        %p456 = pneg %p364
      $region54: #{nnconv_encoder_forward.1} parent=11 // pred_check_branch
        %458 = sbr.rel (%p456) target = $region56
      $region55: #{nnconv_encoder_forward.1} parent=11 // pred_region
        _
      $region56: #{nnconv_encoder_forward.1} parent=11 // pred_fallthru
        _
      // Predicated region
      $region57: #{nnconv_encoder_forward.1} parent=11 // pred_check
        %p459 = pneg %p385
      $region58: #{nnconv_encoder_forward.1} parent=11 // pred_check_branch
        %461 = sbr.rel (%p459) target = $region60
      $region59: #{nnconv_encoder_forward.1} parent=11 // pred_region
        _
      $region60: #{nnconv_encoder_forward.1} parent=11 // pred_fallthru
        _
    $region12: #{nnconv_encoder_forward.1} parent=5 // pred_fallthru
      _
    %p462 = scmp.lt.s32.totalorder %s29, 2
    // Predicated region
    $region61: #{nnconv_encoder_forward.1} parent=5 // pred_check
      %p463 = pneg %p462
    $region62: #{nnconv_encoder_forward.1} parent=5 // pred_check_branch
      %465 = sbr.rel (%p463) target = $region64
    $region63: #{nnconv_encoder_forward.1} parent=5 // pred_region
      // Predicated region
      $region65: #{nnconv_encoder_forward.1} parent=63 // pred_check
        %p466 = pneg %p49
      $region66: #{nnconv_encoder_forward.1} parent=63 // pred_check_branch
        %468 = sbr.rel (%p466) target = $region68
      $region67: #{nnconv_encoder_forward.1} parent=63 // pred_region
        %p469 = scmp.lt.s32.totalorder %s29, 1
        %s470 = scalar_select %p469, %s29, 1
        %s471 = smul.addr %s470, 8
        %s472 = scalar_lea.vmem %s1, %s471
      $region68: #{nnconv_encoder_forward.1} parent=63 // pred_fallthru
        _
      // Predicated region
      $region69: #{nnconv_encoder_forward.1} parent=63 // pred_check
        %p473 = pneg %p75
      $region70: #{nnconv_encoder_forward.1} parent=63 // pred_check_branch
        %475 = sbr.rel (%p473) target = $region72
      $region71: #{nnconv_encoder_forward.1} parent=63 // pred_region
        %p476 = scmp.lt.s32.totalorder %s29, 1
        %s477 = scalar_select %p476, %s29, 1
        %s478 = smul.addr %s477, 2
        %s479 = smul.addr %s478, 8
        %s480 = scalar_lea.vmem %s2, %s479
      $region72: #{nnconv_encoder_forward.1} parent=63 // pred_fallthru
        _
      // Predicated region
      $region73: #{nnconv_encoder_forward.1} parent=63 // pred_check
        %p481 = pneg %p101
      $region74: #{nnconv_encoder_forward.1} parent=63 // pred_check_branch
        %483 = sbr.rel (%p481) target = $region76
      $region75: #{nnconv_encoder_forward.1} parent=63 // pred_region
        %p484 = scmp.lt.s32.totalorder %s29, 1
        %s485 = scalar_select %p484, %s29, 1
        %s486 = smul.addr %s485, 2
        %s487 = smul.addr %s486, 8
        %s488 = scalar_lea.vmem %s3, %s487
      $region76: #{nnconv_encoder_forward.1} parent=63 // pred_fallthru
        _
      // Predicated region
      $region77: #{nnconv_encoder_forward.1} parent=63 // pred_check
        %p489 = pneg %p127
      $region78: #{nnconv_encoder_forward.1} parent=63 // pred_check_branch
        %491 = sbr.rel (%p489) target = $region80
      $region79: #{nnconv_encoder_forward.1} parent=63 // pred_region
        %p492 = scmp.lt.s32.totalorder %s29, 1
        %s493 = scalar_select %p492, %s29, 1
        %s494 = scalar_lea.vmem %s4, %s493
      $region80: #{nnconv_encoder_forward.1} parent=63 // pred_fallthru
        _
    $region64: #{nnconv_encoder_forward.1} parent=5 // pred_fallthru
      _
    %p495 = scmp.le.s32.totalorder 1, %s29
    %p496 = scmp.lt.s32.totalorder %s29, 3
    %p497 = pnand %p495, %p496
    %p498 = pneg %p497
    // Predicated region
    $region81: #{nnconv_encoder_forward.1} parent=5 // pred_check
      _
    $region82: #{nnconv_encoder_forward.1} parent=5 // pred_check_branch
      %500 = sbr.rel (%p497) target = $region84
    $region83: #{nnconv_encoder_forward.1} parent=5 // pred_region
      %s501 = ssub.s32 %s29, 1
      %p502 = scmp.lt.s32.totalorder %s34, 1
      %s503 = scalar_select %p502, %s34, 1
      %s504 = smul.addr %s503, 8
      %s505 = scalar_lea.vmem %s1, %s504
      %p506 = pneg %p55
      %p507 = pneg %p52
      %p508 = scmp.lt.s32.totalorder %s34, 1
      %s509 = scalar_select %p508, %s34, 1
      %s510 = smul.addr %s509, 2
      %s511 = smul.addr %s510, 8
      %s512 = scalar_lea.vmem %s2, %s511
      %p513 = pneg %p81
      %p514 = pneg %p78
      %p515 = scmp.lt.s32.totalorder %s34, 1
      %s516 = scalar_select %p515, %s34, 1
      %s517 = smul.addr %s516, 2
      %s518 = smul.addr %s517, 8
      %s519 = scalar_lea.vmem %s3, %s518
      %p520 = pneg %p107
      %p521 = pneg %p104
      %p522 = scmp.lt.s32.totalorder %s34, 1
      %s523 = scalar_select %p522, %s34, 1
      %s524 = scalar_lea.vmem %s4, %s523
      %p525 = pneg %p133
      %p526 = pneg %p130
      %p527 = pneg %p154
      %p528 = pneg %p151
      %p529 = pneg %p175
      %p530 = pneg %p172
      %p531 = pneg %p196
      %p532 = pneg %p193
      %p533 = pneg %p217
      %p534 = pneg %p214
      %p535 = pneg %p238
      %p536 = pneg %p235
      %p537 = pneg %p259
      %p538 = pneg %p256
      %p539 = pneg %p280
      %p540 = pneg %p277
      %p541 = pneg %p301
      %p542 = pneg %p298
      %p543 = pneg %p322
      %p544 = pneg %p319
      %p545 = pneg %p343
      %p546 = pneg %p340
      %p547 = pneg %p364
      %p548 = pneg %p361
      %p549 = pneg %p385
      %p550 = pneg %p382
      %p551 = pneg %p411
      %p552 = pneg %p408
      %p553 = scmp.lt.s32.totalorder %s34, 1
      %s554 = scalar_select %p553, %s34, 1
      %s555 = smul.addr %s554, 8
      %s556 = scalar_lea.vmem %s17, %s555
      %p557 = scmp.lt.s32.totalorder %s34, 1
      %s558 = scalar_select %p557, %s34, 1
      %s559 = smul.addr %s558, 8
      %s560 = scalar_lea.vmem %s1, %s559
      %p561 = scmp.lt.s32.totalorder %s34, 1
      %s562 = scalar_select %p561, %s34, 1
      %s563 = smul.addr %s562, 2
      %s564 = smul.addr %s563, 8
      %s565 = scalar_lea.vmem %s2, %s564
      %p566 = scmp.lt.s32.totalorder %s34, 1
      %s567 = scalar_select %p566, %s34, 1
      %s568 = smul.addr %s567, 2
      %s569 = smul.addr %s568, 8
      %s570 = scalar_lea.vmem %s3, %s569
      %p571 = scmp.lt.s32.totalorder %s34, 1
      %s572 = scalar_select %p571, %s34, 1
      %s573 = scalar_lea.vmem %s4, %s572
      %p574 = scmp.lt.s32.totalorder %s34, 1
      %s575 = scalar_select %p574, %s34, 1
      %s576 = smul.addr %s575, 8
      %s577 = scalar_lea.vmem %s17, %s576
      %v579 = vlaneseq
      %v580 = vand.u32 %v579, 127
      %v581 = vld [vmem:[%s570] sm:$0xff]
      %v582 = vld [vmem:[%s570 + $0x8] sm:$0xff]
      %583 = vset.pattern.permute.xlu0 0
      %584 = vperm.xlu0 %583, %v581
      %v585 = vpop.permute.xlu0 %584
      %586 = vset.pattern.permute.xlu0 0
      %587 = vperm.xlu0 %586, %v582
      %v588 = vpop.permute.xlu0 %587
      %vm589 = vcmp.eq.s32.totalorder %v580, %v585
      %vm590 = vcmp.eq.s32.totalorder %v580, %v588
      %v591 = vsel %vm589, 1, 0
      %v592 = vsel %vm590, 1, 0
      %v593 = vcvt.s32.f32 %v591
      %v594 = vcvt.s32.f32 %v592
      %v595 = vpack.c.bf16 %v594, %v593
      %v596 = vlaneseq
      %v597 = vshrl.u32 %v596, 7
      %v598 = vld [vmem:[%s573] sm:$0x1]
      %v599 = vlaneseq
      %v600 = vshrl.u32 %v599, 7
      %v601 = vsub.s32 0, %v600
      %v602 = vrot.slane %v598, %v601
      %vm603 = vcmp.eq.s32.totalorder %v597, %v602
      %v604 = vsel %vm603, 1, 0
      %v605 = vcvt.s32.f32 %v604
      %v606 = vpack.c.bf16 %v605, %v605
      %v607 = vld [vmem:[%s15] sm:$0xff]
      %v608 = vld [vmem:[%s15 + $0x8] sm:$0xff]
      %v609 = vld [vmem:[%s15 + $0x10] sm:$0xff]
      %v610 = vld [vmem:[%s15 + $0x18] sm:$0xff]
      %v611 = vld [vmem:[%s15 + $0x20] sm:$0xff]
      %v612 = vld [vmem:[%s15 + $0x28] sm:$0xff]
      %v613 = vld [vmem:[%s15 + $0x30] sm:$0xff]
      %v614 = vld [vmem:[%s15 + $0x38] sm:$0xff]
      %v615 = vld [vmem:[%s15 + $0x40] sm:$0xff]
      %v616 = vld [vmem:[%s15 + $0x48] sm:$0xff]
      %v617 = vld [vmem:[%s15 + $0x50] sm:$0xff]
      %v618 = vld [vmem:[%s15 + $0x58] sm:$0xff]
      %v619 = vld [vmem:[%s15 + $0x60] sm:$0xff]
      %v620 = vld [vmem:[%s15 + $0x68] sm:$0xff]
      %v621 = vld [vmem:[%s15 + $0x70] sm:$0xff]
      %v622 = vld [vmem:[%s15 + $0x78] sm:$0xff]
      %v623 = vld [vmem:[%s15 + $0x80] sm:$0xff]
      %v624 = vld [vmem:[%s15 + $0x88] sm:$0xff]
      %v625 = vld [vmem:[%s15 + $0x90] sm:$0xff]
      %v626 = vld [vmem:[%s15 + $0x98] sm:$0xff]
      %v627 = vld [vmem:[%s15 + $0xa0] sm:$0xff]
      %v628 = vld [vmem:[%s15 + $0xa8] sm:$0xff]
      %v629 = vld [vmem:[%s15 + $0xb0] sm:$0xff]
      %v630 = vld [vmem:[%s15 + $0xb8] sm:$0xff]
      %v631 = vld [vmem:[%s15 + $0xc0] sm:$0xff]
      %v632 = vld [vmem:[%s15 + $0xc8] sm:$0xff]
      %v633 = vld [vmem:[%s15 + $0xd0] sm:$0xff]
      %v634 = vld [vmem:[%s15 + $0xd8] sm:$0xff]
      %v635 = vld [vmem:[%s15 + $0xe0] sm:$0xff]
      %v636 = vld [vmem:[%s15 + $0xe8] sm:$0xff]
      %v637 = vld [vmem:[%s15 + $0xf0] sm:$0xff]
      %v638 = vld [vmem:[%s15 + $0xf8] sm:$0xff]
      %v639 = vld [vmem:[%s15 + $0x100] sm:$0xff]
      %v640 = vld [vmem:[%s15 + $0x108] sm:$0xff]
      %v641 = vld [vmem:[%s15 + $0x110] sm:$0xff]
      %v642 = vld [vmem:[%s15 + $0x118] sm:$0xff]
      %v643 = vld [vmem:[%s15 + $0x120] sm:$0xff]
      %v644 = vld [vmem:[%s15 + $0x128] sm:$0xff]
      %v645 = vld [vmem:[%s15 + $0x130] sm:$0xff]
      %v646 = vld [vmem:[%s15 + $0x138] sm:$0xff]
      %v647 = vld [vmem:[%s15 + $0x140] sm:$0xff]
      %v648 = vld [vmem:[%s15 + $0x148] sm:$0xff]
      %v649 = vld [vmem:[%s15 + $0x150] sm:$0xff]
      %v650 = vld [vmem:[%s15 + $0x158] sm:$0xff]
      %v651 = vld [vmem:[%s15 + $0x160] sm:$0xff]
      %v652 = vld [vmem:[%s15 + $0x168] sm:$0xff]
      %v653 = vld [vmem:[%s15 + $0x170] sm:$0xff]
      %v654 = vld [vmem:[%s15 + $0x178] sm:$0xff]
      %v655 = vld [vmem:[%s15 + $0x180] sm:$0xff]
      %v656 = vld [vmem:[%s15 + $0x188] sm:$0xff]
      %v657 = vld [vmem:[%s15 + $0x190] sm:$0xff]
      %v658 = vld [vmem:[%s15 + $0x198] sm:$0xff]
      %v659 = vld [vmem:[%s15 + $0x1a0] sm:$0xff]
      %v660 = vld [vmem:[%s15 + $0x1a8] sm:$0xff]
      %v661 = vld [vmem:[%s15 + $0x1b0] sm:$0xff]
      %v662 = vld [vmem:[%s15 + $0x1b8] sm:$0xff]
      %v663 = vld [vmem:[%s15 + $0x1c0] sm:$0xff]
      %v664 = vld [vmem:[%s15 + $0x1c8] sm:$0xff]
      %v665 = vld [vmem:[%s15 + $0x1d0] sm:$0xff]
      %v666 = vld [vmem:[%s15 + $0x1d8] sm:$0xff]
      %v667 = vld [vmem:[%s15 + $0x1e0] sm:$0xff]
      %v668 = vld [vmem:[%s15 + $0x1e8] sm:$0xff]
      %v669 = vld [vmem:[%s15 + $0x1f0] sm:$0xff]
      %v670 = vld [vmem:[%s15 + $0x1f8] sm:$0xff]
      %v671 = vld [vmem:[%s16] sm:$0xf]
      %v672 = vld [vmem:[%s16 + $0x4] sm:$0xf]
      %v673 = vld [vmem:[%s16 + $0x8] sm:$0xf]
      %v674 = vld [vmem:[%s16 + $0xc] sm:$0xf]
      %v675 = vld [vmem:[%s16 + $0x10] sm:$0xf]
      %v676 = vld [vmem:[%s16 + $0x14] sm:$0xf]
      %v677 = vld [vmem:[%s16 + $0x18] sm:$0xf]
      %v678 = vld [vmem:[%s16 + $0x1c] sm:$0xf]
      %v679 = vld [vmem:[%s16 + $0x20] sm:$0xf]
      %v680 = vld [vmem:[%s16 + $0x24] sm:$0xf]
      %v681 = vld [vmem:[%s16 + $0x28] sm:$0xf]
      %v682 = vld [vmem:[%s16 + $0x2c] sm:$0xf]
      %v683 = vld [vmem:[%s16 + $0x30] sm:$0xf]
      %v684 = vld [vmem:[%s16 + $0x34] sm:$0xf]
      %v685 = vld [vmem:[%s16 + $0x38] sm:$0xf]
      %v686 = vld [vmem:[%s16 + $0x3c] sm:$0xf]
      %v687 = vld [vmem:[%s16 + $0x40] sm:$0xf]
      %v688 = vld [vmem:[%s16 + $0x44] sm:$0xf]
      %v689 = vld [vmem:[%s16 + $0x48] sm:$0xf]
      %v690 = vld [vmem:[%s16 + $0x4c] sm:$0xf]
      %v691 = vld [vmem:[%s16 + $0x50] sm:$0xf]
      %v692 = vld [vmem:[%s16 + $0x54] sm:$0xf]
      %v693 = vld [vmem:[%s16 + $0x58] sm:$0xf]
      %v694 = vld [vmem:[%s16 + $0x5c] sm:$0xf]
      %v695 = vld [vmem:[%s16 + $0x60] sm:$0xf]
      %v696 = vld [vmem:[%s16 + $0x64] sm:$0xf]
      %v697 = vld [vmem:[%s16 + $0x68] sm:$0xf]
      %v698 = vld [vmem:[%s16 + $0x6c] sm:$0xf]
      %v699 = vld [vmem:[%s16 + $0x70] sm:$0xf]
      %v700 = vld [vmem:[%s16 + $0x74] sm:$0xf]
      %v701 = vld [vmem:[%s16 + $0x78] sm:$0xf]
      %v702 = vld [vmem:[%s16 + $0x7c] sm:$0xf]
      %v703 = vld [vmem:[%s16 + $0x80] sm:$0xf]
      %v704 = vld [vmem:[%s16 + $0x84] sm:$0xf]
      %v705 = vld [vmem:[%s16 + $0x88] sm:$0xf]
      %v706 = vld [vmem:[%s16 + $0x8c] sm:$0xf]
      %v707 = vld [vmem:[%s16 + $0x90] sm:$0xf]
      %v708 = vld [vmem:[%s16 + $0x94] sm:$0xf]
      %v709 = vld [vmem:[%s16 + $0x98] sm:$0xf]
      %v710 = vld [vmem:[%s16 + $0x9c] sm:$0xf]
      %v711 = vld [vmem:[%s16 + $0xa0] sm:$0xf]
      %v712 = vld [vmem:[%s16 + $0xa4] sm:$0xf]
      %v713 = vld [vmem:[%s16 + $0xa8] sm:$0xf]
      %v714 = vld [vmem:[%s16 + $0xac] sm:$0xf]
      %v715 = vld [vmem:[%s16 + $0xb0] sm:$0xf]
      %v716 = vld [vmem:[%s16 + $0xb4] sm:$0xf]
      %v717 = vld [vmem:[%s16 + $0xb8] sm:$0xf]
      %v718 = vld [vmem:[%s16 + $0xbc] sm:$0xf]
      %v719 = vld [vmem:[%s16 + $0xc0] sm:$0xf]
      %v720 = vld [vmem:[%s16 + $0xc4] sm:$0xf]
      %v721 = vld [vmem:[%s16 + $0xc8] sm:$0xf]
      %v722 = vld [vmem:[%s16 + $0xcc] sm:$0xf]
      %v723 = vld [vmem:[%s16 + $0xd0] sm:$0xf]
      %v724 = vld [vmem:[%s16 + $0xd4] sm:$0xf]
      %v725 = vld [vmem:[%s16 + $0xd8] sm:$0xf]
      %v726 = vld [vmem:[%s16 + $0xdc] sm:$0xf]
      %v727 = vld [vmem:[%s16 + $0xe0] sm:$0xf]
      %v728 = vld [vmem:[%s16 + $0xe4] sm:$0xf]
      %v729 = vld [vmem:[%s16 + $0xe8] sm:$0xf]
      %v730 = vld [vmem:[%s16 + $0xec] sm:$0xf]
      %v731 = vld [vmem:[%s16 + $0xf0] sm:$0xf]
      %v732 = vld [vmem:[%s16 + $0xf4] sm:$0xf]
      %v733 = vld [vmem:[%s16 + $0xf8] sm:$0xf]
      %v734 = vld [vmem:[%s16 + $0xfc] sm:$0xf]
      %v735 = vld [vmem:[%s16 + $0x100] sm:$0xf]
      %v736 = vld [vmem:[%s16 + $0x104] sm:$0xf]
      %v737 = vld [vmem:[%s16 + $0x108] sm:$0xf]
      %v738 = vld [vmem:[%s16 + $0x10c] sm:$0xf]
      %v739 = vld [vmem:[%s16 + $0x110] sm:$0xf]
      %v740 = vld [vmem:[%s16 + $0x114] sm:$0xf]
      %v741 = vld [vmem:[%s16 + $0x118] sm:$0xf]
      %v742 = vld [vmem:[%s16 + $0x11c] sm:$0xf]
      %v743 = vld [vmem:[%s16 + $0x120] sm:$0xf]
      %v744 = vld [vmem:[%s16 + $0x124] sm:$0xf]
      %v745 = vld [vmem:[%s16 + $0x128] sm:$0xf]
      %v746 = vld [vmem:[%s16 + $0x12c] sm:$0xf]
      %v747 = vld [vmem:[%s16 + $0x130] sm:$0xf]
      %v748 = vld [vmem:[%s16 + $0x134] sm:$0xf]
      %v749 = vld [vmem:[%s16 + $0x138] sm:$0xf]
      %v750 = vld [vmem:[%s16 + $0x13c] sm:$0xf]
      %v751 = vld [vmem:[%s16 + $0x140] sm:$0xf]
      %v752 = vld [vmem:[%s16 + $0x144] sm:$0xf]
      %v753 = vld [vmem:[%s16 + $0x148] sm:$0xf]
      %v754 = vld [vmem:[%s16 + $0x14c] sm:$0xf]
      %v755 = vld [vmem:[%s16 + $0x150] sm:$0xf]
      %v756 = vld [vmem:[%s16 + $0x154] sm:$0xf]
      %v757 = vld [vmem:[%s16 + $0x158] sm:$0xf]
      %v758 = vld [vmem:[%s16 + $0x15c] sm:$0xf]
      %v759 = vld [vmem:[%s16 + $0x160] sm:$0xf]
      %v760 = vld [vmem:[%s16 + $0x164] sm:$0xf]
      %v761 = vld [vmem:[%s16 + $0x168] sm:$0xf]
      %v762 = vld [vmem:[%s16 + $0x16c] sm:$0xf]
      %v763 = vld [vmem:[%s16 + $0x170] sm:$0xf]
      %v764 = vld [vmem:[%s16 + $0x174] sm:$0xf]
      %v765 = vld [vmem:[%s16 + $0x178] sm:$0xf]
      %v766 = vld [vmem:[%s16 + $0x17c] sm:$0xf]
      %v767 = vld [vmem:[%s16 + $0x180] sm:$0xf]
      %v768 = vld [vmem:[%s16 + $0x184] sm:$0xf]
      %v769 = vld [vmem:[%s16 + $0x188] sm:$0xf]
      %v770 = vld [vmem:[%s16 + $0x18c] sm:$0xf]
      %v771 = vld [vmem:[%s16 + $0x190] sm:$0xf]
      %v772 = vld [vmem:[%s16 + $0x194] sm:$0xf]
      %v773 = vld [vmem:[%s16 + $0x198] sm:$0xf]
      %v774 = vld [vmem:[%s16 + $0x19c] sm:$0xf]
      %v775 = vld [vmem:[%s16 + $0x1a0] sm:$0xf]
      %v776 = vld [vmem:[%s16 + $0x1a4] sm:$0xf]
      %v777 = vld [vmem:[%s16 + $0x1a8] sm:$0xf]
      %v778 = vld [vmem:[%s16 + $0x1ac] sm:$0xf]
      %v779 = vld [vmem:[%s16 + $0x1b0] sm:$0xf]
      %v780 = vld [vmem:[%s16 + $0x1b4] sm:$0xf]
      %v781 = vld [vmem:[%s16 + $0x1b8] sm:$0xf]
      %v782 = vld [vmem:[%s16 + $0x1bc] sm:$0xf]
      %v783 = vld [vmem:[%s16 + $0x1c0] sm:$0xf]
      %v784 = vld [vmem:[%s16 + $0x1c4] sm:$0xf]
      %v785 = vld [vmem:[%s16 + $0x1c8] sm:$0xf]
      %v786 = vld [vmem:[%s16 + $0x1cc] sm:$0xf]
      %v787 = vld [vmem:[%s16 + $0x1d0] sm:$0xf]
      %v788 = vld [vmem:[%s16 + $0x1d4] sm:$0xf]
      %v789 = vld [vmem:[%s16 + $0x1d8] sm:$0xf]
      %v790 = vld [vmem:[%s16 + $0x1dc] sm:$0xf]
      %v791 = vld [vmem:[%s16 + $0x1e0] sm:$0xf]
      %v792 = vld [vmem:[%s16 + $0x1e4] sm:$0xf]
      %v793 = vld [vmem:[%s16 + $0x1e8] sm:$0xf]
      %v794 = vld [vmem:[%s16 + $0x1ec] sm:$0xf]
      %v795 = vld [vmem:[%s16 + $0x1f0] sm:$0xf]
      %v796 = vld [vmem:[%s16 + $0x1f4] sm:$0xf]
      %v797 = vld [vmem:[%s16 + $0x1f8] sm:$0xf]
      %v798 = vld [vmem:[%s16 + $0x1fc] sm:$0xf]
      %v799 = vld [vmem:[%s560] sm:$0xff]
      %v800 = vld [vmem:[%s5] sm:$0xff]
      %v801 = vld [vmem:[%s5 + $0x8] sm:$0xff]
      %v802 = vld [vmem:[%s5 + $0x10] sm:$0xff]
      %v803 = vld [vmem:[%s5 + $0x18] sm:$0xff]
      %v804 = vld [vmem:[%s5 + $0x20] sm:$0xff]
      %v805 = vld [vmem:[%s5 + $0x28] sm:$0xff]
      %v806 = vld [vmem:[%s5 + $0x30] sm:$0xff]
      %v807 = vld [vmem:[%s5 + $0x38] sm:$0xff]
      %v808 = vld [vmem:[%s5 + $0x40] sm:$0xff]
      %v809 = vld [vmem:[%s5 + $0x48] sm:$0xff]
      %v810 = vld [vmem:[%s5 + $0x50] sm:$0xff]
      %v811 = vld [vmem:[%s5 + $0x58] sm:$0xff]
      %v812 = vld [vmem:[%s5 + $0x60] sm:$0xff]
      %v813 = vld [vmem:[%s5 + $0x68] sm:$0xff]
      %v814 = vld [vmem:[%s5 + $0x70] sm:$0xff]
      %v815 = vld [vmem:[%s5 + $0x78] sm:$0xff]
      %v816 = vld [vmem:[%s6] sm:$0x1]
      %v818 = vlaneseq
      %v819 = vshrl.u32 %v818, 7
      %v820 = vsub.s32 0, %v819
      %v821 = vrot.slane %v816, %v820
      %823 = vmatprep.subr.mxu0 0.0
      %824 = vmatpush1.msra.mxu0 %v800
      %825 = vmatprep.subr.mxu0 0.0
      %826 = vmatpush1.msra.mxu0 %v801
      %827 = vmatprep.subr.mxu0 0.0
      %828 = vmatpush1.msra.mxu0 %v802
      %829 = vmatprep.subr.mxu0 0.0
      %830 = vmatpush1.msra.mxu0 %v803
      %831 = vmatprep.subr.mxu0 0.0
      %832 = vmatpush1.msra.mxu0 %v804
      %833 = vmatprep.subr.mxu0 0.0
      %834 = vmatpush1.msra.mxu0 %v805
      %835 = vmatprep.subr.mxu0 0.0
      %836 = vmatpush1.msra.mxu0 %v806
      %837 = vmatprep.subr.mxu0 0.0
      %838 = vmatpush1.msra.mxu0 %v807
      %839 = vmatprep.subr.mxu0 0.0
      %840 = vmatpush1.msra.mxu0 %v808
      %841 = vmatprep.subr.mxu0 0.0
      %842 = vmatpush1.msra.mxu0 %v809
      %843 = vmatprep.subr.mxu0 0.0
      %844 = vmatpush1.msra.mxu0 %v810
      %845 = vmatprep.subr.mxu0 0.0
      %846 = vmatpush1.msra.mxu0 %v811
      %847 = vmatprep.subr.mxu0 0.0
      %848 = vmatpush1.msra.mxu0 %v812
      %849 = vmatprep.subr.mxu0 0.0
      %850 = vmatpush1.msra.mxu0 %v813
      %851 = vmatprep.subr.mxu0 0.0
      %852 = vmatpush1.msra.mxu0 %v814
      %853 = vmatprep.subr.mxu0 0.0
      %854 = vmatpush1.msra.mxu0 %v815
      %855 = vmatprep.subr.mxu0 0.0
      %856 = vmatpush1.msra.mxu0 0.0
      %857 = vmatprep.subr.mxu0 0.0
      %858 = vmatpush1.msra.mxu0 0.0
      %859 = vmatprep.subr.mxu0 0.0
      %860 = vmatpush1.msra.mxu0 0.0
      %861 = vmatprep.subr.mxu0 0.0
      %862 = vmatpush1.msra.mxu0 0.0
      %863 = vmatprep.subr.mxu0 0.0
      %864 = vmatpush1.msra.mxu0 0.0
      %865 = vmatprep.subr.mxu0 0.0
      %866 = vmatpush1.msra.mxu0 0.0
      %867 = vmatprep.subr.mxu0 0.0
      %868 = vmatpush1.msra.mxu0 0.0
      %869 = vmatprep.subr.mxu0 0.0
      %870 = vmatpush1.msra.mxu0 0.0
      %871 = vmatprep.subr.mxu0 0.0
      %872 = vmatpush1.msra.mxu0 0.0
      %873 = vmatprep.subr.mxu0 0.0
      %874 = vmatpush1.msra.mxu0 0.0
      %875 = vmatprep.subr.mxu0 0.0
      %876 = vmatpush1.msra.mxu0 0.0
      %877 = vmatprep.subr.mxu0 0.0
      %878 = vmatpush1.msra.mxu0 0.0
      %879 = vmatprep.subr.mxu0 0.0
      %880 = vmatpush1.msra.mxu0 0.0
      %881 = vmatprep.subr.mxu0 0.0
      %882 = vmatpush1.msra.mxu0 0.0
      %883 = vmatprep.subr.mxu0 0.0
      %884 = vmatpush1.msra.mxu0 0.0
      %885 = vmatprep.subr.mxu0 0.0
      %886 = vmatpush1.msra.mxu0 0.0
      %887 = vmatprep.mubr.f32.mxu0 0.0
      %888 = vmatmul.mubr.f32.gmra.mrb[0].mxu0 %v799
      %v889 = vpop.f32.mrb[0].mxu0
      %v890 = vadd.f32 %v821, %v889
      %v891 = vpop.f32.mrb[0].mxu0
      %892 = vdwg.mxu0
      %v893 = vld [vmem:[%s565] sm:$0xff]
      %v894 = vld [vmem:[%s565 + $0x8] sm:$0xff]
      %v895 = vpack.c.bf16 %v894, %v893
      %v896 = vld [vmem:[%s7] sm:$0xff]
      %v897 = vld [vmem:[%s7 + $0x8] sm:$0xff]
      %v898 = vld [vmem:[%s7 + $0x10] sm:$0xff]
      %v899 = vld [vmem:[%s7 + $0x18] sm:$0xff]
      %v900 = vld [vmem:[%s7 + $0x20] sm:$0xff]
      %v901 = vld [vmem:[%s7 + $0x28] sm:$0xff]
      %v902 = vld [vmem:[%s7 + $0x30] sm:$0xff]
      %v903 = vld [vmem:[%s7 + $0x38] sm:$0xff]
      %v904 = vld [vmem:[%s7 + $0x40] sm:$0xff]
      %v905 = vld [vmem:[%s7 + $0x48] sm:$0xff]
      %v906 = vld [vmem:[%s7 + $0x50] sm:$0xff]
      %v907 = vld [vmem:[%s7 + $0x58] sm:$0xff]
      %v908 = vld [vmem:[%s7 + $0x60] sm:$0xff]
      %v909 = vld [vmem:[%s7 + $0x68] sm:$0xff]
      %v910 = vld [vmem:[%s7 + $0x70] sm:$0xff]
      %v911 = vld [vmem:[%s7 + $0x78] sm:$0xff]
      %v912 = vld [vmem:[%s7 + $0x80] sm:$0xff]
      %v913 = vld [vmem:[%s7 + $0x88] sm:$0xff]
      %v914 = vld [vmem:[%s7 + $0x90] sm:$0xff]
      %v915 = vld [vmem:[%s7 + $0x98] sm:$0xff]
      %v916 = vld [vmem:[%s7 + $0xa0] sm:$0xff]
      %v917 = vld [vmem:[%s7 + $0xa8] sm:$0xff]
      %v918 = vld [vmem:[%s7 + $0xb0] sm:$0xff]
      %v919 = vld [vmem:[%s7 + $0xb8] sm:$0xff]
      %v920 = vld [vmem:[%s7 + $0xc0] sm:$0xff]
      %v921 = vld [vmem:[%s7 + $0xc8] sm:$0xff]
      %v922 = vld [vmem:[%s7 + $0xd0] sm:$0xff]
      %v923 = vld [vmem:[%s7 + $0xd8] sm:$0xff]
      %v924 = vld [vmem:[%s7 + $0xe0] sm:$0xff]
      %v925 = vld [vmem:[%s7 + $0xe8] sm:$0xff]
      %v926 = vld [vmem:[%s7 + $0xf0] sm:$0xff]
      %v927 = vld [vmem:[%s7 + $0xf8] sm:$0xff]
      %v928 = vld [vmem:[%s7 + $0x100] sm:$0xff]
      %v929 = vld [vmem:[%s7 + $0x108] sm:$0xff]
      %v930 = vld [vmem:[%s7 + $0x110] sm:$0xff]
      %v931 = vld [vmem:[%s7 + $0x118] sm:$0xff]
      %v932 = vld [vmem:[%s7 + $0x120] sm:$0xff]
      %v933 = vld [vmem:[%s7 + $0x128] sm:$0xff]
      %v934 = vld [vmem:[%s7 + $0x130] sm:$0xff]
      %v935 = vld [vmem:[%s7 + $0x138] sm:$0xff]
      %v936 = vld [vmem:[%s7 + $0x140] sm:$0xff]
      %v937 = vld [vmem:[%s7 + $0x148] sm:$0xff]
      %v938 = vld [vmem:[%s7 + $0x150] sm:$0xff]
      %v939 = vld [vmem:[%s7 + $0x158] sm:$0xff]
      %v940 = vld [vmem:[%s7 + $0x160] sm:$0xff]
      %v941 = vld [vmem:[%s7 + $0x168] sm:$0xff]
      %v942 = vld [vmem:[%s7 + $0x170] sm:$0xff]
      %v943 = vld [vmem:[%s7 + $0x178] sm:$0xff]
      %v944 = vld [vmem:[%s7 + $0x180] sm:$0xff]
      %v945 = vld [vmem:[%s7 + $0x188] sm:$0xff]
      %v946 = vld [vmem:[%s7 + $0x190] sm:$0xff]
      %v947 = vld [vmem:[%s7 + $0x198] sm:$0xff]
      %v948 = vld [vmem:[%s7 + $0x1a0] sm:$0xff]
      %v949 = vld [vmem:[%s7 + $0x1a8] sm:$0xff]
      %v950 = vld [vmem:[%s7 + $0x1b0] sm:$0xff]
      %v951 = vld [vmem:[%s7 + $0x1b8] sm:$0xff]
      %v952 = vld [vmem:[%s7 + $0x1c0] sm:$0xff]
      %v953 = vld [vmem:[%s7 + $0x1c8] sm:$0xff]
      %v954 = vld [vmem:[%s7 + $0x1d0] sm:$0xff]
      %v955 = vld [vmem:[%s7 + $0x1d8] sm:$0xff]
      %v956 = vld [vmem:[%s7 + $0x1e0] sm:$0xff]
      %v957 = vld [vmem:[%s7 + $0x1e8] sm:$0xff]
      %v958 = vld [vmem:[%s7 + $0x1f0] sm:$0xff]
      %v959 = vld [vmem:[%s7 + $0x1f8] sm:$0xff]
      %v960 = vld [vmem:[%s7 + $0x200] sm:$0xff]
      %v961 = vld [vmem:[%s7 + $0x208] sm:$0xff]
      %v962 = vld [vmem:[%s7 + $0x210] sm:$0xff]
      %v963 = vld [vmem:[%s7 + $0x218] sm:$0xff]
      %v964 = vld [vmem:[%s7 + $0x220] sm:$0xff]
      %v965 = vld [vmem:[%s7 + $0x228] sm:$0xff]
      %v966 = vld [vmem:[%s7 + $0x230] sm:$0xff]
      %v967 = vld [vmem:[%s7 + $0x238] sm:$0xff]
      %v968 = vld [vmem:[%s7 + $0x240] sm:$0xff]
      %v969 = vld [vmem:[%s7 + $0x248] sm:$0xff]
      %v970 = vld [vmem:[%s7 + $0x250] sm:$0xff]
      %v971 = vld [vmem:[%s7 + $0x258] sm:$0xff]
      %v972 = vld [vmem:[%s7 + $0x260] sm:$0xff]
      %v973 = vld [vmem:[%s7 + $0x268] sm:$0xff]
      %v974 = vld [vmem:[%s7 + $0x270] sm:$0xff]
      %v975 = vld [vmem:[%s7 + $0x278] sm:$0xff]
      %v976 = vld [vmem:[%s7 + $0x280] sm:$0xff]
      %v977 = vld [vmem:[%s7 + $0x288] sm:$0xff]
      %v978 = vld [vmem:[%s7 + $0x290] sm:$0xff]
      %v979 = vld [vmem:[%s7 + $0x298] sm:$0xff]
      %v980 = vld [vmem:[%s7 + $0x2a0] sm:$0xff]
      %v981 = vld [vmem:[%s7 + $0x2a8] sm:$0xff]
      %v982 = vld [vmem:[%s7 + $0x2b0] sm:$0xff]
      %v983 = vld [vmem:[%s7 + $0x2b8] sm:$0xff]
      %v984 = vld [vmem:[%s7 + $0x2c0] sm:$0xff]
      %v985 = vld [vmem:[%s7 + $0x2c8] sm:$0xff]
      %v986 = vld [vmem:[%s7 + $0x2d0] sm:$0xff]
      %v987 = vld [vmem:[%s7 + $0x2d8] sm:$0xff]
      %v988 = vld [vmem:[%s7 + $0x2e0] sm:$0xff]
      %v989 = vld [vmem:[%s7 + $0x2e8] sm:$0xff]
      %v990 = vld [vmem:[%s7 + $0x2f0] sm:$0xff]
      %v991 = vld [vmem:[%s7 + $0x2f8] sm:$0xff]
      %v992 = vld [vmem:[%s7 + $0x300] sm:$0xff]
      %v993 = vld [vmem:[%s7 + $0x308] sm:$0xff]
      %v994 = vld [vmem:[%s7 + $0x310] sm:$0xff]
      %v995 = vld [vmem:[%s7 + $0x318] sm:$0xff]
      %v996 = vld [vmem:[%s7 + $0x320] sm:$0xff]
      %v997 = vld [vmem:[%s7 + $0x328] sm:$0xff]
      %v998 = vld [vmem:[%s7 + $0x330] sm:$0xff]
      %v999 = vld [vmem:[%s7 + $0x338] sm:$0xff]
      %v1000 = vld [vmem:[%s7 + $0x340] sm:$0xff]
      %v1001 = vld [vmem:[%s7 + $0x348] sm:$0xff]
      %v1002 = vld [vmem:[%s7 + $0x350] sm:$0xff]
      %v1003 = vld [vmem:[%s7 + $0x358] sm:$0xff]
      %v1004 = vld [vmem:[%s7 + $0x360] sm:$0xff]
      %v1005 = vld [vmem:[%s7 + $0x368] sm:$0xff]
      %v1006 = vld [vmem:[%s7 + $0x370] sm:$0xff]
      %v1007 = vld [vmem:[%s7 + $0x378] sm:$0xff]
      %v1008 = vld [vmem:[%s7 + $0x380] sm:$0xff]
      %v1009 = vld [vmem:[%s7 + $0x388] sm:$0xff]
      %v1010 = vld [vmem:[%s7 + $0x390] sm:$0xff]
      %v1011 = vld [vmem:[%s7 + $0x398] sm:$0xff]
      %v1012 = vld [vmem:[%s7 + $0x3a0] sm:$0xff]
      %v1013 = vld [vmem:[%s7 + $0x3a8] sm:$0xff]
      %v1014 = vld [vmem:[%s7 + $0x3b0] sm:$0xff]
      %v1015 = vld [vmem:[%s7 + $0x3b8] sm:$0xff]
      %v1016 = vld [vmem:[%s7 + $0x3c0] sm:$0xff]
      %v1017 = vld [vmem:[%s7 + $0x3c8] sm:$0xff]
      %v1018 = vld [vmem:[%s7 + $0x3d0] sm:$0xff]
      %v1019 = vld [vmem:[%s7 + $0x3d8] sm:$0xff]
      %v1020 = vld [vmem:[%s7 + $0x3e0] sm:$0xff]
      %v1021 = vld [vmem:[%s7 + $0x3e8] sm:$0xff]
      %v1022 = vld [vmem:[%s7 + $0x3f0] sm:$0xff]
      %v1023 = vld [vmem:[%s7 + $0x3f8] sm:$0xff]
      %v1024 = vld [vmem:[%s8] sm:$0xff]
      %v1025 = vld [vmem:[%s8 + $0x8] sm:$0xff]
      %v1028 = vlaneseq
      %v1029 = vshrl.u32 %v1028, 7
      %v1030 = vsub.s32 0, %v1029
      %v1031 = vrot.slane %v1024, %v1030
      %v1032 = vlaneseq
      %v1033 = vshrl.u32 %v1032, 7
      %v1034 = vsub.s32 1, %v1033
      %v1035 = vrot.slane %v1024, %v1034
      %v1036 = vlaneseq
      %v1037 = vshrl.u32 %v1036, 7
      %v1038 = vsub.s32 2, %v1037
      %v1039 = vrot.slane %v1024, %v1038
      %v1040 = vlaneseq
      %v1041 = vshrl.u32 %v1040, 7
      %v1042 = vsub.s32 3, %v1041
      %v1043 = vrot.slane %v1024, %v1042
      %v1044 = vlaneseq
      %v1045 = vshrl.u32 %v1044, 7
      %v1046 = vsub.s32 4, %v1045
      %v1047 = vrot.slane %v1024, %v1046
      %v1048 = vlaneseq
      %v1049 = vshrl.u32 %v1048, 7
      %v1050 = vsub.s32 5, %v1049
      %v1051 = vrot.slane %v1024, %v1050
      %v1052 = vlaneseq
      %v1053 = vshrl.u32 %v1052, 7
      %v1054 = vsub.s32 6, %v1053
      %v1055 = vrot.slane %v1024, %v1054
      %v1056 = vlaneseq
      %v1057 = vshrl.u32 %v1056, 7
      %v1058 = vsub.s32 7, %v1057
      %v1059 = vrot.slane %v1024, %v1058
      %v1060 = vlaneseq
      %v1061 = vshrl.u32 %v1060, 7
      %v1062 = vsub.s32 0, %v1061
      %v1063 = vrot.slane %v1025, %v1062
      %v1064 = vlaneseq
      %v1065 = vshrl.u32 %v1064, 7
      %v1066 = vsub.s32 1, %v1065
      %v1067 = vrot.slane %v1025, %v1066
      %v1068 = vlaneseq
      %v1069 = vshrl.u32 %v1068, 7
      %v1070 = vsub.s32 2, %v1069
      %v1071 = vrot.slane %v1025, %v1070
      %v1072 = vlaneseq
      %v1073 = vshrl.u32 %v1072, 7
      %v1074 = vsub.s32 3, %v1073
      %v1075 = vrot.slane %v1025, %v1074
      %v1076 = vlaneseq
      %v1077 = vshrl.u32 %v1076, 7
      %v1078 = vsub.s32 4, %v1077
      %v1079 = vrot.slane %v1025, %v1078
      %v1080 = vlaneseq
      %v1081 = vshrl.u32 %v1080, 7
      %v1082 = vsub.s32 5, %v1081
      %v1083 = vrot.slane %v1025, %v1082
      %v1084 = vlaneseq
      %v1085 = vshrl.u32 %v1084, 7
      %v1086 = vsub.s32 6, %v1085
      %v1087 = vrot.slane %v1025, %v1086
      %v1088 = vlaneseq
      %v1089 = vshrl.u32 %v1088, 7
      %v1090 = vsub.s32 7, %v1089
      %v1091 = vrot.slane %v1025, %v1090
      %v1236 = vunpack.c.l.b16 %v896
      %v1237 = vunpack.c.h.b16 %v896
      %v1238 = vunpack.c.l.b16 %v897
      %v1239 = vunpack.c.h.b16 %v897
      %v1240 = vunpack.c.l.b16 %v898
      %v1241 = vunpack.c.h.b16 %v898
      %v1242 = vunpack.c.l.b16 %v899
      %v1243 = vunpack.c.h.b16 %v899
      %v1244 = vunpack.c.l.b16 %v900
      %v1245 = vunpack.c.h.b16 %v900
      %v1246 = vunpack.c.l.b16 %v901
      %v1247 = vunpack.c.h.b16 %v901
      %v1248 = vunpack.c.l.b16 %v902
      %v1249 = vunpack.c.h.b16 %v902
      %v1250 = vunpack.c.l.b16 %v903
      %v1251 = vunpack.c.h.b16 %v903
      %v1252 = vunpack.c.l.b16 %v904
      %v1253 = vunpack.c.h.b16 %v904
      %v1254 = vunpack.c.l.b16 %v905
      %v1255 = vunpack.c.h.b16 %v905
      %v1256 = vunpack.c.l.b16 %v906
      %v1257 = vunpack.c.h.b16 %v906
      %v1258 = vunpack.c.l.b16 %v907
      %v1259 = vunpack.c.h.b16 %v907
      %v1260 = vunpack.c.l.b16 %v908
      %v1261 = vunpack.c.h.b16 %v908
      %v1262 = vunpack.c.l.b16 %v909
      %v1263 = vunpack.c.h.b16 %v909
      %v1264 = vunpack.c.l.b16 %v910
      %v1265 = vunpack.c.h.b16 %v910
      %v1266 = vunpack.c.l.b16 %v911
      %v1267 = vunpack.c.h.b16 %v911
      %v1268 = vunpack.c.l.b16 %v912
      %v1269 = vunpack.c.h.b16 %v912
      %v1270 = vunpack.c.l.b16 %v913
      %v1271 = vunpack.c.h.b16 %v913
      %v1272 = vunpack.c.l.b16 %v914
      %v1273 = vunpack.c.h.b16 %v914
      %v1274 = vunpack.c.l.b16 %v915
      %v1275 = vunpack.c.h.b16 %v915
      %v1276 = vunpack.c.l.b16 %v916
      %v1277 = vunpack.c.h.b16 %v916
      %v1278 = vunpack.c.l.b16 %v917
      %v1279 = vunpack.c.h.b16 %v917
      %v1280 = vunpack.c.l.b16 %v918
      %v1281 = vunpack.c.h.b16 %v918
      %v1282 = vunpack.c.l.b16 %v919
      %v1283 = vunpack.c.h.b16 %v919
      %v1284 = vunpack.c.l.b16 %v920
      %v1285 = vunpack.c.h.b16 %v920
      %v1286 = vunpack.c.l.b16 %v921
      %v1287 = vunpack.c.h.b16 %v921
      %v1288 = vunpack.c.l.b16 %v922
      %v1289 = vunpack.c.h.b16 %v922
      %v1290 = vunpack.c.l.b16 %v923
      %v1291 = vunpack.c.h.b16 %v923
      %v1292 = vunpack.c.l.b16 %v924
      %v1293 = vunpack.c.h.b16 %v924
      %v1294 = vunpack.c.l.b16 %v925
      %v1295 = vunpack.c.h.b16 %v925
      %v1296 = vunpack.c.l.b16 %v926
      %v1297 = vunpack.c.h.b16 %v926
      %v1298 = vunpack.c.l.b16 %v927
      %v1299 = vunpack.c.h.b16 %v927
      %v1300 = vunpack.c.l.b16 %v928
      %v1301 = vunpack.c.h.b16 %v928
      %v1302 = vunpack.c.l.b16 %v929
      %v1303 = vunpack.c.h.b16 %v929
      %v1304 = vunpack.c.l.b16 %v930
      %v1305 = vunpack.c.h.b16 %v930
      %v1306 = vunpack.c.l.b16 %v931
      %v1307 = vunpack.c.h.b16 %v931
      %v1308 = vunpack.c.l.b16 %v932
      %v1309 = vunpack.c.h.b16 %v932
      %v1310 = vunpack.c.l.b16 %v933
      %v1311 = vunpack.c.h.b16 %v933
      %v1312 = vunpack.c.l.b16 %v934
      %v1313 = vunpack.c.h.b16 %v934
      %v1314 = vunpack.c.l.b16 %v935
      %v1315 = vunpack.c.h.b16 %v935
      %v1316 = vunpack.c.l.b16 %v936
      %v1317 = vunpack.c.h.b16 %v936
      %v1318 = vunpack.c.l.b16 %v937
      %v1319 = vunpack.c.h.b16 %v937
      %v1320 = vunpack.c.l.b16 %v938
      %v1321 = vunpack.c.h.b16 %v938
      %v1322 = vunpack.c.l.b16 %v939
      %v1323 = vunpack.c.h.b16 %v939
      %v1324 = vunpack.c.l.b16 %v940
      %v1325 = vunpack.c.h.b16 %v940
      %v1326 = vunpack.c.l.b16 %v941
      %v1327 = vunpack.c.h.b16 %v941
      %v1328 = vunpack.c.l.b16 %v942
      %v1329 = vunpack.c.h.b16 %v942
      %v1330 = vunpack.c.l.b16 %v943
      %v1331 = vunpack.c.h.b16 %v943
      %v1332 = vunpack.c.l.b16 %v944
      %v1333 = vunpack.c.h.b16 %v944
      %v1334 = vunpack.c.l.b16 %v945
      %v1335 = vunpack.c.h.b16 %v945
      %v1336 = vunpack.c.l.b16 %v946
      %v1337 = vunpack.c.h.b16 %v946
      %v1338 = vunpack.c.l.b16 %v947
      %v1339 = vunpack.c.h.b16 %v947
      %v1340 = vunpack.c.l.b16 %v948
      %v1341 = vunpack.c.h.b16 %v948
      %v1342 = vunpack.c.l.b16 %v949
      %v1343 = vunpack.c.h.b16 %v949
      %v1344 = vunpack.c.l.b16 %v950
      %v1345 = vunpack.c.h.b16 %v950
      %v1346 = vunpack.c.l.b16 %v951
      %v1347 = vunpack.c.h.b16 %v951
      %v1348 = vunpack.c.l.b16 %v952
      %v1349 = vunpack.c.h.b16 %v952
      %v1350 = vunpack.c.l.b16 %v953
      %v1351 = vunpack.c.h.b16 %v953
      %v1352 = vunpack.c.l.b16 %v954
      %v1353 = vunpack.c.h.b16 %v954
      %v1354 = vunpack.c.l.b16 %v955
      %v1355 = vunpack.c.h.b16 %v955
      %v1356 = vunpack.c.l.b16 %v956
      %v1357 = vunpack.c.h.b16 %v956
      %v1358 = vunpack.c.l.b16 %v957
      %v1359 = vunpack.c.h.b16 %v957
      %v1360 = vunpack.c.l.b16 %v958
      %v1361 = vunpack.c.h.b16 %v958
      %v1362 = vunpack.c.l.b16 %v959
      %v1363 = vunpack.c.h.b16 %v959
      %v1364 = vunpack.c.l.b16 %v960
      %v1365 = vunpack.c.h.b16 %v960
      %v1366 = vunpack.c.l.b16 %v961
      %v1367 = vunpack.c.h.b16 %v961
      %v1368 = vunpack.c.l.b16 %v962
      %v1369 = vunpack.c.h.b16 %v962
      %v1370 = vunpack.c.l.b16 %v963
      %v1371 = vunpack.c.h.b16 %v963
      %v1372 = vunpack.c.l.b16 %v964
      %v1373 = vunpack.c.h.b16 %v964
      %v1374 = vunpack.c.l.b16 %v965
      %v1375 = vunpack.c.h.b16 %v965
      %v1376 = vunpack.c.l.b16 %v966
      %v1377 = vunpack.c.h.b16 %v966
      %v1378 = vunpack.c.l.b16 %v967
      %v1379 = vunpack.c.h.b16 %v967
      %v1380 = vunpack.c.l.b16 %v968
      %v1381 = vunpack.c.h.b16 %v968
      %v1382 = vunpack.c.l.b16 %v969
      %v1383 = vunpack.c.h.b16 %v969
      %v1384 = vunpack.c.l.b16 %v970
      %v1385 = vunpack.c.h.b16 %v970
      %v1386 = vunpack.c.l.b16 %v971
      %v1387 = vunpack.c.h.b16 %v971
      %v1388 = vunpack.c.l.b16 %v972
      %v1389 = vunpack.c.h.b16 %v972
      %v1390 = vunpack.c.l.b16 %v973
      %v1391 = vunpack.c.h.b16 %v973
      %v1392 = vunpack.c.l.b16 %v974
      %v1393 = vunpack.c.h.b16 %v974
      %v1394 = vunpack.c.l.b16 %v975
      %v1395 = vunpack.c.h.b16 %v975
      %v1396 = vunpack.c.l.b16 %v976
      %v1397 = vunpack.c.h.b16 %v976
      %v1398 = vunpack.c.l.b16 %v977
      %v1399 = vunpack.c.h.b16 %v977
      %v1400 = vunpack.c.l.b16 %v978
      %v1401 = vunpack.c.h.b16 %v978
      %v1402 = vunpack.c.l.b16 %v979
      %v1403 = vunpack.c.h.b16 %v979
      %v1404 = vunpack.c.l.b16 %v980
      %v1405 = vunpack.c.h.b16 %v980
      %v1406 = vunpack.c.l.b16 %v981
      %v1407 = vunpack.c.h.b16 %v981
      %v1408 = vunpack.c.l.b16 %v982
      %v1409 = vunpack.c.h.b16 %v982
      %v1410 = vunpack.c.l.b16 %v983
      %v1411 = vunpack.c.h.b16 %v983
      %v1412 = vunpack.c.l.b16 %v984
      %v1413 = vunpack.c.h.b16 %v984
      %v1414 = vunpack.c.l.b16 %v985
      %v1415 = vunpack.c.h.b16 %v985
      %v1416 = vunpack.c.l.b16 %v986
      %v1417 = vunpack.c.h.b16 %v986
      %v1418 = vunpack.c.l.b16 %v987
      %v1419 = vunpack.c.h.b16 %v987
      %v1420 = vunpack.c.l.b16 %v988
      %v1421 = vunpack.c.h.b16 %v988
      %v1422 = vunpack.c.l.b16 %v989
      %v1423 = vunpack.c.h.b16 %v989
      %v1424 = vunpack.c.l.b16 %v990
      %v1425 = vunpack.c.h.b16 %v990
      %v1426 = vunpack.c.l.b16 %v991
      %v1427 = vunpack.c.h.b16 %v991
      %v1428 = vunpack.c.l.b16 %v992
      %v1429 = vunpack.c.h.b16 %v992
      %v1430 = vunpack.c.l.b16 %v993
      %v1431 = vunpack.c.h.b16 %v993
      %v1432 = vunpack.c.l.b16 %v994
      %v1433 = vunpack.c.h.b16 %v994
      %v1434 = vunpack.c.l.b16 %v995
      %v1435 = vunpack.c.h.b16 %v995
      %v1436 = vunpack.c.l.b16 %v996
      %v1437 = vunpack.c.h.b16 %v996
      %v1438 = vunpack.c.l.b16 %v997
      %v1439 = vunpack.c.h.b16 %v997
      %v1440 = vunpack.c.l.b16 %v998
      %v1441 = vunpack.c.h.b16 %v998
      %v1442 = vunpack.c.l.b16 %v999
      %v1443 = vunpack.c.h.b16 %v999
      %v1444 = vunpack.c.l.b16 %v1000
      %v1445 = vunpack.c.h.b16 %v1000
      %v1446 = vunpack.c.l.b16 %v1001
      %v1447 = vunpack.c.h.b16 %v1001
      %v1448 = vunpack.c.l.b16 %v1002
      %v1449 = vunpack.c.h.b16 %v1002
      %v1450 = vunpack.c.l.b16 %v1003
      %v1451 = vunpack.c.h.b16 %v1003
      %v1452 = vunpack.c.l.b16 %v1004
      %v1453 = vunpack.c.h.b16 %v1004
      %v1454 = vunpack.c.l.b16 %v1005
      %v1455 = vunpack.c.h.b16 %v1005
      %v1456 = vunpack.c.l.b16 %v1006
      %v1457 = vunpack.c.h.b16 %v1006
      %v1458 = vunpack.c.l.b16 %v1007
      %v1459 = vunpack.c.h.b16 %v1007
      %v1460 = vunpack.c.l.b16 %v1008
      %v1461 = vunpack.c.h.b16 %v1008
      %v1462 = vunpack.c.l.b16 %v1009
      %v1463 = vunpack.c.h.b16 %v1009
      %v1464 = vunpack.c.l.b16 %v1010
      %v1465 = vunpack.c.h.b16 %v1010
      %v1466 = vunpack.c.l.b16 %v1011
      %v1467 = vunpack.c.h.b16 %v1011
      %v1468 = vunpack.c.l.b16 %v1012
      %v1469 = vunpack.c.h.b16 %v1012
      %v1470 = vunpack.c.l.b16 %v1013
      %v1471 = vunpack.c.h.b16 %v1013
      %v1472 = vunpack.c.l.b16 %v1014
      %v1473 = vunpack.c.h.b16 %v1014
      %v1474 = vunpack.c.l.b16 %v1015
      %v1475 = vunpack.c.h.b16 %v1015
      %v1476 = vunpack.c.l.b16 %v1016
      %v1477 = vunpack.c.h.b16 %v1016
      %v1478 = vunpack.c.l.b16 %v1017
      %v1479 = vunpack.c.h.b16 %v1017
      %v1480 = vunpack.c.l.b16 %v1018
      %v1481 = vunpack.c.h.b16 %v1018
      %v1482 = vunpack.c.l.b16 %v1019
      %v1483 = vunpack.c.h.b16 %v1019
      %v1484 = vunpack.c.l.b16 %v1020
      %v1485 = vunpack.c.h.b16 %v1020
      %v1486 = vunpack.c.l.b16 %v1021
      %v1487 = vunpack.c.h.b16 %v1021
      %v1488 = vunpack.c.l.b16 %v1022
      %v1489 = vunpack.c.h.b16 %v1022
      %v1490 = vunpack.c.l.b16 %v1023
      %v1491 = vunpack.c.h.b16 %v1023
      %v1492 = vpack.c.b16 %v1252, %v1236
      %v1493 = vpack.c.b16 %v1253, %v1237
      %v1494 = vpack.c.b16 %v1254, %v1238
      %v1495 = vpack.c.b16 %v1255, %v1239
      %v1496 = vpack.c.b16 %v1256, %v1240
      %v1497 = vpack.c.b16 %v1257, %v1241
      %v1498 = vpack.c.b16 %v1258, %v1242
      %v1499 = vpack.c.b16 %v1259, %v1243
      %v1500 = vpack.c.b16 %v1260, %v1244
      %v1501 = vpack.c.b16 %v1261, %v1245
      %v1502 = vpack.c.b16 %v1262, %v1246
      %v1503 = vpack.c.b16 %v1263, %v1247
      %v1504 = vpack.c.b16 %v1264, %v1248
      %v1505 = vpack.c.b16 %v1265, %v1249
      %v1506 = vpack.c.b16 %v1266, %v1250
      %v1507 = vpack.c.b16 %v1267, %v1251
      %v1508 = vpack.c.b16 %v1284, %v1268
      %v1509 = vpack.c.b16 %v1285, %v1269
      %v1510 = vpack.c.b16 %v1286, %v1270
      %v1511 = vpack.c.b16 %v1287, %v1271
      %v1512 = vpack.c.b16 %v1288, %v1272
      %v1513 = vpack.c.b16 %v1289, %v1273
      %v1514 = vpack.c.b16 %v1290, %v1274
      %v1515 = vpack.c.b16 %v1291, %v1275
      %v1516 = vpack.c.b16 %v1292, %v1276
      %v1517 = vpack.c.b16 %v1293, %v1277
      %v1518 = vpack.c.b16 %v1294, %v1278
      %v1519 = vpack.c.b16 %v1295, %v1279
      %v1520 = vpack.c.b16 %v1296, %v1280
      %v1521 = vpack.c.b16 %v1297, %v1281
      %v1522 = vpack.c.b16 %v1298, %v1282
      %v1523 = vpack.c.b16 %v1299, %v1283
      %v1524 = vpack.c.b16 %v1316, %v1300
      %v1525 = vpack.c.b16 %v1317, %v1301
      %v1526 = vpack.c.b16 %v1318, %v1302
      %v1527 = vpack.c.b16 %v1319, %v1303
      %v1528 = vpack.c.b16 %v1320, %v1304
      %v1529 = vpack.c.b16 %v1321, %v1305
      %v1530 = vpack.c.b16 %v1322, %v1306
      %v1531 = vpack.c.b16 %v1323, %v1307
      %v1532 = vpack.c.b16 %v1324, %v1308
      %v1533 = vpack.c.b16 %v1325, %v1309
      %v1534 = vpack.c.b16 %v1326, %v1310
      %v1535 = vpack.c.b16 %v1327, %v1311
      %v1536 = vpack.c.b16 %v1328, %v1312
      %v1537 = vpack.c.b16 %v1329, %v1313
      %v1538 = vpack.c.b16 %v1330, %v1314
      %v1539 = vpack.c.b16 %v1331, %v1315
      %v1540 = vpack.c.b16 %v1348, %v1332
      %v1541 = vpack.c.b16 %v1349, %v1333
      %v1542 = vpack.c.b16 %v1350, %v1334
      %v1543 = vpack.c.b16 %v1351, %v1335
      %v1544 = vpack.c.b16 %v1352, %v1336
      %v1545 = vpack.c.b16 %v1353, %v1337
      %v1546 = vpack.c.b16 %v1354, %v1338
      %v1547 = vpack.c.b16 %v1355, %v1339
      %v1548 = vpack.c.b16 %v1356, %v1340
      %v1549 = vpack.c.b16 %v1357, %v1341
      %v1550 = vpack.c.b16 %v1358, %v1342
      %v1551 = vpack.c.b16 %v1359, %v1343
      %v1552 = vpack.c.b16 %v1360, %v1344
      %v1553 = vpack.c.b16 %v1361, %v1345
      %v1554 = vpack.c.b16 %v1362, %v1346
      %v1555 = vpack.c.b16 %v1363, %v1347
      %v1556 = vpack.c.b16 %v1380, %v1364
      %v1557 = vpack.c.b16 %v1381, %v1365
      %v1558 = vpack.c.b16 %v1382, %v1366
      %v1559 = vpack.c.b16 %v1383, %v1367
      %v1560 = vpack.c.b16 %v1384, %v1368
      %v1561 = vpack.c.b16 %v1385, %v1369
      %v1562 = vpack.c.b16 %v1386, %v1370
      %v1563 = vpack.c.b16 %v1387, %v1371
      %v1564 = vpack.c.b16 %v1388, %v1372
      %v1565 = vpack.c.b16 %v1389, %v1373
      %v1566 = vpack.c.b16 %v1390, %v1374
      %v1567 = vpack.c.b16 %v1391, %v1375
      %v1568 = vpack.c.b16 %v1392, %v1376
      %v1569 = vpack.c.b16 %v1393, %v1377
      %v1570 = vpack.c.b16 %v1394, %v1378
      %v1571 = vpack.c.b16 %v1395, %v1379
      %v1572 = vpack.c.b16 %v1412, %v1396
      %v1573 = vpack.c.b16 %v1413, %v1397
      %v1574 = vpack.c.b16 %v1414, %v1398
      %v1575 = vpack.c.b16 %v1415, %v1399
      %v1576 = vpack.c.b16 %v1416, %v1400
      %v1577 = vpack.c.b16 %v1417, %v1401
      %v1578 = vpack.c.b16 %v1418, %v1402
      %v1579 = vpack.c.b16 %v1419, %v1403
      %v1580 = vpack.c.b16 %v1420, %v1404
      %v1581 = vpack.c.b16 %v1421, %v1405
      %v1582 = vpack.c.b16 %v1422, %v1406
      %v1583 = vpack.c.b16 %v1423, %v1407
      %v1584 = vpack.c.b16 %v1424, %v1408
      %v1585 = vpack.c.b16 %v1425, %v1409
      %v1586 = vpack.c.b16 %v1426, %v1410
      %v1587 = vpack.c.b16 %v1427, %v1411
      %v1588 = vpack.c.b16 %v1444, %v1428
      %v1589 = vpack.c.b16 %v1445, %v1429
      %v1590 = vpack.c.b16 %v1446, %v1430
      %v1591 = vpack.c.b16 %v1447, %v1431
      %v1592 = vpack.c.b16 %v1448, %v1432
      %v1593 = vpack.c.b16 %v1449, %v1433
      %v1594 = vpack.c.b16 %v1450, %v1434
      %v1595 = vpack.c.b16 %v1451, %v1435
      %v1596 = vpack.c.b16 %v1452, %v1436
      %v1597 = vpack.c.b16 %v1453, %v1437
      %v1598 = vpack.c.b16 %v1454, %v1438
      %v1599 = vpack.c.b16 %v1455, %v1439
      %v1600 = vpack.c.b16 %v1456, %v1440
      %v1601 = vpack.c.b16 %v1457, %v1441
      %v1602 = vpack.c.b16 %v1458, %v1442
      %v1603 = vpack.c.b16 %v1459, %v1443
      %v1604 = vpack.c.b16 %v1476, %v1460
      %v1605 = vpack.c.b16 %v1477, %v1461
      %v1606 = vpack.c.b16 %v1478, %v1462
      %v1607 = vpack.c.b16 %v1479, %v1463
      %v1608 = vpack.c.b16 %v1480, %v1464
      %v1609 = vpack.c.b16 %v1481, %v1465
      %v1610 = vpack.c.b16 %v1482, %v1466
      %v1611 = vpack.c.b16 %v1483, %v1467
      %v1612 = vpack.c.b16 %v1484, %v1468
      %v1613 = vpack.c.b16 %v1485, %v1469
      %v1614 = vpack.c.b16 %v1486, %v1470
      %v1615 = vpack.c.b16 %v1487, %v1471
      %v1616 = vpack.c.b16 %v1488, %v1472
      %v1617 = vpack.c.b16 %v1489, %v1473
      %v1618 = vpack.c.b16 %v1490, %v1474
      %v1619 = vpack.c.b16 %v1491, %v1475
      %1748 = vmatprep.subr.bf16.mxu0 %v1493
      %1749 = vmatpush1.bf16.msra.mxu0 %v1492
      %1750 = vmatprep.subr.bf16.mxu0 %v1509
      %1751 = vmatpush1.bf16.msra.mxu0 %v1508
      %1752 = vmatprep.subr.bf16.mxu0 %v1525
      %1753 = vmatpush1.bf16.msra.mxu0 %v1524
      %1754 = vmatprep.subr.bf16.mxu0 %v1541
      %1755 = vmatpush1.bf16.msra.mxu0 %v1540
      %1756 = vmatprep.subr.bf16.mxu0 %v1557
      %1757 = vmatpush1.bf16.msra.mxu0 %v1556
      %1758 = vmatprep.subr.bf16.mxu0 %v1573
      %1759 = vmatpush1.bf16.msra.mxu0 %v1572
      %1760 = vmatprep.subr.bf16.mxu0 %v1589
      %1761 = vmatpush1.bf16.msra.mxu0 %v1588
      %1762 = vmatprep.subr.bf16.mxu0 %v1605
      %1763 = vmatpush1.bf16.msra.mxu0 %v1604
      %1764 = vmatprep.subr.bf16.mxu0 0
      %1765 = vmatpush1.bf16.msra.mxu0 0
      %1766 = vmatprep.subr.bf16.mxu0 0
      %1767 = vmatpush1.bf16.msra.mxu0 0
      %1768 = vmatprep.subr.bf16.mxu0 0
      %1769 = vmatpush1.bf16.msra.mxu0 0
      %1770 = vmatprep.subr.bf16.mxu0 0
      %1771 = vmatpush1.bf16.msra.mxu0 0
      %1772 = vmatprep.subr.bf16.mxu0 0
      %1773 = vmatpush1.bf16.msra.mxu0 0
      %1774 = vmatprep.subr.bf16.mxu0 0
      %1775 = vmatpush1.bf16.msra.mxu0 0
      %1776 = vmatprep.subr.bf16.mxu0 0
      %1777 = vmatpush1.bf16.msra.mxu0 0
      %1778 = vmatprep.subr.bf16.mxu0 0
      %1779 = vmatpush1.bf16.msra.mxu0 0
      %1780 = vmatprep.mubr.bf16.mxu0 0
      %1781 = vmatmul.mubr.bf16.gmra.mrb[0].mxu0 %v895
      %v1782 = vpop.f32.mrb[0].mxu0
      %v1783 = vadd.f32 %v1031, %v1782
      %v1784 = vpop.f32.mrb[0].mxu0
      %v1785 = vadd.f32 %v1035, %v1784
      %v1786 = vpop.f32.mrb[0].mxu0
      %v1787 = vadd.f32 %v1031, %v1786
      %v1788 = vpop.f32.mrb[0].mxu0
      %v1789 = vadd.f32 %v1035, %v1788
      %1790 = vdwg.mxu0
      %1791 = vmatprep.subr.bf16.mxu0 %v1495
      %1792 = vmatpush1.bf16.msra.mxu0 %v1494
      %1793 = vmatprep.subr.bf16.mxu0 %v1511
      %1794 = vmatpush1.bf16.msra.mxu0 %v1510
      %1795 = vmatprep.subr.bf16.mxu0 %v1527
      %1796 = vmatpush1.bf16.msra.mxu0 %v1526
      %1797 = vmatprep.subr.bf16.mxu0 %v1543
      %1798 = vmatpush1.bf16.msra.mxu0 %v1542
      %1799 = vmatprep.subr.bf16.mxu0 %v1559
      %1800 = vmatpush1.bf16.msra.mxu0 %v1558
      %1801 = vmatprep.subr.bf16.mxu0 %v1575
      %1802 = vmatpush1.bf16.msra.mxu0 %v1574
      %1803 = vmatprep.subr.bf16.mxu0 %v1591
      %1804 = vmatpush1.bf16.msra.mxu0 %v1590
      %1805 = vmatprep.subr.bf16.mxu0 %v1607
      %1806 = vmatpush1.bf16.msra.mxu0 %v1606
      %1807 = vmatprep.subr.bf16.mxu0 0
      %1808 = vmatpush1.bf16.msra.mxu0 0
      %1809 = vmatprep.subr.bf16.mxu0 0
      %1810 = vmatpush1.bf16.msra.mxu0 0
      %1811 = vmatprep.subr.bf16.mxu0 0
      %1812 = vmatpush1.bf16.msra.mxu0 0
      %1813 = vmatprep.subr.bf16.mxu0 0
      %1814 = vmatpush1.bf16.msra.mxu0 0
      %1815 = vmatprep.subr.bf16.mxu0 0
      %1816 = vmatpush1.bf16.msra.mxu0 0
      %1817 = vmatprep.subr.bf16.mxu0 0
      %1818 = vmatpush1.bf16.msra.mxu0 0
      %1819 = vmatprep.subr.bf16.mxu0 0
      %1820 = vmatpush1.bf16.msra.mxu0 0
      %1821 = vmatprep.subr.bf16.mxu0 0
      %1822 = vmatpush1.bf16.msra.mxu0 0
      %1823 = vmatprep.mubr.bf16.mxu0 0
      %1824 = vmatmul.mubr.bf16.gmra.mrb[0].mxu0 %v895
      %v1825 = vpop.f32.mrb[0].mxu0
      %v1826 = vadd.f32 %v1039, %v1825
      %v1827 = vpop.f32.mrb[0].mxu0
      %v1828 = vadd.f32 %v1043, %v1827
      %v1829 = vpop.f32.mrb[0].mxu0
      %v1830 = vadd.f32 %v1039, %v1829
      %v1831 = vpop.f32.mrb[0].mxu0
      %v1832 = vadd.f32 %v1043, %v1831
      %1833 = vdwg.mxu0
      %1834 = vmatprep.subr.bf16.mxu0 %v1497
      %1835 = vmatpush1.bf16.msra.mxu0 %v1496
      %1836 = vmatprep.subr.bf16.mxu0 %v1513
      %1837 = vmatpush1.bf16.msra.mxu0 %v1512
      %1838 = vmatprep.subr.bf16.mxu0 %v1529
      %1839 = vmatpush1.bf16.msra.mxu0 %v1528
      %1840 = vmatprep.subr.bf16.mxu0 %v1545
      %1841 = vmatpush1.bf16.msra.mxu0 %v1544
      %1842 = vmatprep.subr.bf16.mxu0 %v1561
      %1843 = vmatpush1.bf16.msra.mxu0 %v1560
      %1844 = vmatprep.subr.bf16.mxu0 %v1577
      %1845 = vmatpush1.bf16.msra.mxu0 %v1576
      %1846 = vmatprep.subr.bf16.mxu0 %v1593
      %1847 = vmatpush1.bf16.msra.mxu0 %v1592
      %1848 = vmatprep.subr.bf16.mxu0 %v1609
      %1849 = vmatpush1.bf16.msra.mxu0 %v1608
      %1850 = vmatprep.subr.bf16.mxu0 0
      %1851 = vmatpush1.bf16.msra.mxu0 0
      %1852 = vmatprep.subr.bf16.mxu0 0
      %1853 = vmatpush1.bf16.msra.mxu0 0
      %1854 = vmatprep.subr.bf16.mxu0 0
      %1855 = vmatpush1.bf16.msra.mxu0 0
      %1856 = vmatprep.subr.bf16.mxu0 0
      %1857 = vmatpush1.bf16.msra.mxu0 0
      %1858 = vmatprep.subr.bf16.mxu0 0
      %1859 = vmatpush1.bf16.msra.mxu0 0
      %1860 = vmatprep.subr.bf16.mxu0 0
      %1861 = vmatpush1.bf16.msra.mxu0 0
      %1862 = vmatprep.subr.bf16.mxu0 0
      %1863 = vmatpush1.bf16.msra.mxu0 0
      %1864 = vmatprep.subr.bf16.mxu0 0
      %1865 = vmatpush1.bf16.msra.mxu0 0
      %1866 = vmatprep.mubr.bf16.mxu0 0
      %1867 = vmatmul.mubr.bf16.gmra.mrb[0].mxu0 %v895
      %v1868 = vpop.f32.mrb[0].mxu0
      %v1869 = vadd.f32 %v1047, %v1868
      %v1870 = vpop.f32.mrb[0].mxu0
      %v1871 = vadd.f32 %v1051, %v1870
      %v1872 = vpop.f32.mrb[0].mxu0
      %v1873 = vadd.f32 %v1047, %v1872
      %v1874 = vpop.f32.mrb[0].mxu0
      %v1875 = vadd.f32 %v1051, %v1874
      %1876 = vdwg.mxu0
      %1877 = vmatprep.subr.bf16.mxu0 %v1499
      %1878 = vmatpush1.bf16.msra.mxu0 %v1498
      %1879 = vmatprep.subr.bf16.mxu0 %v1515
      %1880 = vmatpush1.bf16.msra.mxu0 %v1514
      %1881 = vmatprep.subr.bf16.mxu0 %v1531
      %1882 = vmatpush1.bf16.msra.mxu0 %v1530
      %1883 = vmatprep.subr.bf16.mxu0 %v1547
      %1884 = vmatpush1.bf16.msra.mxu0 %v1546
      %1885 = vmatprep.subr.bf16.mxu0 %v1563
      %1886 = vmatpush1.bf16.msra.mxu0 %v1562
      %1887 = vmatprep.subr.bf16.mxu0 %v1579
      %1888 = vmatpush1.bf16.msra.mxu0 %v1578
      %1889 = vmatprep.subr.bf16.mxu0 %v1595
      %1890 = vmatpush1.bf16.msra.mxu0 %v1594
      %1891 = vmatprep.subr.bf16.mxu0 %v1611
      %1892 = vmatpush1.bf16.msra.mxu0 %v1610
      %1893 = vmatprep.subr.bf16.mxu0 0
      %1894 = vmatpush1.bf16.msra.mxu0 0
      %1895 = vmatprep.subr.bf16.mxu0 0
      %1896 = vmatpush1.bf16.msra.mxu0 0
      %1897 = vmatprep.subr.bf16.mxu0 0
      %1898 = vmatpush1.bf16.msra.mxu0 0
      %1899 = vmatprep.subr.bf16.mxu0 0
      %1900 = vmatpush1.bf16.msra.mxu0 0
      %1901 = vmatprep.subr.bf16.mxu0 0
      %1902 = vmatpush1.bf16.msra.mxu0 0
      %1903 = vmatprep.subr.bf16.mxu0 0
      %1904 = vmatpush1.bf16.msra.mxu0 0
      %1905 = vmatprep.subr.bf16.mxu0 0
      %1906 = vmatpush1.bf16.msra.mxu0 0
      %1907 = vmatprep.subr.bf16.mxu0 0
      %1908 = vmatpush1.bf16.msra.mxu0 0
      %1909 = vmatprep.mubr.bf16.mxu0 0
      %1910 = vmatmul.mubr.bf16.gmra.mrb[0].mxu0 %v895
      %v1911 = vpop.f32.mrb[0].mxu0
      %v1912 = vadd.f32 %v1055, %v1911
      %v1913 = vpop.f32.mrb[0].mxu0
      %v1914 = vadd.f32 %v1059, %v1913
      %v1915 = vpop.f32.mrb[0].mxu0
      %v1916 = vadd.f32 %v1055, %v1915
      %v1917 = vpop.f32.mrb[0].mxu0
      %v1918 = vadd.f32 %v1059, %v1917
      %1919 = vdwg.mxu0
      %1920 = vmatprep.subr.bf16.mxu0 %v1501
      %1921 = vmatpush1.bf16.msra.mxu0 %v1500
      %1922 = vmatprep.subr.bf16.mxu0 %v1517
      %1923 = vmatpush1.bf16.msra.mxu0 %v1516
      %1924 = vmatprep.subr.bf16.mxu0 %v1533
      %1925 = vmatpush1.bf16.msra.mxu0 %v1532
      %1926 = vmatprep.subr.bf16.mxu0 %v1549
      %1927 = vmatpush1.bf16.msra.mxu0 %v1548
      %1928 = vmatprep.subr.bf16.mxu0 %v1565
      %1929 = vmatpush1.bf16.msra.mxu0 %v1564
      %1930 = vmatprep.subr.bf16.mxu0 %v1581
      %1931 = vmatpush1.bf16.msra.mxu0 %v1580
      %1932 = vmatprep.subr.bf16.mxu0 %v1597
      %1933 = vmatpush1.bf16.msra.mxu0 %v1596
      %1934 = vmatprep.subr.bf16.mxu0 %v1613
      %1935 = vmatpush1.bf16.msra.mxu0 %v1612
      %1936 = vmatprep.subr.bf16.mxu0 0
      %1937 = vmatpush1.bf16.msra.mxu0 0
      %1938 = vmatprep.subr.bf16.mxu0 0
      %1939 = vmatpush1.bf16.msra.mxu0 0
      %1940 = vmatprep.subr.bf16.mxu0 0
      %1941 = vmatpush1.bf16.msra.mxu0 0
      %1942 = vmatprep.subr.bf16.mxu0 0
      %1943 = vmatpush1.bf16.msra.mxu0 0
      %1944 = vmatprep.subr.bf16.mxu0 0
      %1945 = vmatpush1.bf16.msra.mxu0 0
      %1946 = vmatprep.subr.bf16.mxu0 0
      %1947 = vmatpush1.bf16.msra.mxu0 0
      %1948 = vmatprep.subr.bf16.mxu0 0
      %1949 = vmatpush1.bf16.msra.mxu0 0
      %1950 = vmatprep.subr.bf16.mxu0 0
      %1951 = vmatpush1.bf16.msra.mxu0 0
      %1952 = vmatprep.mubr.bf16.mxu0 0
      %1953 = vmatmul.mubr.bf16.gmra.mrb[0].mxu0 %v895
      %v1954 = vpop.f32.mrb[0].mxu0
      %v1955 = vadd.f32 %v1063, %v1954
      %v1956 = vpop.f32.mrb[0].mxu0
      %v1957 = vadd.f32 %v1067, %v1956
      %v1958 = vpop.f32.mrb[0].mxu0
      %v1959 = vadd.f32 %v1063, %v1958
      %v1960 = vpop.f32.mrb[0].mxu0
      %v1961 = vadd.f32 %v1067, %v1960
      %1962 = vdwg.mxu0
      %1963 = vmatprep.subr.bf16.mxu0 %v1503
      %1964 = vmatpush1.bf16.msra.mxu0 %v1502
      %1965 = vmatprep.subr.bf16.mxu0 %v1519
      %1966 = vmatpush1.bf16.msra.mxu0 %v1518
      %1967 = vmatprep.subr.bf16.mxu0 %v1535
      %1968 = vmatpush1.bf16.msra.mxu0 %v1534
      %1969 = vmatprep.subr.bf16.mxu0 %v1551
      %1970 = vmatpush1.bf16.msra.mxu0 %v1550
      %1971 = vmatprep.subr.bf16.mxu0 %v1567
      %1972 = vmatpush1.bf16.msra.mxu0 %v1566
      %1973 = vmatprep.subr.bf16.mxu0 %v1583
      %1974 = vmatpush1.bf16.msra.mxu0 %v1582
      %1975 = vmatprep.subr.bf16.mxu0 %v1599
      %1976 = vmatpush1.bf16.msra.mxu0 %v1598
      %1977 = vmatprep.subr.bf16.mxu0 %v1615
      %1978 = vmatpush1.bf16.msra.mxu0 %v1614
      %1979 = vmatprep.subr.bf16.mxu0 0
      %1980 = vmatpush1.bf16.msra.mxu0 0
      %1981 = vmatprep.subr.bf16.mxu0 0
      %1982 = vmatpush1.bf16.msra.mxu0 0
      %1983 = vmatprep.subr.bf16.mxu0 0
      %1984 = vmatpush1.bf16.msra.mxu0 0
      %1985 = vmatprep.subr.bf16.mxu0 0
      %1986 = vmatpush1.bf16.msra.mxu0 0
      %1987 = vmatprep.subr.bf16.mxu0 0
      %1988 = vmatpush1.bf16.msra.mxu0 0
      %1989 = vmatprep.subr.bf16.mxu0 0
      %1990 = vmatpush1.bf16.msra.mxu0 0
      %1991 = vmatprep.subr.bf16.mxu0 0
      %1992 = vmatpush1.bf16.msra.mxu0 0
      %1993 = vmatprep.subr.bf16.mxu0 0
      %1994 = vmatpush1.bf16.msra.mxu0 0
      %1995 = vmatprep.mubr.bf16.mxu0 0
      %1996 = vmatmul.mubr.bf16.gmra.mrb[0].mxu0 %v895
      %v1997 = vpop.f32.mrb[0].mxu0
      %v1998 = vadd.f32 %v1071, %v1997
      %v1999 = vpop.f32.mrb[0].mxu0
      %v2000 = vadd.f32 %v1075, %v1999
      %v2001 = vpop.f32.mrb[0].mxu0
      %v2002 = vadd.f32 %v1071, %v2001
      %v2003 = vpop.f32.mrb[0].mxu0
      %v2004 = vadd.f32 %v1075, %v2003
      %2005 = vdwg.mxu0
      %2006 = vmatprep.subr.bf16.mxu0 %v1505
      %2007 = vmatpush1.bf16.msra.mxu0 %v1504
      %2008 = vmatprep.subr.bf16.mxu0 %v1521
      %2009 = vmatpush1.bf16.msra.mxu0 %v1520
      %2010 = vmatprep.subr.bf16.mxu0 %v1537
      %2011 = vmatpush1.bf16.msra.mxu0 %v1536
      %2012 = vmatprep.subr.bf16.mxu0 %v1553
      %2013 = vmatpush1.bf16.msra.mxu0 %v1552
      %2014 = vmatprep.subr.bf16.mxu0 %v1569
      %2015 = vmatpush1.bf16.msra.mxu0 %v1568
      %2016 = vmatprep.subr.bf16.mxu0 %v1585
      %2017 = vmatpush1.bf16.msra.mxu0 %v1584
      %2018 = vmatprep.subr.bf16.mxu0 %v1601
      %2019 = vmatpush1.bf16.msra.mxu0 %v1600
      %2020 = vmatprep.subr.bf16.mxu0 %v1617
      %2021 = vmatpush1.bf16.msra.mxu0 %v1616
      %2022 = vmatprep.subr.bf16.mxu0 0
      %2023 = vmatpush1.bf16.msra.mxu0 0
      %2024 = vmatprep.subr.bf16.mxu0 0
      %2025 = vmatpush1.bf16.msra.mxu0 0
      %2026 = vmatprep.subr.bf16.mxu0 0
      %2027 = vmatpush1.bf16.msra.mxu0 0
      %2028 = vmatprep.subr.bf16.mxu0 0
      %2029 = vmatpush1.bf16.msra.mxu0 0
      %2030 = vmatprep.subr.bf16.mxu0 0
      %2031 = vmatpush1.bf16.msra.mxu0 0
      %2032 = vmatprep.subr.bf16.mxu0 0
      %2033 = vmatpush1.bf16.msra.mxu0 0
      %2034 = vmatprep.subr.bf16.mxu0 0
      %2035 = vmatpush1.bf16.msra.mxu0 0
      %2036 = vmatprep.subr.bf16.mxu0 0
      %2037 = vmatpush1.bf16.msra.mxu0 0
      %2038 = vmatprep.mubr.bf16.mxu0 0
      %2039 = vmatmul.mubr.bf16.gmra.mrb[0].mxu0 %v895
      %v2040 = vpop.f32.mrb[0].mxu0
      %v2041 = vadd.f32 %v1079, %v2040
      %v2042 = vpop.f32.mrb[0].mxu0
      %v2043 = vadd.f32 %v1083, %v2042
      %v2044 = vpop.f32.mrb[0].mxu0
      %v2045 = vadd.f32 %v1079, %v2044
      %v2046 = vpop.f32.mrb[0].mxu0
      %v2047 = vadd.f32 %v1083, %v2046
      %2048 = vdwg.mxu0
      %2049 = vmatprep.subr.bf16.mxu0 %v1507
      %2050 = vmatpush1.bf16.msra.mxu0 %v1506
      %2051 = vmatprep.subr.bf16.mxu0 %v1523
      %2052 = vmatpush1.bf16.msra.mxu0 %v1522
      %2053 = vmatprep.subr.bf16.mxu0 %v1539
      %2054 = vmatpush1.bf16.msra.mxu0 %v1538
      %2055 = vmatprep.subr.bf16.mxu0 %v1555
      %2056 = vmatpush1.bf16.msra.mxu0 %v1554
      %2057 = vmatprep.subr.bf16.mxu0 %v1571
      %2058 = vmatpush1.bf16.msra.mxu0 %v1570
      %2059 = vmatprep.subr.bf16.mxu0 %v1587
      %2060 = vmatpush1.bf16.msra.mxu0 %v1586
      %2061 = vmatprep.subr.bf16.mxu0 %v1603
      %2062 = vmatpush1.bf16.msra.mxu0 %v1602
      %2063 = vmatprep.subr.bf16.mxu0 %v1619
      %2064 = vmatpush1.bf16.msra.mxu0 %v1618
      %2065 = vmatprep.subr.bf16.mxu0 0
      %2066 = vmatpush1.bf16.msra.mxu0 0
      %2067 = vmatprep.subr.bf16.mxu0 0
      %2068 = vmatpush1.bf16.msra.mxu0 0
      %2069 = vmatprep.subr.bf16.mxu0 0
      %2070 = vmatpush1.bf16.msra.mxu0 0
      %2071 = vmatprep.subr.bf16.mxu0 0
      %2072 = vmatpush1.bf16.msra.mxu0 0
      %2073 = vmatprep.subr.bf16.mxu0 0
      %2074 = vmatpush1.bf16.msra.mxu0 0
      %2075 = vmatprep.subr.bf16.mxu0 0
      %2076 = vmatpush1.bf16.msra.mxu0 0
      %2077 = vmatprep.subr.bf16.mxu0 0
      %2078 = vmatpush1.bf16.msra.mxu0 0
      %2079 = vmatprep.subr.bf16.mxu0 0
      %2080 = vmatpush1.bf16.msra.mxu0 0
      %2081 = vmatprep.mubr.bf16.mxu0 0
      %2082 = vmatmul.mubr.bf16.gmra.mrb[0].mxu0 %v895
      %v2083 = vpop.f32.mrb[0].mxu0
      %v2084 = vadd.f32 %v1087, %v2083
      %v2085 = vpop.f32.mrb[0].mxu0
      %v2086 = vadd.f32 %v1091, %v2085
      %v2087 = vpop.f32.mrb[0].mxu0
      %v2088 = vadd.f32 %v1087, %v2087
      %v2089 = vpop.f32.mrb[0].mxu0
      %v2090 = vadd.f32 %v1091, %v2089
      %2091 = vdwg.mxu0
      %v2092 = vpack.c.bf16 %v890, %v890
      %vm2093 = vcmask 64512
      %v2095 = vsel %vm2093, %v595, 0
      %vm2097 = vcmask 1043456
      %v2099 = vsel %vm2097, %v2092, 0
      %2101 = vmatprep.subr.bf16.mxu0 0
      %2102 = vmatpush1.bf16.msra.mxu0 %v2099
      %2103 = vmatprep.subr.bf16.mxu0 0
      %2104 = vmatpush1.bf16.msra.mxu0 0
      %2105 = vmatprep.subr.bf16.mxu0 0
      %2106 = vmatpush1.bf16.msra.mxu0 0
      %2107 = vmatprep.subr.bf16.mxu0 0
      %2108 = vmatpush1.bf16.msra.mxu0 0
      %2109 = vmatprep.subr.bf16.mxu0 0
      %2110 = vmatpush1.bf16.msra.mxu0 0
      %2111 = vmatprep.subr.bf16.mxu0 0
      %2112 = vmatpush1.bf16.msra.mxu0 0
      %2113 = vmatprep.subr.bf16.mxu0 0
      %2114 = vmatpush1.bf16.msra.mxu0 0
      %2115 = vmatprep.subr.bf16.mxu0 0
      %2116 = vmatpush1.bf16.msra.mxu0 0
      %2117 = vmatprep.subr.bf16.mxu0 0
      %2118 = vmatpush1.bf16.msra.mxu0 0
      %2119 = vmatprep.subr.bf16.mxu0 0
      %2120 = vmatpush1.bf16.msra.mxu0 0
      %2121 = vmatprep.subr.bf16.mxu0 0
      %2122 = vmatpush1.bf16.msra.mxu0 0
      %2123 = vmatprep.subr.bf16.mxu0 0
      %2124 = vmatpush1.bf16.msra.mxu0 0
      %2125 = vmatprep.subr.bf16.mxu0 0
      %2126 = vmatpush1.bf16.msra.mxu0 0
      %2127 = vmatprep.subr.bf16.mxu0 0
      %2128 = vmatpush1.bf16.msra.mxu0 0
      %2129 = vmatprep.subr.bf16.mxu0 0
      %2130 = vmatpush1.bf16.msra.mxu0 0
      %2131 = vmatprep.subr.bf16.mxu0 0
      %2132 = vmatpush1.bf16.msra.mxu0 0
      %2133 = vmatprep.mubr.bf16.mxu0 0
      %2134 = vmatmul.mubr.bf16.gmra.mrb[0].mxu0 %v2095
      %v2135 = vpop.f32.mrb[0].mxu0
      %v2136 = vadd.f32 0.0, %v2135
      %v2137 = vpop.f32.mrb[0].mxu0
      %v2138 = vpop.f32.mrb[0].mxu0
      %v2139 = vadd.f32 0.0, %v2138
      %v2140 = vpop.f32.mrb[0].mxu0
      %2141 = vdwg.mxu0
      %v2142 = vpack.c.bf16 %v2139, %v2136
      %v2207 = vunpack.c.l.b16 %v607
      %v2208 = vunpack.c.h.b16 %v607
      %v2209 = vunpack.c.l.b16 %v608
      %v2210 = vunpack.c.h.b16 %v608
      %v2211 = vunpack.c.l.b16 %v609
      %v2212 = vunpack.c.h.b16 %v609
      %v2213 = vunpack.c.l.b16 %v610
      %v2214 = vunpack.c.h.b16 %v610
      %v2215 = vunpack.c.l.b16 %v611
      %v2216 = vunpack.c.h.b16 %v611
      %v2217 = vunpack.c.l.b16 %v612
      %v2218 = vunpack.c.h.b16 %v612
      %v2219 = vunpack.c.l.b16 %v613
      %v2220 = vunpack.c.h.b16 %v613
      %v2221 = vunpack.c.l.b16 %v614
      %v2222 = vunpack.c.h.b16 %v614
      %v2223 = vunpack.c.l.b16 %v615
      %v2224 = vunpack.c.h.b16 %v615
      %v2225 = vunpack.c.l.b16 %v616
      %v2226 = vunpack.c.h.b16 %v616
      %v2227 = vunpack.c.l.b16 %v617
      %v2228 = vunpack.c.h.b16 %v617
      %v2229 = vunpack.c.l.b16 %v618
      %v2230 = vunpack.c.h.b16 %v618
      %v2231 = vunpack.c.l.b16 %v619
      %v2232 = vunpack.c.h.b16 %v619
      %v2233 = vunpack.c.l.b16 %v620
      %v2234 = vunpack.c.h.b16 %v620
      %v2235 = vunpack.c.l.b16 %v621
      %v2236 = vunpack.c.h.b16 %v621
      %v2237 = vunpack.c.l.b16 %v622
      %v2238 = vunpack.c.h.b16 %v622
      %v2239 = vunpack.c.l.b16 %v623
      %v2240 = vunpack.c.h.b16 %v623
      %v2241 = vunpack.c.l.b16 %v624
      %v2242 = vunpack.c.h.b16 %v624
      %v2243 = vunpack.c.l.b16 %v625
      %v2244 = vunpack.c.h.b16 %v625
      %v2245 = vunpack.c.l.b16 %v626
      %v2246 = vunpack.c.h.b16 %v626
      %v2247 = vunpack.c.l.b16 %v627
      %v2248 = vunpack.c.h.b16 %v627
      %v2249 = vunpack.c.l.b16 %v628
      %v2250 = vunpack.c.h.b16 %v628
      %v2251 = vunpack.c.l.b16 %v629
      %v2252 = vunpack.c.h.b16 %v629
      %v2253 = vunpack.c.l.b16 %v630
      %v2254 = vunpack.c.h.b16 %v630
      %v2255 = vunpack.c.l.b16 %v631
      %v2256 = vunpack.c.h.b16 %v631
      %v2257 = vunpack.c.l.b16 %v632
      %v2258 = vunpack.c.h.b16 %v632
      %v2259 = vunpack.c.l.b16 %v633
      %v2260 = vunpack.c.h.b16 %v633
      %v2261 = vunpack.c.l.b16 %v634
      %v2262 = vunpack.c.h.b16 %v634
      %v2263 = vunpack.c.l.b16 %v635
      %v2264 = vunpack.c.h.b16 %v635
      %v2265 = vunpack.c.l.b16 %v636
      %v2266 = vunpack.c.h.b16 %v636
      %v2267 = vunpack.c.l.b16 %v637
      %v2268 = vunpack.c.h.b16 %v637
      %v2269 = vunpack.c.l.b16 %v638
      %v2270 = vunpack.c.h.b16 %v638
      %v2271 = vunpack.c.l.b16 %v639
      %v2272 = vunpack.c.h.b16 %v639
      %v2273 = vunpack.c.l.b16 %v640
      %v2274 = vunpack.c.h.b16 %v640
      %v2275 = vunpack.c.l.b16 %v641
      %v2276 = vunpack.c.h.b16 %v641
      %v2277 = vunpack.c.l.b16 %v642
      %v2278 = vunpack.c.h.b16 %v642
      %v2279 = vunpack.c.l.b16 %v643
      %v2280 = vunpack.c.h.b16 %v643
      %v2281 = vunpack.c.l.b16 %v644
      %v2282 = vunpack.c.h.b16 %v644
      %v2283 = vunpack.c.l.b16 %v645
      %v2284 = vunpack.c.h.b16 %v645
      %v2285 = vunpack.c.l.b16 %v646
      %v2286 = vunpack.c.h.b16 %v646
      %v2287 = vunpack.c.l.b16 %v647
      %v2288 = vunpack.c.h.b16 %v647
      %v2289 = vunpack.c.l.b16 %v648
      %v2290 = vunpack.c.h.b16 %v648
      %v2291 = vunpack.c.l.b16 %v649
      %v2292 = vunpack.c.h.b16 %v649
      %v2293 = vunpack.c.l.b16 %v650
      %v2294 = vunpack.c.h.b16 %v650
      %v2295 = vunpack.c.l.b16 %v651
      %v2296 = vunpack.c.h.b16 %v651
      %v2297 = vunpack.c.l.b16 %v652
      %v2298 = vunpack.c.h.b16 %v652
      %v2299 = vunpack.c.l.b16 %v653
      %v2300 = vunpack.c.h.b16 %v653
      %v2301 = vunpack.c.l.b16 %v654
      %v2302 = vunpack.c.h.b16 %v654
      %v2303 = vunpack.c.l.b16 %v655
      %v2304 = vunpack.c.h.b16 %v655
      %v2305 = vunpack.c.l.b16 %v656
      %v2306 = vunpack.c.h.b16 %v656
      %v2307 = vunpack.c.l.b16 %v657
      %v2308 = vunpack.c.h.b16 %v657
      %v2309 = vunpack.c.l.b16 %v658
      %v2310 = vunpack.c.h.b16 %v658
      %v2311 = vunpack.c.l.b16 %v659
      %v2312 = vunpack.c.h.b16 %v659
      %v2313 = vunpack.c.l.b16 %v660
      %v2314 = vunpack.c.h.b16 %v660
      %v2315 = vunpack.c.l.b16 %v661
      %v2316 = vunpack.c.h.b16 %v661
      %v2317 = vunpack.c.l.b16 %v662
      %v2318 = vunpack.c.h.b16 %v662
      %v2319 = vunpack.c.l.b16 %v663
      %v2320 = vunpack.c.h.b16 %v663
      %v2321 = vunpack.c.l.b16 %v664
      %v2322 = vunpack.c.h.b16 %v664
      %v2323 = vunpack.c.l.b16 %v665
      %v2324 = vunpack.c.h.b16 %v665
      %v2325 = vunpack.c.l.b16 %v666
      %v2326 = vunpack.c.h.b16 %v666
      %v2327 = vunpack.c.l.b16 %v667
      %v2328 = vunpack.c.h.b16 %v667
      %v2329 = vunpack.c.l.b16 %v668
      %v2330 = vunpack.c.h.b16 %v668
      %v2331 = vunpack.c.l.b16 %v669
      %v2332 = vunpack.c.h.b16 %v669
      %v2333 = vunpack.c.l.b16 %v670
      %v2334 = vunpack.c.h.b16 %v670
      %v2335 = vpack.c.b16 %v2215, %v2207
      %v2336 = vpack.c.b16 %v2216, %v2208
      %v2337 = vpack.c.b16 %v2217, %v2209
      %v2338 = vpack.c.b16 %v2218, %v2210
      %v2339 = vpack.c.b16 %v2219, %v2211
      %v2340 = vpack.c.b16 %v2220, %v2212
      %v2341 = vpack.c.b16 %v2221, %v2213
      %v2342 = vpack.c.b16 %v2222, %v2214
      %v2343 = vpack.c.b16 %v2231, %v2223
      %v2344 = vpack.c.b16 %v2232, %v2224
      %v2345 = vpack.c.b16 %v2233, %v2225
      %v2346 = vpack.c.b16 %v2234, %v2226
      %v2347 = vpack.c.b16 %v2235, %v2227
      %v2348 = vpack.c.b16 %v2236, %v2228
      %v2349 = vpack.c.b16 %v2237, %v2229
      %v2350 = vpack.c.b16 %v2238, %v2230
      %v2351 = vpack.c.b16 %v2247, %v2239
      %v2352 = vpack.c.b16 %v2248, %v2240
      %v2353 = vpack.c.b16 %v2249, %v2241
      %v2354 = vpack.c.b16 %v2250, %v2242
      %v2355 = vpack.c.b16 %v2251, %v2243
      %v2356 = vpack.c.b16 %v2252, %v2244
      %v2357 = vpack.c.b16 %v2253, %v2245
      %v2358 = vpack.c.b16 %v2254, %v2246
      %v2359 = vpack.c.b16 %v2263, %v2255
      %v2360 = vpack.c.b16 %v2264, %v2256
      %v2361 = vpack.c.b16 %v2265, %v2257
      %v2362 = vpack.c.b16 %v2266, %v2258
      %v2363 = vpack.c.b16 %v2267, %v2259
      %v2364 = vpack.c.b16 %v2268, %v2260
      %v2365 = vpack.c.b16 %v2269, %v2261
      %v2366 = vpack.c.b16 %v2270, %v2262
      %v2367 = vpack.c.b16 %v2279, %v2271
      %v2368 = vpack.c.b16 %v2280, %v2272
      %v2369 = vpack.c.b16 %v2281, %v2273
      %v2370 = vpack.c.b16 %v2282, %v2274
      %v2371 = vpack.c.b16 %v2283, %v2275
      %v2372 = vpack.c.b16 %v2284, %v2276
      %v2373 = vpack.c.b16 %v2285, %v2277
      %v2374 = vpack.c.b16 %v2286, %v2278
      %v2375 = vpack.c.b16 %v2295, %v2287
      %v2376 = vpack.c.b16 %v2296, %v2288
      %v2377 = vpack.c.b16 %v2297, %v2289
      %v2378 = vpack.c.b16 %v2298, %v2290
      %v2379 = vpack.c.b16 %v2299, %v2291
      %v2380 = vpack.c.b16 %v2300, %v2292
      %v2381 = vpack.c.b16 %v2301, %v2293
      %v2382 = vpack.c.b16 %v2302, %v2294
      %v2383 = vpack.c.b16 %v2311, %v2303
      %v2384 = vpack.c.b16 %v2312, %v2304
      %v2385 = vpack.c.b16 %v2313, %v2305
      %v2386 = vpack.c.b16 %v2314, %v2306
      %v2387 = vpack.c.b16 %v2315, %v2307
      %v2388 = vpack.c.b16 %v2316, %v2308
      %v2389 = vpack.c.b16 %v2317, %v2309
      %v2390 = vpack.c.b16 %v2318, %v2310
      %v2391 = vpack.c.b16 %v2327, %v2319
      %v2392 = vpack.c.b16 %v2328, %v2320
      %v2393 = vpack.c.b16 %v2329, %v2321
      %v2394 = vpack.c.b16 %v2330, %v2322
      %v2395 = vpack.c.b16 %v2331, %v2323
      %v2396 = vpack.c.b16 %v2332, %v2324
      %v2397 = vpack.c.b16 %v2333, %v2325
      %v2398 = vpack.c.b16 %v2334, %v2326
      %2463 = vmatprep.subr.bf16.mxu0 %v2336
      %2464 = vmatpush1.bf16.msra.mxu0 %v2335
      %2465 = vmatprep.subr.bf16.mxu0 %v2344
      %2466 = vmatpush1.bf16.msra.mxu0 %v2343
      %2467 = vmatprep.subr.bf16.mxu0 %v2352
      %2468 = vmatpush1.bf16.msra.mxu0 %v2351
      %2469 = vmatprep.subr.bf16.mxu0 %v2360
      %2470 = vmatpush1.bf16.msra.mxu0 %v2359
      %2471 = vmatprep.subr.bf16.mxu0 %v2368
      %2472 = vmatpush1.bf16.msra.mxu0 %v2367
      %2473 = vmatprep.subr.bf16.mxu0 %v2376
      %2474 = vmatpush1.bf16.msra.mxu0 %v2375
      %2475 = vmatprep.subr.bf16.mxu0 %v2384
      %2476 = vmatpush1.bf16.msra.mxu0 %v2383
      %2477 = vmatprep.subr.bf16.mxu0 %v2392
      %2478 = vmatpush1.bf16.msra.mxu0 %v2391
      %2479 = vmatprep.subr.bf16.mxu0 0
      %2480 = vmatpush1.bf16.msra.mxu0 0
      %2481 = vmatprep.subr.bf16.mxu0 0
      %2482 = vmatpush1.bf16.msra.mxu0 0
      %2483 = vmatprep.subr.bf16.mxu0 0
      %2484 = vmatpush1.bf16.msra.mxu0 0
      %2485 = vmatprep.subr.bf16.mxu0 0
      %2486 = vmatpush1.bf16.msra.mxu0 0
      %2487 = vmatprep.subr.bf16.mxu0 0
      %2488 = vmatpush1.bf16.msra.mxu0 0
      %2489 = vmatprep.subr.bf16.mxu0 0
      %2490 = vmatpush1.bf16.msra.mxu0 0
      %2491 = vmatprep.subr.bf16.mxu0 0
      %2492 = vmatpush1.bf16.msra.mxu0 0
      %2493 = vmatprep.subr.bf16.mxu0 0
      %2494 = vmatpush1.bf16.msra.mxu0 0
      %2495 = vmatprep.mubr.bf16.mxu0 0
      %2496 = vmatmul.mubr.bf16.gmra.mrb[0].mxu0 %v2142
      %v2497 = vpop.f32.mrb[0].mxu0
      %v2498 = vadd.f32 0.0, %v2497
      %v2499 = vpop.f32.mrb[0].mxu0
      %v2500 = vadd.f32 0.0, %v2499
      %v2501 = vpop.f32.mrb[0].mxu0
      %v2502 = vadd.f32 0.0, %v2501
      %v2503 = vpop.f32.mrb[0].mxu0
      %v2504 = vadd.f32 0.0, %v2503
      %2505 = vdwg.mxu0
      %2506 = vmatprep.subr.bf16.mxu0 %v2338
      %2507 = vmatpush1.bf16.msra.mxu0 %v2337
      %2508 = vmatprep.subr.bf16.mxu0 %v2346
      %2509 = vmatpush1.bf16.msra.mxu0 %v2345
      %2510 = vmatprep.subr.bf16.mxu0 %v2354
      %2511 = vmatpush1.bf16.msra.mxu0 %v2353
      %2512 = vmatprep.subr.bf16.mxu0 %v2362
      %2513 = vmatpush1.bf16.msra.mxu0 %v2361
      %2514 = vmatprep.subr.bf16.mxu0 %v2370
      %2515 = vmatpush1.bf16.msra.mxu0 %v2369
      %2516 = vmatprep.subr.bf16.mxu0 %v2378
      %2517 = vmatpush1.bf16.msra.mxu0 %v2377
      %2518 = vmatprep.subr.bf16.mxu0 %v2386
      %2519 = vmatpush1.bf16.msra.mxu0 %v2385
      %2520 = vmatprep.subr.bf16.mxu0 %v2394
      %2521 = vmatpush1.bf16.msra.mxu0 %v2393
      %2522 = vmatprep.subr.bf16.mxu0 0
      %2523 = vmatpush1.bf16.msra.mxu0 0
      %2524 = vmatprep.subr.bf16.mxu0 0
      %2525 = vmatpush1.bf16.msra.mxu0 0
      %2526 = vmatprep.subr.bf16.mxu0 0
      %2527 = vmatpush1.bf16.msra.mxu0 0
      %2528 = vmatprep.subr.bf16.mxu0 0
      %2529 = vmatpush1.bf16.msra.mxu0 0
      %2530 = vmatprep.subr.bf16.mxu0 0
      %2531 = vmatpush1.bf16.msra.mxu0 0
      %2532 = vmatprep.subr.bf16.mxu0 0
      %2533 = vmatpush1.bf16.msra.mxu0 0
      %2534 = vmatprep.subr.bf16.mxu0 0
      %2535 = vmatpush1.bf16.msra.mxu0 0
      %2536 = vmatprep.subr.bf16.mxu0 0
      %2537 = vmatpush1.bf16.msra.mxu0 0
      %2538 = vmatprep.mubr.bf16.mxu0 0
      %2539 = vmatmul.mubr.bf16.gmra.mrb[0].mxu0 %v2142
      %v2540 = vpop.f32.mrb[0].mxu0
      %v2541 = vadd.f32 0.0, %v2540
      %v2542 = vpop.f32.mrb[0].mxu0
      %v2543 = vadd.f32 0.0, %v2542
      %v2544 = vpop.f32.mrb[0].mxu0
      %v2545 = vadd.f32 0.0, %v2544
      %v2546 = vpop.f32.mrb[0].mxu0
      %v2547 = vadd.f32 0.0, %v2546
      %2548 = vdwg.mxu0
      %2549 = vmatprep.subr.bf16.mxu0 %v2340
      %2550 = vmatpush1.bf16.msra.mxu0 %v2339
      %2551 = vmatprep.subr.bf16.mxu0 %v2348
      %2552 = vmatpush1.bf16.msra.mxu0 %v2347
      %2553 = vmatprep.subr.bf16.mxu0 %v2356
      %2554 = vmatpush1.bf16.msra.mxu0 %v2355
      %2555 = vmatprep.subr.bf16.mxu0 %v2364
      %2556 = vmatpush1.bf16.msra.mxu0 %v2363
      %2557 = vmatprep.subr.bf16.mxu0 %v2372
      %2558 = vmatpush1.bf16.msra.mxu0 %v2371
      %2559 = vmatprep.subr.bf16.mxu0 %v2380
      %2560 = vmatpush1.bf16.msra.mxu0 %v2379
      %2561 = vmatprep.subr.bf16.mxu0 %v2388
      %2562 = vmatpush1.bf16.msra.mxu0 %v2387
      %2563 = vmatprep.subr.bf16.mxu0 %v2396
      %2564 = vmatpush1.bf16.msra.mxu0 %v2395
      %2565 = vmatprep.subr.bf16.mxu0 0
      %2566 = vmatpush1.bf16.msra.mxu0 0
      %2567 = vmatprep.subr.bf16.mxu0 0
      %2568 = vmatpush1.bf16.msra.mxu0 0
      %2569 = vmatprep.subr.bf16.mxu0 0
      %2570 = vmatpush1.bf16.msra.mxu0 0
      %2571 = vmatprep.subr.bf16.mxu0 0
      %2572 = vmatpush1.bf16.msra.mxu0 0
      %2573 = vmatprep.subr.bf16.mxu0 0
      %2574 = vmatpush1.bf16.msra.mxu0 0
      %2575 = vmatprep.subr.bf16.mxu0 0
      %2576 = vmatpush1.bf16.msra.mxu0 0
      %2577 = vmatprep.subr.bf16.mxu0 0
      %2578 = vmatpush1.bf16.msra.mxu0 0
      %2579 = vmatprep.subr.bf16.mxu0 0
      %2580 = vmatpush1.bf16.msra.mxu0 0
      %2581 = vmatprep.mubr.bf16.mxu0 0
      %2582 = vmatmul.mubr.bf16.gmra.mrb[0].mxu0 %v2142
      %v2583 = vpop.f32.mrb[0].mxu0
      %v2584 = vadd.f32 0.0, %v2583
      %v2585 = vpop.f32.mrb[0].mxu0
      %v2586 = vadd.f32 0.0, %v2585
      %v2587 = vpop.f32.mrb[0].mxu0
      %v2588 = vadd.f32 0.0, %v2587
      %v2589 = vpop.f32.mrb[0].mxu0
      %v2590 = vadd.f32 0.0, %v2589
      %2591 = vdwg.mxu0
      %2592 = vmatprep.subr.bf16.mxu0 %v2342
      %2593 = vmatpush1.bf16.msra.mxu0 %v2341
      %2594 = vmatprep.subr.bf16.mxu0 %v2350
      %2595 = vmatpush1.bf16.msra.mxu0 %v2349
      %2596 = vmatprep.subr.bf16.mxu0 %v2358
      %2597 = vmatpush1.bf16.msra.mxu0 %v2357
      %2598 = vmatprep.subr.bf16.mxu0 %v2366
      %2599 = vmatpush1.bf16.msra.mxu0 %v2365
      %2600 = vmatprep.subr.bf16.mxu0 %v2374
      %2601 = vmatpush1.bf16.msra.mxu0 %v2373
      %2602 = vmatprep.subr.bf16.mxu0 %v2382
      %2603 = vmatpush1.bf16.msra.mxu0 %v2381
      %2604 = vmatprep.subr.bf16.mxu0 %v2390
      %2605 = vmatpush1.bf16.msra.mxu0 %v2389
      %2606 = vmatprep.subr.bf16.mxu0 %v2398
      %2607 = vmatpush1.bf16.msra.mxu0 %v2397
      %2608 = vmatprep.subr.bf16.mxu0 0
      %2609 = vmatpush1.bf16.msra.mxu0 0
      %2610 = vmatprep.subr.bf16.mxu0 0
      %2611 = vmatpush1.bf16.msra.mxu0 0
      %2612 = vmatprep.subr.bf16.mxu0 0
      %2613 = vmatpush1.bf16.msra.mxu0 0
      %2614 = vmatprep.subr.bf16.mxu0 0
      %2615 = vmatpush1.bf16.msra.mxu0 0
      %2616 = vmatprep.subr.bf16.mxu0 0
      %2617 = vmatpush1.bf16.msra.mxu0 0
      %2618 = vmatprep.subr.bf16.mxu0 0
      %2619 = vmatpush1.bf16.msra.mxu0 0
      %2620 = vmatprep.subr.bf16.mxu0 0
      %2621 = vmatpush1.bf16.msra.mxu0 0
      %2622 = vmatprep.subr.bf16.mxu0 0
      %2623 = vmatpush1.bf16.msra.mxu0 0
      %2624 = vmatprep.mubr.bf16.mxu0 0
      %2625 = vmatmul.mubr.bf16.gmra.mrb[0].mxu0 %v2142
      %v2626 = vpop.f32.mrb[0].mxu0
      %v2627 = vadd.f32 0.0, %v2626
      %v2628 = vpop.f32.mrb[0].mxu0
      %v2629 = vadd.f32 0.0, %v2628
      %v2630 = vpop.f32.mrb[0].mxu0
      %v2631 = vadd.f32 0.0, %v2630
      %v2632 = vpop.f32.mrb[0].mxu0
      %v2633 = vadd.f32 0.0, %v2632
      %2634 = vdwg.mxu0
      %v2635 = vmul.f32 %v2498, %v1783
      %v2636 = vmul.f32 %v2500, %v1785
      %v2637 = vmul.f32 %v2541, %v1826
      %v2638 = vmul.f32 %v2543, %v1828
      %v2639 = vmul.f32 %v2584, %v1869
      %v2640 = vmul.f32 %v2586, %v1871
      %v2641 = vmul.f32 %v2627, %v1912
      %v2642 = vmul.f32 %v2629, %v1914
      %v2643 = vmul.f32 %v2502, %v1787
      %v2644 = vmul.f32 %v2504, %v1789
      %v2645 = vmul.f32 %v2545, %v1830
      %v2646 = vmul.f32 %v2547, %v1832
      %v2647 = vmul.f32 %v2588, %v1873
      %v2648 = vmul.f32 %v2590, %v1875
      %v2649 = vmul.f32 %v2631, %v1916
      %v2650 = vmul.f32 %v2633, %v1918
      %v2651 = vpack.c.bf16 %v2643, %v2635
      %v2652 = vpack.c.bf16 %v2644, %v2636
      %v2653 = vpack.c.bf16 %v2645, %v2637
      %v2654 = vpack.c.bf16 %v2646, %v2638
      %v2655 = vpack.c.bf16 %v2647, %v2639
      %v2656 = vpack.c.bf16 %v2648, %v2640
      %v2657 = vpack.c.bf16 %v2649, %v2641
      %v2658 = vpack.c.bf16 %v2650, %v2642
      %v2787 = vunpack.c.l.b16 %v671
      %v2788 = vunpack.c.l.b16 %v672
      %v2789 = vunpack.c.l.b16 %v673
      %v2790 = vunpack.c.l.b16 %v674
      %v2791 = vunpack.c.l.b16 %v675
      %v2792 = vunpack.c.l.b16 %v676
      %v2793 = vunpack.c.l.b16 %v677
      %v2794 = vunpack.c.l.b16 %v678
      %v2795 = vunpack.c.l.b16 %v679
      %v2796 = vunpack.c.l.b16 %v680
      %v2797 = vunpack.c.l.b16 %v681
      %v2798 = vunpack.c.l.b16 %v682
      %v2799 = vunpack.c.l.b16 %v683
      %v2800 = vunpack.c.l.b16 %v684
      %v2801 = vunpack.c.l.b16 %v685
      %v2802 = vunpack.c.l.b16 %v686
      %v2803 = vunpack.c.l.b16 %v687
      %v2804 = vunpack.c.l.b16 %v688
      %v2805 = vunpack.c.l.b16 %v689
      %v2806 = vunpack.c.l.b16 %v690
      %v2807 = vunpack.c.l.b16 %v691
      %v2808 = vunpack.c.l.b16 %v692
      %v2809 = vunpack.c.l.b16 %v693
      %v2810 = vunpack.c.l.b16 %v694
      %v2811 = vunpack.c.l.b16 %v695
      %v2812 = vunpack.c.l.b16 %v696
      %v2813 = vunpack.c.l.b16 %v697
      %v2814 = vunpack.c.l.b16 %v698
      %v2815 = vunpack.c.l.b16 %v699
      %v2816 = vunpack.c.l.b16 %v700
      %v2817 = vunpack.c.l.b16 %v701
      %v2818 = vunpack.c.l.b16 %v702
      %v2819 = vunpack.c.l.b16 %v703
      %v2820 = vunpack.c.l.b16 %v704
      %v2821 = vunpack.c.l.b16 %v705
      %v2822 = vunpack.c.l.b16 %v706
      %v2823 = vunpack.c.l.b16 %v707
      %v2824 = vunpack.c.l.b16 %v708
      %v2825 = vunpack.c.l.b16 %v709
      %v2826 = vunpack.c.l.b16 %v710
      %v2827 = vunpack.c.l.b16 %v711
      %v2828 = vunpack.c.l.b16 %v712
      %v2829 = vunpack.c.l.b16 %v713
      %v2830 = vunpack.c.l.b16 %v714
      %v2831 = vunpack.c.l.b16 %v715
      %v2832 = vunpack.c.l.b16 %v716
      %v2833 = vunpack.c.l.b16 %v717
      %v2834 = vunpack.c.l.b16 %v718
      %v2835 = vunpack.c.l.b16 %v719
      %v2836 = vunpack.c.l.b16 %v720
      %v2837 = vunpack.c.l.b16 %v721
      %v2838 = vunpack.c.l.b16 %v722
      %v2839 = vunpack.c.l.b16 %v723
      %v2840 = vunpack.c.l.b16 %v724
      %v2841 = vunpack.c.l.b16 %v725
      %v2842 = vunpack.c.l.b16 %v726
      %v2843 = vunpack.c.l.b16 %v727
      %v2844 = vunpack.c.l.b16 %v728
      %v2845 = vunpack.c.l.b16 %v729
      %v2846 = vunpack.c.l.b16 %v730
      %v2847 = vunpack.c.l.b16 %v731
      %v2848 = vunpack.c.l.b16 %v732
      %v2849 = vunpack.c.l.b16 %v733
      %v2850 = vunpack.c.l.b16 %v734
      %v2851 = vunpack.c.l.b16 %v735
      %v2852 = vunpack.c.l.b16 %v736
      %v2853 = vunpack.c.l.b16 %v737
      %v2854 = vunpack.c.l.b16 %v738
      %v2855 = vunpack.c.l.b16 %v739
      %v2856 = vunpack.c.l.b16 %v740
      %v2857 = vunpack.c.l.b16 %v741
      %v2858 = vunpack.c.l.b16 %v742
      %v2859 = vunpack.c.l.b16 %v743
      %v2860 = vunpack.c.l.b16 %v744
      %v2861 = vunpack.c.l.b16 %v745
      %v2862 = vunpack.c.l.b16 %v746
      %v2863 = vunpack.c.l.b16 %v747
      %v2864 = vunpack.c.l.b16 %v748
      %v2865 = vunpack.c.l.b16 %v749
      %v2866 = vunpack.c.l.b16 %v750
      %v2867 = vunpack.c.l.b16 %v751
      %v2868 = vunpack.c.l.b16 %v752
      %v2869 = vunpack.c.l.b16 %v753
      %v2870 = vunpack.c.l.b16 %v754
      %v2871 = vunpack.c.l.b16 %v755
      %v2872 = vunpack.c.l.b16 %v756
      %v2873 = vunpack.c.l.b16 %v757
      %v2874 = vunpack.c.l.b16 %v758
      %v2875 = vunpack.c.l.b16 %v759
      %v2876 = vunpack.c.l.b16 %v760
      %v2877 = vunpack.c.l.b16 %v761
      %v2878 = vunpack.c.l.b16 %v762
      %v2879 = vunpack.c.l.b16 %v763
      %v2880 = vunpack.c.l.b16 %v764
      %v2881 = vunpack.c.l.b16 %v765
      %v2882 = vunpack.c.l.b16 %v766
      %v2883 = vunpack.c.l.b16 %v767
      %v2884 = vunpack.c.l.b16 %v768
      %v2885 = vunpack.c.l.b16 %v769
      %v2886 = vunpack.c.l.b16 %v770
      %v2887 = vunpack.c.l.b16 %v771
      %v2888 = vunpack.c.l.b16 %v772
      %v2889 = vunpack.c.l.b16 %v773
      %v2890 = vunpack.c.l.b16 %v774
      %v2891 = vunpack.c.l.b16 %v775
      %v2892 = vunpack.c.l.b16 %v776
      %v2893 = vunpack.c.l.b16 %v777
      %v2894 = vunpack.c.l.b16 %v778
      %v2895 = vunpack.c.l.b16 %v779
      %v2896 = vunpack.c.l.b16 %v780
      %v2897 = vunpack.c.l.b16 %v781
      %v2898 = vunpack.c.l.b16 %v782
      %v2899 = vunpack.c.l.b16 %v783
      %v2900 = vunpack.c.l.b16 %v784
      %v2901 = vunpack.c.l.b16 %v785
      %v2902 = vunpack.c.l.b16 %v786
      %v2903 = vunpack.c.l.b16 %v787
      %v2904 = vunpack.c.l.b16 %v788
      %v2905 = vunpack.c.l.b16 %v789
      %v2906 = vunpack.c.l.b16 %v790
      %v2907 = vunpack.c.l.b16 %v791
      %v2908 = vunpack.c.l.b16 %v792
      %v2909 = vunpack.c.l.b16 %v793
      %v2910 = vunpack.c.l.b16 %v794
      %v2911 = vunpack.c.l.b16 %v795
      %v2912 = vunpack.c.l.b16 %v796
      %v2913 = vunpack.c.l.b16 %v797
      %v2914 = vunpack.c.l.b16 %v798
      %v2915 = vpack.c.b16 %v2788, %v2787
      %v2916 = vpack.c.b16 %v2790, %v2789
      %v2917 = vpack.c.b16 %v2792, %v2791
      %v2918 = vpack.c.b16 %v2794, %v2793
      %v2919 = vpack.c.b16 %v2796, %v2795
      %v2920 = vpack.c.b16 %v2798, %v2797
      %v2921 = vpack.c.b16 %v2800, %v2799
      %v2922 = vpack.c.b16 %v2802, %v2801
      %v2923 = vpack.c.b16 %v2804, %v2803
      %v2924 = vpack.c.b16 %v2806, %v2805
      %v2925 = vpack.c.b16 %v2808, %v2807
      %v2926 = vpack.c.b16 %v2810, %v2809
      %v2927 = vpack.c.b16 %v2812, %v2811
      %v2928 = vpack.c.b16 %v2814, %v2813
      %v2929 = vpack.c.b16 %v2816, %v2815
      %v2930 = vpack.c.b16 %v2818, %v2817
      %v2931 = vpack.c.b16 %v2820, %v2819
      %v2932 = vpack.c.b16 %v2822, %v2821
      %v2933 = vpack.c.b16 %v2824, %v2823
      %v2934 = vpack.c.b16 %v2826, %v2825
      %v2935 = vpack.c.b16 %v2828, %v2827
      %v2936 = vpack.c.b16 %v2830, %v2829
      %v2937 = vpack.c.b16 %v2832, %v2831
      %v2938 = vpack.c.b16 %v2834, %v2833
      %v2939 = vpack.c.b16 %v2836, %v2835
      %v2940 = vpack.c.b16 %v2838, %v2837
      %v2941 = vpack.c.b16 %v2840, %v2839
      %v2942 = vpack.c.b16 %v2842, %v2841
      %v2943 = vpack.c.b16 %v2844, %v2843
      %v2944 = vpack.c.b16 %v2846, %v2845
      %v2945 = vpack.c.b16 %v2848, %v2847
      %v2946 = vpack.c.b16 %v2850, %v2849
      %v2947 = vpack.c.b16 %v2852, %v2851
      %v2948 = vpack.c.b16 %v2854, %v2853
      %v2949 = vpack.c.b16 %v2856, %v2855
      %v2950 = vpack.c.b16 %v2858, %v2857
      %v2951 = vpack.c.b16 %v2860, %v2859
      %v2952 = vpack.c.b16 %v2862, %v2861
      %v2953 = vpack.c.b16 %v2864, %v2863
      %v2954 = vpack.c.b16 %v2866, %v2865
      %v2955 = vpack.c.b16 %v2868, %v2867
      %v2956 = vpack.c.b16 %v2870, %v2869
      %v2957 = vpack.c.b16 %v2872, %v2871
      %v2958 = vpack.c.b16 %v2874, %v2873
      %v2959 = vpack.c.b16 %v2876, %v2875
      %v2960 = vpack.c.b16 %v2878, %v2877
      %v2961 = vpack.c.b16 %v2880, %v2879
      %v2962 = vpack.c.b16 %v2882, %v2881
      %v2963 = vpack.c.b16 %v2884, %v2883
      %v2964 = vpack.c.b16 %v2886, %v2885
      %v2965 = vpack.c.b16 %v2888, %v2887
      %v2966 = vpack.c.b16 %v2890, %v2889
      %v2967 = vpack.c.b16 %v2892, %v2891
      %v2968 = vpack.c.b16 %v2894, %v2893
      %v2969 = vpack.c.b16 %v2896, %v2895
      %v2970 = vpack.c.b16 %v2898, %v2897
      %v2971 = vpack.c.b16 %v2900, %v2899
      %v2972 = vpack.c.b16 %v2902, %v2901
      %v2973 = vpack.c.b16 %v2904, %v2903
      %v2974 = vpack.c.b16 %v2906, %v2905
      %v2975 = vpack.c.b16 %v2908, %v2907
      %v2976 = vpack.c.b16 %v2910, %v2909
      %v2977 = vpack.c.b16 %v2912, %v2911
      %v2978 = vpack.c.b16 %v2914, %v2913
      %3043 = vmatprep.subr.bf16.mxu0 0
      %3044 = vmatpush1.bf16.msra.mxu0 %v2915
      %3045 = vmatprep.subr.bf16.mxu0 0
      %3046 = vmatpush1.bf16.msra.mxu0 %v2916
      %3047 = vmatprep.subr.bf16.mxu0 0
      %3048 = vmatpush1.bf16.msra.mxu0 %v2917
      %3049 = vmatprep.subr.bf16.mxu0 0
      %3050 = vmatpush1.bf16.msra.mxu0 %v2918
      %3051 = vmatprep.subr.bf16.mxu0 0
      %3052 = vmatpush1.bf16.msra.mxu0 %v2919
      %3053 = vmatprep.subr.bf16.mxu0 0
      %3054 = vmatpush1.bf16.msra.mxu0 %v2920
      %3055 = vmatprep.subr.bf16.mxu0 0
      %3056 = vmatpush1.bf16.msra.mxu0 %v2921
      %3057 = vmatprep.subr.bf16.mxu0 0
      %3058 = vmatpush1.bf16.msra.mxu0 %v2922
      %3059 = vmatprep.subr.bf16.mxu0 0
      %3060 = vmatpush1.bf16.msra.mxu0 %v2923
      %3061 = vmatprep.subr.bf16.mxu0 0
      %3062 = vmatpush1.bf16.msra.mxu0 %v2924
      %3063 = vmatprep.subr.bf16.mxu0 0
      %3064 = vmatpush1.bf16.msra.mxu0 %v2925
      %3065 = vmatprep.subr.bf16.mxu0 0
      %3066 = vmatpush1.bf16.msra.mxu0 %v2926
      %3067 = vmatprep.subr.bf16.mxu0 0
      %3068 = vmatpush1.bf16.msra.mxu0 %v2927
      %3069 = vmatprep.subr.bf16.mxu0 0
      %3070 = vmatpush1.bf16.msra.mxu0 %v2928
      %3071 = vmatprep.subr.bf16.mxu0 0
      %3072 = vmatpush1.bf16.msra.mxu0 %v2929
      %3073 = vmatprep.subr.bf16.mxu0 0
      %3074 = vmatpush1.bf16.msra.mxu0 %v2930
      %3075 = vmatprep.mubr.bf16.mxu0 %v2652
      %3076 = vmatmul.mubr.bf16.gmra.mrb[0].mxu0 %v2651
      %v3077 = vpop.f32.mrb[0].mxu0
      %v3078 = vadd.f32 0.0, %v3077
      %v3079 = vpop.f32.mrb[0].mxu0
      %v3080 = vpop.f32.mrb[0].mxu0
      %v3081 = vadd.f32 0.0, %v3080
      %v3082 = vpop.f32.mrb[0].mxu0
      %3083 = vdwg.mxu0
      %3084 = vmatprep.subr.bf16.mxu0 0
      %3085 = vmatpush1.bf16.msra.mxu0 %v2931
      %3086 = vmatprep.subr.bf16.mxu0 0
      %3087 = vmatpush1.bf16.msra.mxu0 %v2932
      %3088 = vmatprep.subr.bf16.mxu0 0
      %3089 = vmatpush1.bf16.msra.mxu0 %v2933
      %3090 = vmatprep.subr.bf16.mxu0 0
      %3091 = vmatpush1.bf16.msra.mxu0 %v2934
      %3092 = vmatprep.subr.bf16.mxu0 0
      %3093 = vmatpush1.bf16.msra.mxu0 %v2935
      %3094 = vmatprep.subr.bf16.mxu0 0
      %3095 = vmatpush1.bf16.msra.mxu0 %v2936
      %3096 = vmatprep.subr.bf16.mxu0 0
      %3097 = vmatpush1.bf16.msra.mxu0 %v2937
      %3098 = vmatprep.subr.bf16.mxu0 0
      %3099 = vmatpush1.bf16.msra.mxu0 %v2938
      %3100 = vmatprep.subr.bf16.mxu0 0
      %3101 = vmatpush1.bf16.msra.mxu0 %v2939
      %3102 = vmatprep.subr.bf16.mxu0 0
      %3103 = vmatpush1.bf16.msra.mxu0 %v2940
      %3104 = vmatprep.subr.bf16.mxu0 0
      %3105 = vmatpush1.bf16.msra.mxu0 %v2941
      %3106 = vmatprep.subr.bf16.mxu0 0
      %3107 = vmatpush1.bf16.msra.mxu0 %v2942
      %3108 = vmatprep.subr.bf16.mxu0 0
      %3109 = vmatpush1.bf16.msra.mxu0 %v2943
      %3110 = vmatprep.subr.bf16.mxu0 0
      %3111 = vmatpush1.bf16.msra.mxu0 %v2944
      %3112 = vmatprep.subr.bf16.mxu0 0
      %3113 = vmatpush1.bf16.msra.mxu0 %v2945
      %3114 = vmatprep.subr.bf16.mxu0 0
      %3115 = vmatpush1.bf16.msra.mxu0 %v2946
      %3116 = vmatprep.mubr.bf16.mxu0 %v2654
      %3117 = vmatmul.mubr.bf16.gmra.mrb[0].mxu0 %v2653
      %v3118 = vpop.f32.mrb[0].mxu0
      %v3119 = vadd.f32 %v3078, %v3118
      %v3120 = vpop.f32.mrb[0].mxu0
      %v3121 = vpop.f32.mrb[0].mxu0
      %v3122 = vadd.f32 %v3081, %v3121
      %v3123 = vpop.f32.mrb[0].mxu0
      %3124 = vdwg.mxu0
      %3125 = vmatprep.subr.bf16.mxu0 0
      %3126 = vmatpush1.bf16.msra.mxu0 %v2947
      %3127 = vmatprep.subr.bf16.mxu0 0
      %3128 = vmatpush1.bf16.msra.mxu0 %v2948
      %3129 = vmatprep.subr.bf16.mxu0 0
      %3130 = vmatpush1.bf16.msra.mxu0 %v2949
      %3131 = vmatprep.subr.bf16.mxu0 0
      %3132 = vmatpush1.bf16.msra.mxu0 %v2950
      %3133 = vmatprep.subr.bf16.mxu0 0
      %3134 = vmatpush1.bf16.msra.mxu0 %v2951
      %3135 = vmatprep.subr.bf16.mxu0 0
      %3136 = vmatpush1.bf16.msra.mxu0 %v2952
      %3137 = vmatprep.subr.bf16.mxu0 0
      %3138 = vmatpush1.bf16.msra.mxu0 %v2953
      %3139 = vmatprep.subr.bf16.mxu0 0
      %3140 = vmatpush1.bf16.msra.mxu0 %v2954
      %3141 = vmatprep.subr.bf16.mxu0 0
      %3142 = vmatpush1.bf16.msra.mxu0 %v2955
      %3143 = vmatprep.subr.bf16.mxu0 0
      %3144 = vmatpush1.bf16.msra.mxu0 %v2956
      %3145 = vmatprep.subr.bf16.mxu0 0
      %3146 = vmatpush1.bf16.msra.mxu0 %v2957
      %3147 = vmatprep.subr.bf16.mxu0 0
      %3148 = vmatpush1.bf16.msra.mxu0 %v2958
      %3149 = vmatprep.subr.bf16.mxu0 0
      %3150 = vmatpush1.bf16.msra.mxu0 %v2959
      %3151 = vmatprep.subr.bf16.mxu0 0
      %3152 = vmatpush1.bf16.msra.mxu0 %v2960
      %3153 = vmatprep.subr.bf16.mxu0 0
      %3154 = vmatpush1.bf16.msra.mxu0 %v2961
      %3155 = vmatprep.subr.bf16.mxu0 0
      %3156 = vmatpush1.bf16.msra.mxu0 %v2962
      %3157 = vmatprep.mubr.bf16.mxu0 %v2656
      %3158 = vmatmul.mubr.bf16.gmra.mrb[0].mxu0 %v2655
      %v3159 = vpop.f32.mrb[0].mxu0
      %v3160 = vadd.f32 %v3119, %v3159
      %v3161 = vpop.f32.mrb[0].mxu0
      %v3162 = vpop.f32.mrb[0].mxu0
      %v3163 = vadd.f32 %v3122, %v3162
      %v3164 = vpop.f32.mrb[0].mxu0
      %3165 = vdwg.mxu0
      %3166 = vmatprep.subr.bf16.mxu0 0
      %3167 = vmatpush1.bf16.msra.mxu0 %v2963
      %3168 = vmatprep.subr.bf16.mxu0 0
      %3169 = vmatpush1.bf16.msra.mxu0 %v2964
      %3170 = vmatprep.subr.bf16.mxu0 0
      %3171 = vmatpush1.bf16.msra.mxu0 %v2965
      %3172 = vmatprep.subr.bf16.mxu0 0
      %3173 = vmatpush1.bf16.msra.mxu0 %v2966
      %3174 = vmatprep.subr.bf16.mxu0 0
      %3175 = vmatpush1.bf16.msra.mxu0 %v2967
      %3176 = vmatprep.subr.bf16.mxu0 0
      %3177 = vmatpush1.bf16.msra.mxu0 %v2968
      %3178 = vmatprep.subr.bf16.mxu0 0
      %3179 = vmatpush1.bf16.msra.mxu0 %v2969
      %3180 = vmatprep.subr.bf16.mxu0 0
      %3181 = vmatpush1.bf16.msra.mxu0 %v2970
      %3182 = vmatprep.subr.bf16.mxu0 0
      %3183 = vmatpush1.bf16.msra.mxu0 %v2971
      %3184 = vmatprep.subr.bf16.mxu0 0
      %3185 = vmatpush1.bf16.msra.mxu0 %v2972
      %3186 = vmatprep.subr.bf16.mxu0 0
      %3187 = vmatpush1.bf16.msra.mxu0 %v2973
      %3188 = vmatprep.subr.bf16.mxu0 0
      %3189 = vmatpush1.bf16.msra.mxu0 %v2974
      %3190 = vmatprep.subr.bf16.mxu0 0
      %3191 = vmatpush1.bf16.msra.mxu0 %v2975
      %3192 = vmatprep.subr.bf16.mxu0 0
      %3193 = vmatpush1.bf16.msra.mxu0 %v2976
      %3194 = vmatprep.subr.bf16.mxu0 0
      %3195 = vmatpush1.bf16.msra.mxu0 %v2977
      %3196 = vmatprep.subr.bf16.mxu0 0
      %3197 = vmatpush1.bf16.msra.mxu0 %v2978
      %3198 = vmatprep.mubr.bf16.mxu0 %v2658
      %3199 = vmatmul.mubr.bf16.gmra.mrb[0].mxu0 %v2657
      %v3200 = vpop.f32.mrb[0].mxu0
      %v3201 = vadd.f32 %v3160, %v3200
      %v3202 = vpop.f32.mrb[0].mxu0
      %v3203 = vpop.f32.mrb[0].mxu0
      %v3204 = vadd.f32 %v3163, %v3203
      %v3205 = vpop.f32.mrb[0].mxu0
      %3206 = vdwg.mxu0
      %v3207 = vpack.c.bf16 %v3204, %v3201
      %v3208 = vld [vmem:[%s9] sm:$0xff]
      %v3209 = vld [vmem:[%s9 + $0x8] sm:$0xff]
      %v3210 = vld [vmem:[%s9 + $0x10] sm:$0xff]
      %v3211 = vld [vmem:[%s9 + $0x18] sm:$0xff]
      %v3212 = vld [vmem:[%s9 + $0x20] sm:$0xff]
      %v3213 = vld [vmem:[%s9 + $0x28] sm:$0xff]
      %v3214 = vld [vmem:[%s9 + $0x30] sm:$0xff]
      %v3215 = vld [vmem:[%s9 + $0x38] sm:$0xff]
      %v3216 = vld [vmem:[%s9 + $0x40] sm:$0xff]
      %v3217 = vld [vmem:[%s9 + $0x48] sm:$0xff]
      %v3218 = vld [vmem:[%s9 + $0x50] sm:$0xff]
      %v3219 = vld [vmem:[%s9 + $0x58] sm:$0xff]
      %v3220 = vld [vmem:[%s9 + $0x60] sm:$0xff]
      %v3221 = vld [vmem:[%s9 + $0x68] sm:$0xff]
      %v3222 = vld [vmem:[%s9 + $0x70] sm:$0xff]
      %v3223 = vld [vmem:[%s9 + $0x78] sm:$0xff]
      %3224 = vmatprep.subr.mxu0 0.0
      %3225 = vmatpush1.msra.mxu0 %v3208
      %3226 = vmatprep.subr.mxu0 0.0
      %3227 = vmatpush1.msra.mxu0 %v3209
      %3228 = vmatprep.subr.mxu0 0.0
      %3229 = vmatpush1.msra.mxu0 %v3210
      %3230 = vmatprep.subr.mxu0 0.0
      %3231 = vmatpush1.msra.mxu0 %v3211
      %3232 = vmatprep.subr.mxu0 0.0
      %3233 = vmatpush1.msra.mxu0 %v3212
      %3234 = vmatprep.subr.mxu0 0.0
      %3235 = vmatpush1.msra.mxu0 %v3213
      %3236 = vmatprep.subr.mxu0 0.0
      %3237 = vmatpush1.msra.mxu0 %v3214
      %3238 = vmatprep.subr.mxu0 0.0
      %3239 = vmatpush1.msra.mxu0 %v3215
      %3240 = vmatprep.subr.mxu0 0.0
      %3241 = vmatpush1.msra.mxu0 %v3216
      %3242 = vmatprep.subr.mxu0 0.0
      %3243 = vmatpush1.msra.mxu0 %v3217
      %3244 = vmatprep.subr.mxu0 0.0
      %3245 = vmatpush1.msra.mxu0 %v3218
      %3246 = vmatprep.subr.mxu0 0.0
      %3247 = vmatpush1.msra.mxu0 %v3219
      %3248 = vmatprep.subr.mxu0 0.0
      %3249 = vmatpush1.msra.mxu0 %v3220
      %3250 = vmatprep.subr.mxu0 0.0
      %3251 = vmatpush1.msra.mxu0 %v3221
      %3252 = vmatprep.subr.mxu0 0.0
      %3253 = vmatpush1.msra.mxu0 %v3222
      %3254 = vmatprep.subr.mxu0 0.0
      %3255 = vmatpush1.msra.mxu0 %v3223
      %3256 = vmatprep.subr.mxu0 0.0
      %3257 = vmatpush1.msra.mxu0 0.0
      %3258 = vmatprep.subr.mxu0 0.0
      %3259 = vmatpush1.msra.mxu0 0.0
      %3260 = vmatprep.subr.mxu0 0.0
      %3261 = vmatpush1.msra.mxu0 0.0
      %3262 = vmatprep.subr.mxu0 0.0
      %3263 = vmatpush1.msra.mxu0 0.0
      %3264 = vmatprep.subr.mxu0 0.0
      %3265 = vmatpush1.msra.mxu0 0.0
      %3266 = vmatprep.subr.mxu0 0.0
      %3267 = vmatpush1.msra.mxu0 0.0
      %3268 = vmatprep.subr.mxu0 0.0
      %3269 = vmatpush1.msra.mxu0 0.0
      %3270 = vmatprep.subr.mxu0 0.0
      %3271 = vmatpush1.msra.mxu0 0.0
      %3272 = vmatprep.subr.mxu0 0.0
      %3273 = vmatpush1.msra.mxu0 0.0
      %3274 = vmatprep.subr.mxu0 0.0
      %3275 = vmatpush1.msra.mxu0 0.0
      %3276 = vmatprep.subr.mxu0 0.0
      %3277 = vmatpush1.msra.mxu0 0.0
      %3278 = vmatprep.subr.mxu0 0.0
      %3279 = vmatpush1.msra.mxu0 0.0
      %3280 = vmatprep.subr.mxu0 0.0
      %3281 = vmatpush1.msra.mxu0 0.0
      %3282 = vmatprep.subr.mxu0 0.0
      %3283 = vmatpush1.msra.mxu0 0.0
      %3284 = vmatprep.subr.mxu0 0.0
      %3285 = vmatpush1.msra.mxu0 0.0
      %3286 = vmatprep.subr.mxu0 0.0
      %3287 = vmatpush1.msra.mxu0 0.0
      %3288 = vmatprep.mubr.f32.mxu0 0.0
      %3289 = vmatmul.mubr.f32.gmra.mrb[0].mxu0 %v890
      %v3290 = vpop.f32.mrb[0].mxu0
      %v3291 = vadd.f32 0.0, %v3290
      %v3292 = vpop.f32.mrb[0].mxu0
      %3293 = vdwg.mxu0
      %vm3294 = vcmask 130048
      %v3296 = vsel %vm3294, %v606, 0
      %3298 = vmatprep.subr.bf16.mxu0 0
      %3299 = vmatpush1.bf16.msra.mxu0 %v3207
      %3300 = vmatprep.subr.bf16.mxu0 0
      %3301 = vmatpush1.bf16.msra.mxu0 0
      %3302 = vmatprep.subr.bf16.mxu0 0
      %3303 = vmatpush1.bf16.msra.mxu0 0
      %3304 = vmatprep.subr.bf16.mxu0 0
      %3305 = vmatpush1.bf16.msra.mxu0 0
      %3306 = vmatprep.subr.bf16.mxu0 0
      %3307 = vmatpush1.bf16.msra.mxu0 0
      %3308 = vmatprep.subr.bf16.mxu0 0
      %3309 = vmatpush1.bf16.msra.mxu0 0
      %3310 = vmatprep.subr.bf16.mxu0 0
      %3311 = vmatpush1.bf16.msra.mxu0 0
      %3312 = vmatprep.subr.bf16.mxu0 0
      %3313 = vmatpush1.bf16.msra.mxu0 0
      %3314 = vmatprep.subr.bf16.mxu0 0
      %3315 = vmatpush1.bf16.msra.mxu0 0
      %3316 = vmatprep.subr.bf16.mxu0 0
      %3317 = vmatpush1.bf16.msra.mxu0 0
      %3318 = vmatprep.subr.bf16.mxu0 0
      %3319 = vmatpush1.bf16.msra.mxu0 0
      %3320 = vmatprep.subr.bf16.mxu0 0
      %3321 = vmatpush1.bf16.msra.mxu0 0
      %3322 = vmatprep.subr.bf16.mxu0 0
      %3323 = vmatpush1.bf16.msra.mxu0 0
      %3324 = vmatprep.subr.bf16.mxu0 0
      %3325 = vmatpush1.bf16.msra.mxu0 0
      %3326 = vmatprep.subr.bf16.mxu0 0
      %3327 = vmatpush1.bf16.msra.mxu0 0
      %3328 = vmatprep.subr.bf16.mxu0 0
      %3329 = vmatpush1.bf16.msra.mxu0 0
      %3330 = vmatprep.mubr.bf16.mxu0 0
      %3331 = vmatmul.mubr.bf16.gmra.mrb[0].mxu0 %v3296
      %v3332 = vpop.f32.mrb[0].mxu0
      %v3333 = vadd.f32 %v3291, %v3332
      %v3334 = vpop.f32.mrb[0].mxu0
      %v3335 = vpop.f32.mrb[0].mxu0
      %v3336 = vpop.f32.mrb[0].mxu0
      %3337 = vdwg.mxu0
      %v3338 = vld [vmem:[%s10] sm:$0x1]
      %v3340 = vlaneseq
      %v3341 = vshrl.u32 %v3340, 7
      %v3342 = vsub.s32 0, %v3341
      %v3343 = vrot.slane %v3338, %v3342
      %v3345 = vadd.f32 %v3333, %v3343
      %v3346 = vld [vmem:[%s11] sm:$0x1]
      %v3348 = vlaneseq
      %v3349 = vshrl.u32 %v3348, 7
      %v3350 = vsub.s32 0, %v3349
      %v3351 = vrot.slane %v3346, %v3350
      %v3353 = vmul.f32 %v3345, %v3351
      %v3354 = vld [vmem:[%s12] sm:$0x1]
      %v3356 = vlaneseq
      %v3357 = vshrl.u32 %v3356, 7
      %v3358 = vsub.s32 0, %v3357
      %v3359 = vrot.slane %v3354, %v3358
      %v3361 = vadd.f32 %v3353, %v3359
      %v3362 = vmul.f32 %v3361, 0.5
      %v3363 = vmul.f32 %v3361, 0.70710677
      %v3364 = verf.f32.pop %v3363
      %v3365 = vadd.f32 %v3364, 1.0
      %v3366 = vmul.f32 %v3362, %v3365
      %v3367 = vadd.f32 %v890, %v3366
      %v3368 = vpack.c.bf16 %v3367, %v3367
      %v3370 = vsel %vm2097, %v3368, 0
      %3372 = vmatprep.subr.bf16.mxu0 0
      %3373 = vmatpush1.bf16.msra.mxu0 %v3370
      %3374 = vmatprep.subr.bf16.mxu0 0
      %3375 = vmatpush1.bf16.msra.mxu0 0
      %3376 = vmatprep.subr.bf16.mxu0 0
      %3377 = vmatpush1.bf16.msra.mxu0 0
      %3378 = vmatprep.subr.bf16.mxu0 0
      %3379 = vmatpush1.bf16.msra.mxu0 0
      %3380 = vmatprep.subr.bf16.mxu0 0
      %3381 = vmatpush1.bf16.msra.mxu0 0
      %3382 = vmatprep.subr.bf16.mxu0 0
      %3383 = vmatpush1.bf16.msra.mxu0 0
      %3384 = vmatprep.subr.bf16.mxu0 0
      %3385 = vmatpush1.bf16.msra.mxu0 0
      %3386 = vmatprep.subr.bf16.mxu0 0
      %3387 = vmatpush1.bf16.msra.mxu0 0
      %3388 = vmatprep.subr.bf16.mxu0 0
      %3389 = vmatpush1.bf16.msra.mxu0 0
      %3390 = vmatprep.subr.bf16.mxu0 0
      %3391 = vmatpush1.bf16.msra.mxu0 0
      %3392 = vmatprep.subr.bf16.mxu0 0
      %3393 = vmatpush1.bf16.msra.mxu0 0
      %3394 = vmatprep.subr.bf16.mxu0 0
      %3395 = vmatpush1.bf16.msra.mxu0 0
      %3396 = vmatprep.subr.bf16.mxu0 0
      %3397 = vmatpush1.bf16.msra.mxu0 0
      %3398 = vmatprep.subr.bf16.mxu0 0
      %3399 = vmatpush1.bf16.msra.mxu0 0
      %3400 = vmatprep.subr.bf16.mxu0 0
      %3401 = vmatpush1.bf16.msra.mxu0 0
      %3402 = vmatprep.subr.bf16.mxu0 0
      %3403 = vmatpush1.bf16.msra.mxu0 0
      %3404 = vmatprep.mubr.bf16.mxu0 0
      %3405 = vmatmul.mubr.bf16.gmra.mrb[0].mxu0 %v2095
      %v3406 = vpop.f32.mrb[0].mxu0
      %v3407 = vadd.f32 0.0, %v3406
      %v3408 = vpop.f32.mrb[0].mxu0
      %v3409 = vpop.f32.mrb[0].mxu0
      %v3410 = vadd.f32 0.0, %v3409
      %v3411 = vpop.f32.mrb[0].mxu0
      %3412 = vdwg.mxu0
      %v3413 = vpack.c.bf16 %v3410, %v3407
      %3414 = vmatprep.subr.bf16.mxu0 %v2336
      %3415 = vmatpush1.bf16.msra.mxu0 %v2335
      %3416 = vmatprep.subr.bf16.mxu0 %v2344
      %3417 = vmatpush1.bf16.msra.mxu0 %v2343
      %3418 = vmatprep.subr.bf16.mxu0 %v2352
      %3419 = vmatpush1.bf16.msra.mxu0 %v2351
      %3420 = vmatprep.subr.bf16.mxu0 %v2360
      %3421 = vmatpush1.bf16.msra.mxu0 %v2359
      %3422 = vmatprep.subr.bf16.mxu0 %v2368
      %3423 = vmatpush1.bf16.msra.mxu0 %v2367
      %3424 = vmatprep.subr.bf16.mxu0 %v2376
      %3425 = vmatpush1.bf16.msra.mxu0 %v2375
      %3426 = vmatprep.subr.bf16.mxu0 %v2384
      %3427 = vmatpush1.bf16.msra.mxu0 %v2383
      %3428 = vmatprep.subr.bf16.mxu0 %v2392
      %3429 = vmatpush1.bf16.msra.mxu0 %v2391
      %3430 = vmatprep.subr.bf16.mxu0 0
      %3431 = vmatpush1.bf16.msra.mxu0 0
      %3432 = vmatprep.subr.bf16.mxu0 0
      %3433 = vmatpush1.bf16.msra.mxu0 0
      %3434 = vmatprep.subr.bf16.mxu0 0
      %3435 = vmatpush1.bf16.msra.mxu0 0
      %3436 = vmatprep.subr.bf16.mxu0 0
      %3437 = vmatpush1.bf16.msra.mxu0 0
      %3438 = vmatprep.subr.bf16.mxu0 0
      %3439 = vmatpush1.bf16.msra.mxu0 0
      %3440 = vmatprep.subr.bf16.mxu0 0
      %3441 = vmatpush1.bf16.msra.mxu0 0
      %3442 = vmatprep.subr.bf16.mxu0 0
      %3443 = vmatpush1.bf16.msra.mxu0 0
      %3444 = vmatprep.subr.bf16.mxu0 0
      %3445 = vmatpush1.bf16.msra.mxu0 0
      %3446 = vmatprep.mubr.bf16.mxu0 0
      %3447 = vmatmul.mubr.bf16.gmra.mrb[0].mxu0 %v3413
      %v3448 = vpop.f32.mrb[0].mxu0
      %v3449 = vadd.f32 0.0, %v3448
      %v3450 = vpop.f32.mrb[0].mxu0
      %v3451 = vadd.f32 0.0, %v3450
      %v3452 = vpop.f32.mrb[0].mxu0
      %v3453 = vadd.f32 0.0, %v3452
      %v3454 = vpop.f32.mrb[0].mxu0
      %v3455 = vadd.f32 0.0, %v3454
      %3456 = vdwg.mxu0
      %3457 = vmatprep.subr.bf16.mxu0 %v2338
      %3458 = vmatpush1.bf16.msra.mxu0 %v2337
      %3459 = vmatprep.subr.bf16.mxu0 %v2346
      %3460 = vmatpush1.bf16.msra.mxu0 %v2345
      %3461 = vmatprep.subr.bf16.mxu0 %v2354
      %3462 = vmatpush1.bf16.msra.mxu0 %v2353
      %3463 = vmatprep.subr.bf16.mxu0 %v2362
      %3464 = vmatpush1.bf16.msra.mxu0 %v2361
      %3465 = vmatprep.subr.bf16.mxu0 %v2370
      %3466 = vmatpush1.bf16.msra.mxu0 %v2369
      %3467 = vmatprep.subr.bf16.mxu0 %v2378
      %3468 = vmatpush1.bf16.msra.mxu0 %v2377
      %3469 = vmatprep.subr.bf16.mxu0 %v2386
      %3470 = vmatpush1.bf16.msra.mxu0 %v2385
      %3471 = vmatprep.subr.bf16.mxu0 %v2394
      %3472 = vmatpush1.bf16.msra.mxu0 %v2393
      %3473 = vmatprep.subr.bf16.mxu0 0
      %3474 = vmatpush1.bf16.msra.mxu0 0
      %3475 = vmatprep.subr.bf16.mxu0 0
      %3476 = vmatpush1.bf16.msra.mxu0 0
      %3477 = vmatprep.subr.bf16.mxu0 0
      %3478 = vmatpush1.bf16.msra.mxu0 0
      %3479 = vmatprep.subr.bf16.mxu0 0
      %3480 = vmatpush1.bf16.msra.mxu0 0
      %3481 = vmatprep.subr.bf16.mxu0 0
      %3482 = vmatpush1.bf16.msra.mxu0 0
      %3483 = vmatprep.subr.bf16.mxu0 0
      %3484 = vmatpush1.bf16.msra.mxu0 0
      %3485 = vmatprep.subr.bf16.mxu0 0
      %3486 = vmatpush1.bf16.msra.mxu0 0
      %3487 = vmatprep.subr.bf16.mxu0 0
      %3488 = vmatpush1.bf16.msra.mxu0 0
      %3489 = vmatprep.mubr.bf16.mxu0 0
      %3490 = vmatmul.mubr.bf16.gmra.mrb[0].mxu0 %v3413
      %v3491 = vpop.f32.mrb[0].mxu0
      %v3492 = vadd.f32 0.0, %v3491
      %v3493 = vpop.f32.mrb[0].mxu0
      %v3494 = vadd.f32 0.0, %v3493
      %v3495 = vpop.f32.mrb[0].mxu0
      %v3496 = vadd.f32 0.0, %v3495
      %v3497 = vpop.f32.mrb[0].mxu0
      %v3498 = vadd.f32 0.0, %v3497
      %3499 = vdwg.mxu0
      %3500 = vmatprep.subr.bf16.mxu0 %v2340
      %3501 = vmatpush1.bf16.msra.mxu0 %v2339
      %3502 = vmatprep.subr.bf16.mxu0 %v2348
      %3503 = vmatpush1.bf16.msra.mxu0 %v2347
      %3504 = vmatprep.subr.bf16.mxu0 %v2356
      %3505 = vmatpush1.bf16.msra.mxu0 %v2355
      %3506 = vmatprep.subr.bf16.mxu0 %v2364
      %3507 = vmatpush1.bf16.msra.mxu0 %v2363
      %3508 = vmatprep.subr.bf16.mxu0 %v2372
      %3509 = vmatpush1.bf16.msra.mxu0 %v2371
      %3510 = vmatprep.subr.bf16.mxu0 %v2380
      %3511 = vmatpush1.bf16.msra.mxu0 %v2379
      %3512 = vmatprep.subr.bf16.mxu0 %v2388
      %3513 = vmatpush1.bf16.msra.mxu0 %v2387
      %3514 = vmatprep.subr.bf16.mxu0 %v2396
      %3515 = vmatpush1.bf16.msra.mxu0 %v2395
      %3516 = vmatprep.subr.bf16.mxu0 0
      %3517 = vmatpush1.bf16.msra.mxu0 0
      %3518 = vmatprep.subr.bf16.mxu0 0
      %3519 = vmatpush1.bf16.msra.mxu0 0
      %3520 = vmatprep.subr.bf16.mxu0 0
      %3521 = vmatpush1.bf16.msra.mxu0 0
      %3522 = vmatprep.subr.bf16.mxu0 0
      %3523 = vmatpush1.bf16.msra.mxu0 0
      %3524 = vmatprep.subr.bf16.mxu0 0
      %3525 = vmatpush1.bf16.msra.mxu0 0
      %3526 = vmatprep.subr.bf16.mxu0 0
      %3527 = vmatpush1.bf16.msra.mxu0 0
      %3528 = vmatprep.subr.bf16.mxu0 0
      %3529 = vmatpush1.bf16.msra.mxu0 0
      %3530 = vmatprep.subr.bf16.mxu0 0
      %3531 = vmatpush1.bf16.msra.mxu0 0
      %3532 = vmatprep.mubr.bf16.mxu0 0
      %3533 = vmatmul.mubr.bf16.gmra.mrb[0].mxu0 %v3413
      %v3534 = vpop.f32.mrb[0].mxu0
      %v3535 = vadd.f32 0.0, %v3534
      %v3536 = vpop.f32.mrb[0].mxu0
      %v3537 = vadd.f32 0.0, %v3536
      %v3538 = vpop.f32.mrb[0].mxu0
      %v3539 = vadd.f32 0.0, %v3538
      %v3540 = vpop.f32.mrb[0].mxu0
      %v3541 = vadd.f32 0.0, %v3540
      %3542 = vdwg.mxu0
      %3543 = vmatprep.subr.bf16.mxu0 %v2342
      %3544 = vmatpush1.bf16.msra.mxu0 %v2341
      %3545 = vmatprep.subr.bf16.mxu0 %v2350
      %3546 = vmatpush1.bf16.msra.mxu0 %v2349
      %3547 = vmatprep.subr.bf16.mxu0 %v2358
      %3548 = vmatpush1.bf16.msra.mxu0 %v2357
      %3549 = vmatprep.subr.bf16.mxu0 %v2366
      %3550 = vmatpush1.bf16.msra.mxu0 %v2365
      %3551 = vmatprep.subr.bf16.mxu0 %v2374
      %3552 = vmatpush1.bf16.msra.mxu0 %v2373
      %3553 = vmatprep.subr.bf16.mxu0 %v2382
      %3554 = vmatpush1.bf16.msra.mxu0 %v2381
      %3555 = vmatprep.subr.bf16.mxu0 %v2390
      %3556 = vmatpush1.bf16.msra.mxu0 %v2389
      %3557 = vmatprep.subr.bf16.mxu0 %v2398
      %3558 = vmatpush1.bf16.msra.mxu0 %v2397
      %3559 = vmatprep.subr.bf16.mxu0 0
      %3560 = vmatpush1.bf16.msra.mxu0 0
      %3561 = vmatprep.subr.bf16.mxu0 0
      %3562 = vmatpush1.bf16.msra.mxu0 0
      %3563 = vmatprep.subr.bf16.mxu0 0
      %3564 = vmatpush1.bf16.msra.mxu0 0
      %3565 = vmatprep.subr.bf16.mxu0 0
      %3566 = vmatpush1.bf16.msra.mxu0 0
      %3567 = vmatprep.subr.bf16.mxu0 0
      %3568 = vmatpush1.bf16.msra.mxu0 0
      %3569 = vmatprep.subr.bf16.mxu0 0
      %3570 = vmatpush1.bf16.msra.mxu0 0
      %3571 = vmatprep.subr.bf16.mxu0 0
      %3572 = vmatpush1.bf16.msra.mxu0 0
      %3573 = vmatprep.subr.bf16.mxu0 0
      %3574 = vmatpush1.bf16.msra.mxu0 0
      %3575 = vmatprep.mubr.bf16.mxu0 0
      %3576 = vmatmul.mubr.bf16.gmra.mrb[0].mxu0 %v3413
      %v3577 = vpop.f32.mrb[0].mxu0
      %v3578 = vadd.f32 0.0, %v3577
      %v3579 = vpop.f32.mrb[0].mxu0
      %v3580 = vadd.f32 0.0, %v3579
      %v3581 = vpop.f32.mrb[0].mxu0
      %v3582 = vadd.f32 0.0, %v3581
      %v3583 = vpop.f32.mrb[0].mxu0
      %v3584 = vadd.f32 0.0, %v3583
      %3585 = vdwg.mxu0
      %v3586 = vmul.f32 %v3449, %v1955
      %v3587 = vmul.f32 %v3451, %v1957
      %v3588 = vmul.f32 %v3492, %v1998
      %v3589 = vmul.f32 %v3494, %v2000
      %v3590 = vmul.f32 %v3535, %v2041
      %v3591 = vmul.f32 %v3537, %v2043
      %v3592 = vmul.f32 %v3578, %v2084
      %v3593 = vmul.f32 %v3580, %v2086
      %v3594 = vmul.f32 %v3453, %v1959
      %v3595 = vmul.f32 %v3455, %v1961
      %v3596 = vmul.f32 %v3496, %v2002
      %v3597 = vmul.f32 %v3498, %v2004
      %v3598 = vmul.f32 %v3539, %v2045
      %v3599 = vmul.f32 %v3541, %v2047
      %v3600 = vmul.f32 %v3582, %v2088
      %v3601 = vmul.f32 %v3584, %v2090
      %v3602 = vpack.c.bf16 %v3594, %v3586
      %v3603 = vpack.c.bf16 %v3595, %v3587
      %v3604 = vpack.c.bf16 %v3596, %v3588
      %v3605 = vpack.c.bf16 %v3597, %v3589
      %v3606 = vpack.c.bf16 %v3598, %v3590
      %v3607 = vpack.c.bf16 %v3599, %v3591
      %v3608 = vpack.c.bf16 %v3600, %v3592
      %v3609 = vpack.c.bf16 %v3601, %v3593
      %3610 = vmatprep.subr.bf16.mxu0 0
      %3611 = vmatpush1.bf16.msra.mxu0 %v2915
      %3612 = vmatprep.subr.bf16.mxu0 0
      %3613 = vmatpush1.bf16.msra.mxu0 %v2916
      %3614 = vmatprep.subr.bf16.mxu0 0
      %3615 = vmatpush1.bf16.msra.mxu0 %v2917
      %3616 = vmatprep.subr.bf16.mxu0 0
      %3617 = vmatpush1.bf16.msra.mxu0 %v2918
      %3618 = vmatprep.subr.bf16.mxu0 0
      %3619 = vmatpush1.bf16.msra.mxu0 %v2919
      %3620 = vmatprep.subr.bf16.mxu0 0
      %3621 = vmatpush1.bf16.msra.mxu0 %v2920
      %3622 = vmatprep.subr.bf16.mxu0 0
      %3623 = vmatpush1.bf16.msra.mxu0 %v2921
      %3624 = vmatprep.subr.bf16.mxu0 0
      %3625 = vmatpush1.bf16.msra.mxu0 %v2922
      %3626 = vmatprep.subr.bf16.mxu0 0
      %3627 = vmatpush1.bf16.msra.mxu0 %v2923
      %3628 = vmatprep.subr.bf16.mxu0 0
      %3629 = vmatpush1.bf16.msra.mxu0 %v2924
      %3630 = vmatprep.subr.bf16.mxu0 0
      %3631 = vmatpush1.bf16.msra.mxu0 %v2925
      %3632 = vmatprep.subr.bf16.mxu0 0
      %3633 = vmatpush1.bf16.msra.mxu0 %v2926
      %3634 = vmatprep.subr.bf16.mxu0 0
      %3635 = vmatpush1.bf16.msra.mxu0 %v2927
      %3636 = vmatprep.subr.bf16.mxu0 0
      %3637 = vmatpush1.bf16.msra.mxu0 %v2928
      %3638 = vmatprep.subr.bf16.mxu0 0
      %3639 = vmatpush1.bf16.msra.mxu0 %v2929
      %3640 = vmatprep.subr.bf16.mxu0 0
      %3641 = vmatpush1.bf16.msra.mxu0 %v2930
      %3642 = vmatprep.mubr.bf16.mxu0 %v3603
      %3643 = vmatmul.mubr.bf16.gmra.mrb[0].mxu0 %v3602
      %v3644 = vpop.f32.mrb[0].mxu0
      %v3645 = vadd.f32 0.0, %v3644
      %v3646 = vpop.f32.mrb[0].mxu0
      %v3647 = vpop.f32.mrb[0].mxu0
      %v3648 = vadd.f32 0.0, %v3647
      %v3649 = vpop.f32.mrb[0].mxu0
      %3650 = vdwg.mxu0
      %3651 = vmatprep.subr.bf16.mxu0 0
      %3652 = vmatpush1.bf16.msra.mxu0 %v2931
      %3653 = vmatprep.subr.bf16.mxu0 0
      %3654 = vmatpush1.bf16.msra.mxu0 %v2932
      %3655 = vmatprep.subr.bf16.mxu0 0
      %3656 = vmatpush1.bf16.msra.mxu0 %v2933
      %3657 = vmatprep.subr.bf16.mxu0 0
      %3658 = vmatpush1.bf16.msra.mxu0 %v2934
      %3659 = vmatprep.subr.bf16.mxu0 0
      %3660 = vmatpush1.bf16.msra.mxu0 %v2935
      %3661 = vmatprep.subr.bf16.mxu0 0
      %3662 = vmatpush1.bf16.msra.mxu0 %v2936
      %3663 = vmatprep.subr.bf16.mxu0 0
      %3664 = vmatpush1.bf16.msra.mxu0 %v2937
      %3665 = vmatprep.subr.bf16.mxu0 0
      %3666 = vmatpush1.bf16.msra.mxu0 %v2938
      %3667 = vmatprep.subr.bf16.mxu0 0
      %3668 = vmatpush1.bf16.msra.mxu0 %v2939
      %3669 = vmatprep.subr.bf16.mxu0 0
      %3670 = vmatpush1.bf16.msra.mxu0 %v2940
      %3671 = vmatprep.subr.bf16.mxu0 0
      %3672 = vmatpush1.bf16.msra.mxu0 %v2941
      %3673 = vmatprep.subr.bf16.mxu0 0
      %3674 = vmatpush1.bf16.msra.mxu0 %v2942
      %3675 = vmatprep.subr.bf16.mxu0 0
      %3676 = vmatpush1.bf16.msra.mxu0 %v2943
      %3677 = vmatprep.subr.bf16.mxu0 0
      %3678 = vmatpush1.bf16.msra.mxu0 %v2944
      %3679 = vmatprep.subr.bf16.mxu0 0
      %3680 = vmatpush1.bf16.msra.mxu0 %v2945
      %3681 = vmatprep.subr.bf16.mxu0 0
      %3682 = vmatpush1.bf16.msra.mxu0 %v2946
      %3683 = vmatprep.mubr.bf16.mxu0 %v3605
      %3684 = vmatmul.mubr.bf16.gmra.mrb[0].mxu0 %v3604
      %v3685 = vpop.f32.mrb[0].mxu0
      %v3686 = vadd.f32 %v3645, %v3685
      %v3687 = vpop.f32.mrb[0].mxu0
      %v3688 = vpop.f32.mrb[0].mxu0
      %v3689 = vadd.f32 %v3648, %v3688
      %v3690 = vpop.f32.mrb[0].mxu0
      %3691 = vdwg.mxu0
      %3692 = vmatprep.subr.bf16.mxu0 0
      %3693 = vmatpush1.bf16.msra.mxu0 %v2947
      %3694 = vmatprep.subr.bf16.mxu0 0
      %3695 = vmatpush1.bf16.msra.mxu0 %v2948
      %3696 = vmatprep.subr.bf16.mxu0 0
      %3697 = vmatpush1.bf16.msra.mxu0 %v2949
      %3698 = vmatprep.subr.bf16.mxu0 0
      %3699 = vmatpush1.bf16.msra.mxu0 %v2950
      %3700 = vmatprep.subr.bf16.mxu0 0
      %3701 = vmatpush1.bf16.msra.mxu0 %v2951
      %3702 = vmatprep.subr.bf16.mxu0 0
      %3703 = vmatpush1.bf16.msra.mxu0 %v2952
      %3704 = vmatprep.subr.bf16.mxu0 0
      %3705 = vmatpush1.bf16.msra.mxu0 %v2953
      %3706 = vmatprep.subr.bf16.mxu0 0
      %3707 = vmatpush1.bf16.msra.mxu0 %v2954
      %3708 = vmatprep.subr.bf16.mxu0 0
      %3709 = vmatpush1.bf16.msra.mxu0 %v2955
      %3710 = vmatprep.subr.bf16.mxu0 0
      %3711 = vmatpush1.bf16.msra.mxu0 %v2956
      %3712 = vmatprep.subr.bf16.mxu0 0
      %3713 = vmatpush1.bf16.msra.mxu0 %v2957
      %3714 = vmatprep.subr.bf16.mxu0 0
      %3715 = vmatpush1.bf16.msra.mxu0 %v2958
      %3716 = vmatprep.subr.bf16.mxu0 0
      %3717 = vmatpush1.bf16.msra.mxu0 %v2959
      %3718 = vmatprep.subr.bf16.mxu0 0
      %3719 = vmatpush1.bf16.msra.mxu0 %v2960
      %3720 = vmatprep.subr.bf16.mxu0 0
      %3721 = vmatpush1.bf16.msra.mxu0 %v2961
      %3722 = vmatprep.subr.bf16.mxu0 0
      %3723 = vmatpush1.bf16.msra.mxu0 %v2962
      %3724 = vmatprep.mubr.bf16.mxu0 %v3607
      %3725 = vmatmul.mubr.bf16.gmra.mrb[0].mxu0 %v3606
      %v3726 = vpop.f32.mrb[0].mxu0
      %v3727 = vadd.f32 %v3686, %v3726
      %v3728 = vpop.f32.mrb[0].mxu0
      %v3729 = vpop.f32.mrb[0].mxu0
      %v3730 = vadd.f32 %v3689, %v3729
      %v3731 = vpop.f32.mrb[0].mxu0
      %3732 = vdwg.mxu0
      %3733 = vmatprep.subr.bf16.mxu0 0
      %3734 = vmatpush1.bf16.msra.mxu0 %v2963
      %3735 = vmatprep.subr.bf16.mxu0 0
      %3736 = vmatpush1.bf16.msra.mxu0 %v2964
      %3737 = vmatprep.subr.bf16.mxu0 0
      %3738 = vmatpush1.bf16.msra.mxu0 %v2965
      %3739 = vmatprep.subr.bf16.mxu0 0
      %3740 = vmatpush1.bf16.msra.mxu0 %v2966
      %3741 = vmatprep.subr.bf16.mxu0 0
      %3742 = vmatpush1.bf16.msra.mxu0 %v2967
      %3743 = vmatprep.subr.bf16.mxu0 0
      %3744 = vmatpush1.bf16.msra.mxu0 %v2968
      %3745 = vmatprep.subr.bf16.mxu0 0
      %3746 = vmatpush1.bf16.msra.mxu0 %v2969
      %3747 = vmatprep.subr.bf16.mxu0 0
      %3748 = vmatpush1.bf16.msra.mxu0 %v2970
      %3749 = vmatprep.subr.bf16.mxu0 0
      %3750 = vmatpush1.bf16.msra.mxu0 %v2971
      %3751 = vmatprep.subr.bf16.mxu0 0
      %3752 = vmatpush1.bf16.msra.mxu0 %v2972
      %3753 = vmatprep.subr.bf16.mxu0 0
      %3754 = vmatpush1.bf16.msra.mxu0 %v2973
      %3755 = vmatprep.subr.bf16.mxu0 0
      %3756 = vmatpush1.bf16.msra.mxu0 %v2974
      %3757 = vmatprep.subr.bf16.mxu0 0
      %3758 = vmatpush1.bf16.msra.mxu0 %v2975
      %3759 = vmatprep.subr.bf16.mxu0 0
      %3760 = vmatpush1.bf16.msra.mxu0 %v2976
      %3761 = vmatprep.subr.bf16.mxu0 0
      %3762 = vmatpush1.bf16.msra.mxu0 %v2977
      %3763 = vmatprep.subr.bf16.mxu0 0
      %3764 = vmatpush1.bf16.msra.mxu0 %v2978
      %3765 = vmatprep.mubr.bf16.mxu0 %v3609
      %3766 = vmatmul.mubr.bf16.gmra.mrb[0].mxu0 %v3608
      %v3767 = vpop.f32.mrb[0].mxu0
      %v3768 = vadd.f32 %v3727, %v3767
      %v3769 = vpop.f32.mrb[0].mxu0
      %v3770 = vpop.f32.mrb[0].mxu0
      %v3771 = vadd.f32 %v3730, %v3770
      %v3772 = vpop.f32.mrb[0].mxu0
      %3773 = vdwg.mxu0
      %v3774 = vpack.c.bf16 %v3771, %v3768
      %s3775 = scalar_lea.vmem %s9, 128
      %v3776 = vld [vmem:[%s3775] sm:$0xff]
      %v3777 = vld [vmem:[%s3775 + $0x8] sm:$0xff]
      %v3778 = vld [vmem:[%s3775 + $0x10] sm:$0xff]
      %v3779 = vld [vmem:[%s3775 + $0x18] sm:$0xff]
      %v3780 = vld [vmem:[%s3775 + $0x20] sm:$0xff]
      %v3781 = vld [vmem:[%s3775 + $0x28] sm:$0xff]
      %v3782 = vld [vmem:[%s3775 + $0x30] sm:$0xff]
      %v3783 = vld [vmem:[%s3775 + $0x38] sm:$0xff]
      %v3784 = vld [vmem:[%s3775 + $0x40] sm:$0xff]
      %v3785 = vld [vmem:[%s3775 + $0x48] sm:$0xff]
      %v3786 = vld [vmem:[%s3775 + $0x50] sm:$0xff]
      %v3787 = vld [vmem:[%s3775 + $0x58] sm:$0xff]
      %v3788 = vld [vmem:[%s3775 + $0x60] sm:$0xff]
      %v3789 = vld [vmem:[%s3775 + $0x68] sm:$0xff]
      %v3790 = vld [vmem:[%s3775 + $0x70] sm:$0xff]
      %v3791 = vld [vmem:[%s3775 + $0x78] sm:$0xff]
      %3792 = vmatprep.subr.mxu0 0.0
      %3793 = vmatpush1.msra.mxu0 %v3776
      %3794 = vmatprep.subr.mxu0 0.0
      %3795 = vmatpush1.msra.mxu0 %v3777
      %3796 = vmatprep.subr.mxu0 0.0
      %3797 = vmatpush1.msra.mxu0 %v3778
      %3798 = vmatprep.subr.mxu0 0.0
      %3799 = vmatpush1.msra.mxu0 %v3779
      %3800 = vmatprep.subr.mxu0 0.0
      %3801 = vmatpush1.msra.mxu0 %v3780
      %3802 = vmatprep.subr.mxu0 0.0
      %3803 = vmatpush1.msra.mxu0 %v3781
      %3804 = vmatprep.subr.mxu0 0.0
      %3805 = vmatpush1.msra.mxu0 %v3782
      %3806 = vmatprep.subr.mxu0 0.0
      %3807 = vmatpush1.msra.mxu0 %v3783
      %3808 = vmatprep.subr.mxu0 0.0
      %3809 = vmatpush1.msra.mxu0 %v3784
      %3810 = vmatprep.subr.mxu0 0.0
      %3811 = vmatpush1.msra.mxu0 %v3785
      %3812 = vmatprep.subr.mxu0 0.0
      %3813 = vmatpush1.msra.mxu0 %v3786
      %3814 = vmatprep.subr.mxu0 0.0
      %3815 = vmatpush1.msra.mxu0 %v3787
      %3816 = vmatprep.subr.mxu0 0.0
      %3817 = vmatpush1.msra.mxu0 %v3788
      %3818 = vmatprep.subr.mxu0 0.0
      %3819 = vmatpush1.msra.mxu0 %v3789
      %3820 = vmatprep.subr.mxu0 0.0
      %3821 = vmatpush1.msra.mxu0 %v3790
      %3822 = vmatprep.subr.mxu0 0.0
      %3823 = vmatpush1.msra.mxu0 %v3791
      %3824 = vmatprep.subr.mxu0 0.0
      %3825 = vmatpush1.msra.mxu0 0.0
      %3826 = vmatprep.subr.mxu0 0.0
      %3827 = vmatpush1.msra.mxu0 0.0
      %3828 = vmatprep.subr.mxu0 0.0
      %3829 = vmatpush1.msra.mxu0 0.0
      %3830 = vmatprep.subr.mxu0 0.0
      %3831 = vmatpush1.msra.mxu0 0.0
      %3832 = vmatprep.subr.mxu0 0.0
      %3833 = vmatpush1.msra.mxu0 0.0
      %3834 = vmatprep.subr.mxu0 0.0
      %3835 = vmatpush1.msra.mxu0 0.0
      %3836 = vmatprep.subr.mxu0 0.0
      %3837 = vmatpush1.msra.mxu0 0.0
      %3838 = vmatprep.subr.mxu0 0.0
      %3839 = vmatpush1.msra.mxu0 0.0
      %3840 = vmatprep.subr.mxu0 0.0
      %3841 = vmatpush1.msra.mxu0 0.0
      %3842 = vmatprep.subr.mxu0 0.0
      %3843 = vmatpush1.msra.mxu0 0.0
      %3844 = vmatprep.subr.mxu0 0.0
      %3845 = vmatpush1.msra.mxu0 0.0
      %3846 = vmatprep.subr.mxu0 0.0
      %3847 = vmatpush1.msra.mxu0 0.0
      %3848 = vmatprep.subr.mxu0 0.0
      %3849 = vmatpush1.msra.mxu0 0.0
      %3850 = vmatprep.subr.mxu0 0.0
      %3851 = vmatpush1.msra.mxu0 0.0
      %3852 = vmatprep.subr.mxu0 0.0
      %3853 = vmatpush1.msra.mxu0 0.0
      %3854 = vmatprep.subr.mxu0 0.0
      %3855 = vmatpush1.msra.mxu0 0.0
      %3856 = vmatprep.mubr.f32.mxu0 0.0
      %3857 = vmatmul.mubr.f32.gmra.mrb[0].mxu0 %v3367
      %v3858 = vpop.f32.mrb[0].mxu0
      %v3859 = vadd.f32 0.0, %v3858
      %v3860 = vpop.f32.mrb[0].mxu0
      %3861 = vdwg.mxu0
      %3862 = vmatprep.subr.bf16.mxu0 0
      %3863 = vmatpush1.bf16.msra.mxu0 %v3774
      %3864 = vmatprep.subr.bf16.mxu0 0
      %3865 = vmatpush1.bf16.msra.mxu0 0
      %3866 = vmatprep.subr.bf16.mxu0 0
      %3867 = vmatpush1.bf16.msra.mxu0 0
      %3868 = vmatprep.subr.bf16.mxu0 0
      %3869 = vmatpush1.bf16.msra.mxu0 0
      %3870 = vmatprep.subr.bf16.mxu0 0
      %3871 = vmatpush1.bf16.msra.mxu0 0
      %3872 = vmatprep.subr.bf16.mxu0 0
      %3873 = vmatpush1.bf16.msra.mxu0 0
      %3874 = vmatprep.subr.bf16.mxu0 0
      %3875 = vmatpush1.bf16.msra.mxu0 0
      %3876 = vmatprep.subr.bf16.mxu0 0
      %3877 = vmatpush1.bf16.msra.mxu0 0
      %3878 = vmatprep.subr.bf16.mxu0 0
      %3879 = vmatpush1.bf16.msra.mxu0 0
      %3880 = vmatprep.subr.bf16.mxu0 0
      %3881 = vmatpush1.bf16.msra.mxu0 0
      %3882 = vmatprep.subr.bf16.mxu0 0
      %3883 = vmatpush1.bf16.msra.mxu0 0
      %3884 = vmatprep.subr.bf16.mxu0 0
      %3885 = vmatpush1.bf16.msra.mxu0 0
      %3886 = vmatprep.subr.bf16.mxu0 0
      %3887 = vmatpush1.bf16.msra.mxu0 0
      %3888 = vmatprep.subr.bf16.mxu0 0
      %3889 = vmatpush1.bf16.msra.mxu0 0
      %3890 = vmatprep.subr.bf16.mxu0 0
      %3891 = vmatpush1.bf16.msra.mxu0 0
      %3892 = vmatprep.subr.bf16.mxu0 0
      %3893 = vmatpush1.bf16.msra.mxu0 0
      %3894 = vmatprep.mubr.bf16.mxu0 0
      %3895 = vmatmul.mubr.bf16.gmra.mrb[0].mxu0 %v3296
      %v3896 = vpop.f32.mrb[0].mxu0
      %v3897 = vadd.f32 %v3859, %v3896
      %v3898 = vpop.f32.mrb[0].mxu0
      %v3899 = vpop.f32.mrb[0].mxu0
      %v3900 = vpop.f32.mrb[0].mxu0
      %3901 = vdwg.mxu0
      %s3902 = scalar_lea.vmem %s10, 1
      %v3903 = vld [vmem:[%s3902] sm:$0x1]
      %v3905 = vlaneseq
      %v3906 = vshrl.u32 %v3905, 7
      %v3907 = vsub.s32 0, %v3906
      %v3908 = vrot.slane %v3903, %v3907
      %v3910 = vadd.f32 %v3897, %v3908
      %s3911 = scalar_lea.vmem %s11, 1
      %v3912 = vld [vmem:[%s3911] sm:$0x1]
      %v3914 = vlaneseq
      %v3915 = vshrl.u32 %v3914, 7
      %v3916 = vsub.s32 0, %v3915
      %v3917 = vrot.slane %v3912, %v3916
      %v3919 = vmul.f32 %v3910, %v3917
      %s3920 = scalar_lea.vmem %s12, 1
      %v3921 = vld [vmem:[%s3920] sm:$0x1]
      %v3923 = vlaneseq
      %v3924 = vshrl.u32 %v3923, 7
      %v3925 = vsub.s32 0, %v3924
      %v3926 = vrot.slane %v3921, %v3925
      %v3928 = vadd.f32 %v3919, %v3926
      %v3929 = vmul.f32 %v3928, 0.5
      %v3930 = vmul.f32 %v3928, 0.70710677
      %v3931 = verf.f32.pop %v3930
      %v3932 = vadd.f32 %v3931, 1.0
      %v3933 = vmul.f32 %v3929, %v3932
      %v3934 = vadd.f32 %v3367, %v3933
      %v3935 = vld [vmem:[%s13] sm:$0xff]
      %v3936 = vld [vmem:[%s13 + $0x8] sm:$0xff]
      %v3937 = vld [vmem:[%s13 + $0x10] sm:$0xff]
      %v3938 = vld [vmem:[%s13 + $0x18] sm:$0xff]
      %v3939 = vld [vmem:[%s13 + $0x20] sm:$0xff]
      %v3940 = vld [vmem:[%s13 + $0x28] sm:$0xff]
      %v3941 = vld [vmem:[%s13 + $0x30] sm:$0xff]
      %v3942 = vld [vmem:[%s13 + $0x38] sm:$0xff]
      %v3943 = vld [vmem:[%s13 + $0x40] sm:$0xff]
      %v3944 = vld [vmem:[%s13 + $0x48] sm:$0xff]
      %v3945 = vld [vmem:[%s13 + $0x50] sm:$0xff]
      %v3946 = vld [vmem:[%s13 + $0x58] sm:$0xff]
      %v3947 = vld [vmem:[%s13 + $0x60] sm:$0xff]
      %v3948 = vld [vmem:[%s13 + $0x68] sm:$0xff]
      %v3949 = vld [vmem:[%s13 + $0x70] sm:$0xff]
      %v3950 = vld [vmem:[%s13 + $0x78] sm:$0xff]
      %v3951 = vld [vmem:[%s14] sm:$0x1]
      %v3953 = vlaneseq
      %v3954 = vshrl.u32 %v3953, 7
      %v3955 = vsub.s32 0, %v3954
      %v3956 = vrot.slane %v3951, %v3955
      %3958 = vmatprep.subr.mxu0 0.0
      %3959 = vmatpush1.msra.mxu0 %v3935
      %3960 = vmatprep.subr.mxu0 0.0
      %3961 = vmatpush1.msra.mxu0 %v3936
      %3962 = vmatprep.subr.mxu0 0.0
      %3963 = vmatpush1.msra.mxu0 %v3937
      %3964 = vmatprep.subr.mxu0 0.0
      %3965 = vmatpush1.msra.mxu0 %v3938
      %3966 = vmatprep.subr.mxu0 0.0
      %3967 = vmatpush1.msra.mxu0 %v3939
      %3968 = vmatprep.subr.mxu0 0.0
      %3969 = vmatpush1.msra.mxu0 %v3940
      %3970 = vmatprep.subr.mxu0 0.0
      %3971 = vmatpush1.msra.mxu0 %v3941
      %3972 = vmatprep.subr.mxu0 0.0
      %3973 = vmatpush1.msra.mxu0 %v3942
      %3974 = vmatprep.subr.mxu0 0.0
      %3975 = vmatpush1.msra.mxu0 %v3943
      %3976 = vmatprep.subr.mxu0 0.0
      %3977 = vmatpush1.msra.mxu0 %v3944
      %3978 = vmatprep.subr.mxu0 0.0
      %3979 = vmatpush1.msra.mxu0 %v3945
      %3980 = vmatprep.subr.mxu0 0.0
      %3981 = vmatpush1.msra.mxu0 %v3946
      %3982 = vmatprep.subr.mxu0 0.0
      %3983 = vmatpush1.msra.mxu0 %v3947
      %3984 = vmatprep.subr.mxu0 0.0
      %3985 = vmatpush1.msra.mxu0 %v3948
      %3986 = vmatprep.subr.mxu0 0.0
      %3987 = vmatpush1.msra.mxu0 %v3949
      %3988 = vmatprep.subr.mxu0 0.0
      %3989 = vmatpush1.msra.mxu0 %v3950
      %3990 = vmatprep.subr.mxu0 0.0
      %3991 = vmatpush1.msra.mxu0 0.0
      %3992 = vmatprep.subr.mxu0 0.0
      %3993 = vmatpush1.msra.mxu0 0.0
      %3994 = vmatprep.subr.mxu0 0.0
      %3995 = vmatpush1.msra.mxu0 0.0
      %3996 = vmatprep.subr.mxu0 0.0
      %3997 = vmatpush1.msra.mxu0 0.0
      %3998 = vmatprep.subr.mxu0 0.0
      %3999 = vmatpush1.msra.mxu0 0.0
      %4000 = vmatprep.subr.mxu0 0.0
      %4001 = vmatpush1.msra.mxu0 0.0
      %4002 = vmatprep.subr.mxu0 0.0
      %4003 = vmatpush1.msra.mxu0 0.0
      %4004 = vmatprep.subr.mxu0 0.0
      %4005 = vmatpush1.msra.mxu0 0.0
      %4006 = vmatprep.subr.mxu0 0.0
      %4007 = vmatpush1.msra.mxu0 0.0
      %4008 = vmatprep.subr.mxu0 0.0
      %4009 = vmatpush1.msra.mxu0 0.0
      %4010 = vmatprep.subr.mxu0 0.0
      %4011 = vmatpush1.msra.mxu0 0.0
      %4012 = vmatprep.subr.mxu0 0.0
      %4013 = vmatpush1.msra.mxu0 0.0
      %4014 = vmatprep.subr.mxu0 0.0
      %4015 = vmatpush1.msra.mxu0 0.0
      %4016 = vmatprep.subr.mxu0 0.0
      %4017 = vmatpush1.msra.mxu0 0.0
      %4018 = vmatprep.subr.mxu0 0.0
      %4019 = vmatpush1.msra.mxu0 0.0
      %4020 = vmatprep.subr.mxu0 0.0
      %4021 = vmatpush1.msra.mxu0 0.0
      %4022 = vmatprep.mubr.f32.mxu0 0.0
      %4023 = vmatmul.mubr.f32.gmra.mrb[0].mxu0 %v3934
      %v4024 = vpop.f32.mrb[0].mxu0
      %v4025 = vadd.f32 %v3956, %v4024
      %v4026 = vpop.f32.mrb[0].mxu0
      %4027 = vdwg.mxu0
      %s4028 = sld [smem:[#allocation3 + %s34]]
      %v4029 = vstv %s4028
      %vm4030 = vcmp.lt.s32.totalorder %v580, %v4029
      %v4031 = vsel %vm4030, 1, 0
      %v4032 = vcvt.s32.f32 %v4031
      %v4034 = vsel %vm2093, %v4032, 0
      %4036 = vmatprep.subr.mxu0 0.0
      %4037 = vmatpush1.msra.mxu0 %v4025
      %4038 = vmatprep.subr.mxu0 0.0
      %4039 = vmatpush1.msra.mxu0 0.0
      %4040 = vmatprep.subr.mxu0 0.0
      %4041 = vmatpush1.msra.mxu0 0.0
      %4042 = vmatprep.subr.mxu0 0.0
      %4043 = vmatpush1.msra.mxu0 0.0
      %4044 = vmatprep.subr.mxu0 0.0
      %4045 = vmatpush1.msra.mxu0 0.0
      %4046 = vmatprep.subr.mxu0 0.0
      %4047 = vmatpush1.msra.mxu0 0.0
      %4048 = vmatprep.subr.mxu0 0.0
      %4049 = vmatpush1.msra.mxu0 0.0
      %4050 = vmatprep.subr.mxu0 0.0
      %4051 = vmatpush1.msra.mxu0 0.0
      %4052 = vmatprep.subr.mxu0 0.0
      %4053 = vmatpush1.msra.mxu0 0.0
      %4054 = vmatprep.subr.mxu0 0.0
      %4055 = vmatpush1.msra.mxu0 0.0
      %4056 = vmatprep.subr.mxu0 0.0
      %4057 = vmatpush1.msra.mxu0 0.0
      %4058 = vmatprep.subr.mxu0 0.0
      %4059 = vmatpush1.msra.mxu0 0.0
      %4060 = vmatprep.subr.mxu0 0.0
      %4061 = vmatpush1.msra.mxu0 0.0
      %4062 = vmatprep.subr.mxu0 0.0
      %4063 = vmatpush1.msra.mxu0 0.0
      %4064 = vmatprep.subr.mxu0 0.0
      %4065 = vmatpush1.msra.mxu0 0.0
      %4066 = vmatprep.subr.mxu0 0.0
      %4067 = vmatpush1.msra.mxu0 0.0
      %4068 = vmatprep.subr.mxu0 0.0
      %4069 = vmatpush1.msra.mxu0 0.0
      %4070 = vmatprep.subr.mxu0 0.0
      %4071 = vmatpush1.msra.mxu0 0.0
      %4072 = vmatprep.subr.mxu0 0.0
      %4073 = vmatpush1.msra.mxu0 0.0
      %4074 = vmatprep.subr.mxu0 0.0
      %4075 = vmatpush1.msra.mxu0 0.0
      %4076 = vmatprep.subr.mxu0 0.0
      %4077 = vmatpush1.msra.mxu0 0.0
      %4078 = vmatprep.subr.mxu0 0.0
      %4079 = vmatpush1.msra.mxu0 0.0
      %4080 = vmatprep.subr.mxu0 0.0
      %4081 = vmatpush1.msra.mxu0 0.0
      %4082 = vmatprep.subr.mxu0 0.0
      %4083 = vmatpush1.msra.mxu0 0.0
      %4084 = vmatprep.subr.mxu0 0.0
      %4085 = vmatpush1.msra.mxu0 0.0
      %4086 = vmatprep.subr.mxu0 0.0
      %4087 = vmatpush1.msra.mxu0 0.0
      %4088 = vmatprep.subr.mxu0 0.0
      %4089 = vmatpush1.msra.mxu0 0.0
      %4090 = vmatprep.subr.mxu0 0.0
      %4091 = vmatpush1.msra.mxu0 0.0
      %4092 = vmatprep.subr.mxu0 0.0
      %4093 = vmatpush1.msra.mxu0 0.0
      %4094 = vmatprep.subr.mxu0 0.0
      %4095 = vmatpush1.msra.mxu0 0.0
      %4096 = vmatprep.subr.mxu0 0.0
      %4097 = vmatpush1.msra.mxu0 0.0
      %4098 = vmatprep.subr.mxu0 0.0
      %4099 = vmatpush1.msra.mxu0 0.0
      %4100 = vmatprep.mubr.f32.mxu0 0.0
      %4101 = vmatmul.mubr.f32.gmra.mrb[0].mxu0 %v4034
      %v4102 = vpop.f32.mrb[0].mxu0
      %v4103 = vadd.f32 0.0, %v4102
      %v4104 = vpop.f32.mrb[0].mxu0
      %4105 = vdwg.mxu0
      %4106 = vst [vmem:[%s577] sm:$0xff] %v4103
      %p4107 = scmp.lt.s32.totalorder %s34, 1
      %s4108 = scalar_select %p4107, %s34, 1
      %s4109 = smul.addr %s4108, 8
      %s4110 = scalar_lea.vmem %s17, %s4109
      // Predicated region
      $region85: #{nnconv_encoder_forward.1} parent=83 // pred_check
        %p4111 = pneg %p408
      $region86: #{nnconv_encoder_forward.1} parent=83 // pred_check_branch
        %4113 = sbr.rel (%p4111) target = $region88
      $region87: #{nnconv_encoder_forward.1} parent=83 // pred_region
        _
      $region88: #{nnconv_encoder_forward.1} parent=83 // pred_fallthru
        _
    $region84: #{nnconv_encoder_forward.1} parent=5 // pred_fallthru
      _
    %p4114 = scmp.le.s32.totalorder 2, %s29
    // Predicated region
    $region89: #{nnconv_encoder_forward.1} parent=5 // pred_check
      %p4115 = pneg %p4114
    $region90: #{nnconv_encoder_forward.1} parent=5 // pred_check_branch
      %4117 = sbr.rel (%p4115) target = $region92
    $region91: #{nnconv_encoder_forward.1} parent=5 // pred_region
      %s4118 = ssub.s32 %s29, 2
      // Predicated region
      $region93: #{nnconv_encoder_forward.1} parent=91 // pred_check
        %p4119 = pneg %p414
      $region94: #{nnconv_encoder_forward.1} parent=91 // pred_check_branch
        %4121 = sbr.rel (%p4119) target = $region96
      $region95: #{nnconv_encoder_forward.1} parent=91 // pred_region
        %p4122 = scmp.lt.s32.totalorder %s35, 1
        %s4123 = scalar_select %p4122, %s35, 1
        %s4124 = smul.addr %s4123, 8
        %s4125 = scalar_lea.vmem %s17, %s4124
      $region96: #{nnconv_encoder_forward.1} parent=91 // pred_fallthru
        _
    $region92: #{nnconv_encoder_forward.1} parent=5 // pred_fallthru
      _
  $region6: #{nnconv_encoder_forward.1} parent=0 // loop_footer
    %s33 = sadd.s32 1, %s29
  $region7: #{nnconv_encoder_forward.1} parent=0 // loop_footer_branch
    %28 = sbr.rel target = $region3
  $region8: #{nnconv_encoder_forward.1} parent=0 // loop_exit
    _

</llo_original>
